<compile_context>
chip_gen: v5e
topology: v5e:2x2
jax: 0.10.0
libtpu: 0.0.40
codegen_flags: <defaults>
</compile_context>

<pallas_src>
import functools
import math

import jax
import jax.numpy as jnp
from jax import lax
from jax.experimental import pallas as pl
from jax.experimental.pallas import tpu as pltpu


def _quick_gelu(x):
    return x * jax.nn.sigmoid(1.702 * x)


def convpass_kernel(x_ref, wd_ref, bd_ref, wc9_ref, bc_ref, wu_ref, bu_ref,
                    o_ref, xp_ref, *, stride):
    # x_ref block: (Bt, H, W, Cin) -- Bt images per grid step (grid over batch).
    Bt, H, W, Cin = x_ref.shape
    dim = wd_ref.shape[1]
    out_dim = wu_ref.shape[1]
    _, Ho, Wo, _ = o_ref.shape
    cdt = xp_ref.dtype  # compute dtype for MXU operands (f32 or bf16)

    # ---- adapter_down: 1x1 conv == one (Bt*H*W, Cin) @ (Cin, dim) matmul
    xf = x_ref[...].reshape(Bt * H * W, Cin)
    xd = jnp.dot(xf, wd_ref[...], preferred_element_type=jnp.float32) + bd_ref[...]
    xd = _quick_gelu(xd)                                  # f32 VPU/EUP work
    xd4 = xd.astype(cdt).reshape(Bt, H, W, dim)

    # ---- zero padding (padding=1) into the persistent VMEM scratch.
    # Zero only the 1-pixel border; the interior is fully overwritten below.
    # (Re-zeroed every step: a once-only @pl.when(program_id==0) init would be
    #  incorrect when the "parallel" batch axis is sharded across TensorCores.)
    zrow = jnp.zeros((Bt, 1, W + 2, dim), cdt)
    zcol = jnp.zeros((Bt, H, 1, dim), cdt)
    xp_ref[:, 0:1, :, :] = zrow
    xp_ref[:, H + 1:H + 2, :, :] = zrow
    xp_ref[:, 1:H + 1, 0:1, :] = zcol
    xp_ref[:, 1:H + 1, W + 1:W + 2, :] = zcol
    xp_ref[:, 1:H + 1, 1:W + 1, :] = xd4

    # ---- 3x3 conv (stride s, pad 1) as a single im2col matmul:
    # gather the 9 shifted (and, for s>1, strided) taps, concatenate along the
    # channel axis -> (Bt*Ho*Wo, 9*dim), then ONE matmul with (9*dim, dim).
    xp = xp_ref[...]
    taps = []
    for ky in range(3):
        ye = ky + stride * (Ho - 1) + 1
        for kx in range(3):
            xe = kx + stride * (Wo - 1) + 1
            taps.append(xp[:, ky:ye:stride, kx:xe:stride, :])  # (Bt, Ho, Wo, dim)
    xcol = jnp.concatenate(taps, axis=-1).reshape(Bt * Ho * Wo, 9 * dim)
    acc = jnp.dot(xcol, wc9_ref[...], preferred_element_type=jnp.float32) + bc_ref[...]
    y = _quick_gelu(acc).astype(cdt)                       # (Bt*Ho*Wo, dim)

    # ---- adapter_up: 1x1 conv == (Bt*Ho*Wo, dim) @ (dim, out_dim) + bias
    out = jnp.dot(y, wu_ref[...], preferred_element_type=jnp.float32) + bu_ref[...]
    o_ref[...] = out.reshape(Bt, Ho, Wo, out_dim).astype(o_ref.dtype)


def _per_image_vmem_bytes(H, W, Cin, dim, out_dim, Ho, Wo, itemsize):
    """Rough per-image VMEM footprint of one grid step (conservative)."""
    return (2 * H * W * Cin * itemsize                 # double-buffered input block
            + 2 * Ho * Wo * out_dim * 4                # double-buffered f32 output block
            + (H + 2) * (W + 2) * dim * itemsize       # padded scratch
            + 12 * H * W * dim * 4)                    # im2col + f32 intermediates (rough)


def _pick_batch_tile(N, H, W, Cin, dim, out_dim, Ho, Wo, itemsize,
                     vmem_budget_bytes):
    """Largest Bt dividing N whose VMEM footprint fits a conservative budget
    (safe on v7x's 64 MiB VMEM) while keeping grid length >= 2 so the parallel
    batch axis can be sharded across both v7x TensorCores."""
    per_img = _per_image_vmem_bytes(H, W, Cin, dim, out_dim, Ho, Wo, itemsize)
    best = 1
    for bt in range(1, N + 1):
        if N % bt == 0 and bt * per_img <= vmem_budget_bytes and (N // bt >= 2 or N == 1):
            best = bt
    return best


@functools.partial(jax.jit, static_argnames=("stride", "compute_dtype",
                                              "batch_tile", "vmem_budget_bytes"))
def convpass_forward(x_nhwc, params, stride=1, compute_dtype=jnp.float32,
                     batch_tile=None, vmem_budget_bytes=24 << 20):
    """Convpass forward. x_nhwc: (N, H, W, Cin) float32, channels-last.

    Returns (N, Ho, Wo, out_dim) float32. compute_dtype=jnp.bfloat16 halves the
    DMA/VMEM footprint (accumulation + QuickGELU stay f32).
    """
    wd, bd, wc, bc, wu, bu = params
    N, H, W, Cin = x_nhwc.shape
    dim = wd.shape[1]
    out_dim = wu.shape[1]
    Ho = (H + 2 - 3) // stride + 1
    Wo = (W + 2 - 3) // stride + 1
    itemsize = jnp.dtype(compute_dtype).itemsize

    # im2col weight layout: (3, 3, dim, dim) -> (9*dim, dim); tap-major (ky, kx)
    # matches the tap concatenation order in the kernel.
    wc9 = wc.reshape(9 * dim, dim)

    # Cast only the MXU/DMA operands; biases (VPU adds) stay f32 (v5e-safe).
    x_c = x_nhwc.astype(compute_dtype)
    wd_c = wd.astype(compute_dtype)
    wc9_c = wc9.astype(compute_dtype)
    wu_c = wu.astype(compute_dtype)

    if batch_tile is None:
        batch_tile = _pick_batch_tile(N, H, W, Cin, dim, out_dim, Ho, Wo,
                                      itemsize, vmem_budget_bytes)
    Bt = batch_tile
    assert N % Bt == 0, (N, Bt)

    # Explicit scoped-VMEM limit: never below the 32 MiB default (so small
    # problems keep working everywhere), never above a v7x-safe 56 MiB.
    weight_bytes = (Cin * dim + 9 * dim * dim + dim * out_dim) * itemsize \
        + (2 * dim + out_dim) * 4
    footprint = Bt * _per_image_vmem_bytes(H, W, Cin, dim, out_dim, Ho, Wo,
                                           itemsize) + 2 * weight_bytes
    vmem_limit = int(min(56 << 20, max(32 << 20, footprint + (4 << 20))))

    # Advisory cost hint for XLA's scheduler around the custom call.
    flops = 2 * N * (H * W * Cin * dim + Ho * Wo * 9 * dim * dim
                     + Ho * Wo * dim * out_dim)
    transcendentals = N * (H * W * dim + Ho * Wo * dim)
    bytes_accessed = (N * H * W * Cin * itemsize
                      + N * Ho * Wo * out_dim * 4
                      + weight_bytes)

    kernel = functools.partial(convpass_kernel, stride=stride)
    out = pl.pallas_call(
        kernel,
        out_shape=jax.ShapeDtypeStruct((N, Ho, Wo, out_dim), jnp.float32),
        grid_spec=pltpu.PrefetchScalarGridSpec(
            num_scalar_prefetch=0,
            grid=(N // Bt,),
            in_specs=[
                pl.BlockSpec((Bt, H, W, Cin), lambda n: (n, 0, 0, 0)),
                pl.BlockSpec((Cin, dim), lambda n: (0, 0)),
                pl.BlockSpec((1, dim), lambda n: (0, 0)),
                pl.BlockSpec((9 * dim, dim), lambda n: (0, 0)),
                pl.BlockSpec((1, dim), lambda n: (0, 0)),
                pl.BlockSpec((dim, out_dim), lambda n: (0, 0)),
                pl.BlockSpec((1, out_dim), lambda n: (0, 0)),
            ],
            out_specs=pl.BlockSpec((Bt, Ho, Wo, out_dim), lambda n: (n, 0, 0, 0)),
            scratch_shapes=[pltpu.VMEM((Bt, H + 2, W + 2, dim), compute_dtype)],
        ),
        compiler_params=pltpu.CompilerParams(
            dimension_semantics=("parallel",),
            vmem_limit_bytes=vmem_limit,
        ),
        cost_estimate=pl.CostEstimate(flops=flops,
                                      transcendentals=transcendentals,
                                      bytes_accessed=bytes_accessed),
    )(x_c, wd_c, bd, wc9_c, bc, wu_c, bu)
    return out


def convpass_forward_nchw(x_nchw, params, **kw):
    """PyTorch-layout (NCHW) compatibility wrapper. In a real model keep
    activations NHWC end-to-end and call convpass_forward directly -- these two
    transposes each cost a full HBM round trip."""
    out = convpass_forward(jnp.transpose(x_nchw, (0, 2, 3, 1)), params, **kw)
    return jnp.transpose(out, (0, 3, 1, 2))


def init_params(key, in_dim, out_dim, dim):
    """Deterministic parameter init following Convpass.__init__ shapes.

    adapter_down: xavier_uniform weight, zero bias.
    adapter_conv: zero weight + identity at kernel center (xavier_init=False), zero bias.
    adapter_up:   the module zero-inits this (forward would be exactly 0);
                  use small deterministic random values so the kernel path is
                  actually exercised numerically.
    """
    k1, k2 = jax.random.split(key)
    bound = math.sqrt(6.0 / (in_dim + dim))          # 1x1 conv: fan_in=in_dim, fan_out=dim
    wd = jax.random.uniform(k1, (in_dim, dim), jnp.float32, -bound, bound)
    bd = jnp.zeros((1, dim), jnp.float32)

    wc = jnp.zeros((3, 3, dim, dim), jnp.float32)    # HWIO: (kh, kw, in, out)
    wc = wc.at[1, 1].set(jnp.eye(dim, dtype=jnp.float32))
    bc = jnp.zeros((1, dim), jnp.float32)

    wu = 0.02 * jax.random.normal(k2, (dim, out_dim), jnp.float32)
    bu = jnp.zeros((1, out_dim), jnp.float32)
    return wd, bd, wc, bc, wu, bu


def convpass_reference(x_nhwc, params, stride=1):
    """Pure-JAX reference matching the PyTorch module (NHWC convs, same math)."""
    wd, bd, wc, bc, wu, bu = params
    dn = ("NHWC", "HWIO", "NHWC")
    x = lax.conv_general_dilated(x_nhwc, wd[None, None], (1, 1), "VALID",
                                 dimension_numbers=dn) + bd.reshape(1, 1, 1, -1)
    x = _quick_gelu(x)
    x = lax.conv_general_dilated(x, wc, (stride, stride), ((1, 1), (1, 1)),
                                 dimension_numbers=dn) + bc.reshape(1, 1, 1, -1)
    x = _quick_gelu(x)
    x = lax.conv_general_dilated(x, wu[None, None], (1, 1), "VALID",
                                 dimension_numbers=dn) + bu.reshape(1, 1, 1, -1)
    return x
    # TODO(synk): nn.Dropout(0.1) is constructed in Convpass.__init__ but never
    # applied in forward, so it is intentionally not implemented here.


if __name__ == "__main__":
    N, in_dim, out_dim, dim = 2, 4, 4, 8
    H = W = 16
    stride = 1

    key = jax.random.PRNGKey(0)
    kx_, kp_ = jax.random.split(key)
    x = jax.random.normal(kx_, (N, H, W, in_dim), jnp.float32)   # NHWC end-to-end
    params = init_params(kp_, in_dim, out_dim, dim)

    ref = convpass_reference(x, params, stride=stride)

    # f32 path (bitwise-close check)
    out = convpass_forward(x, params, stride=stride)
    out = jax.block_until_ready(out)
    assert out.shape == ref.shape == (N, H // stride, W // stride, out_dim)
    assert jnp.allclose(out, ref, atol=1e-4, rtol=1e-4), (
        float(jnp.max(jnp.abs(out - ref))))

    # bf16 DMA/MXU path with f32 accumulation (looser tolerance)
    out_bf16 = convpass_forward(x, params, stride=stride,
                                compute_dtype=jnp.bfloat16)
    out_bf16 = jax.block_until_ready(out_bf16)
    assert jnp.allclose(out_bf16, ref, atol=3e-2, rtol=3e-2), (
        float(jnp.max(jnp.abs(out_bf16 - ref))))

    # NCHW (PyTorch-layout) compatibility wrapper
    out_nchw = convpass_forward_nchw(jnp.transpose(x, (0, 3, 1, 2)), params,
                                     stride=stride)
    out_nchw = jax.block_until_ready(out_nchw)
    assert jnp.allclose(jnp.transpose(out_nchw, (0, 2, 3, 1)), ref,
                        atol=1e-4, rtol=1e-4)

    print("KERNEL_OK")
</pallas_src>

<mosaic_0001>
module attributes {stable_mosaic.version = 11 : i64} {
  func.func @convpass_kernel(%arg0: i32, %arg1: memref<1x16x16x4xf32, #tpu.memory_space<vmem>>, %arg2: memref<4x8xf32, #tpu.memory_space<vmem>>, %arg3: memref<1x8xf32, #tpu.memory_space<vmem>>, %arg4: memref<72x8xf32, #tpu.memory_space<vmem>>, %arg5: memref<1x8xf32, #tpu.memory_space<vmem>>, %arg6: memref<8x4xf32, #tpu.memory_space<vmem>>, %arg7: memref<1x4xf32, #tpu.memory_space<vmem>>, %arg8: memref<1x16x16x4xf32, #tpu.memory_space<vmem>>, %arg9: memref<1x18x18x8xf32, #tpu.memory_space<vmem>>) attributes {dimension_semantics = [#tpu.dimension_semantics<parallel>], iteration_bounds = array<i64: 2>, scalar_prefetch = 0 : i64, scratch_operands = 1 : i64, tpu.core_type = #tpu.core_type<tc>, window_params = [{transform_indices = @transform_0, window_bounds = array<i64: 1, 16, 16, 4>}, {pipeline_mode = #tpu.pipeline_mode<synchronous>, transform_indices = @transform_1, window_bounds = array<i64: 4, 8>}, {pipeline_mode = #tpu.pipeline_mode<synchronous>, transform_indices = @transform_2, window_bounds = array<i64: 1, 8>}, {pipeline_mode = #tpu.pipeline_mode<synchronous>, transform_indices = @transform_3, window_bounds = array<i64: 72, 8>}, {pipeline_mode = #tpu.pipeline_mode<synchronous>, transform_indices = @transform_4, window_bounds = array<i64: 1, 8>}, {pipeline_mode = #tpu.pipeline_mode<synchronous>, transform_indices = @transform_5, window_bounds = array<i64: 8, 4>}, {pipeline_mode = #tpu.pipeline_mode<synchronous>, transform_indices = @transform_6, window_bounds = array<i64: 1, 4>}, {transform_indices = @transform_7, window_bounds = array<i64: 1, 16, 16, 4>}]} {
    %c0 = arith.constant 0 : index
    %c0_0 = arith.constant 0 : index
    %c0_1 = arith.constant 0 : index
    %c0_2 = arith.constant 0 : index
    %0 = vector.load %arg1[%c0, %c0_0, %c0_1, %c0_2] : memref<1x16x16x4xf32, #tpu.memory_space<vmem>>, vector<1x16x16x4xf32>
    %1 = vector.shape_cast %0 : vector<1x16x16x4xf32> to vector<256x4xf32>
    %c0_3 = arith.constant 0 : index
    %c0_4 = arith.constant 0 : index
    %2 = vector.load %arg2[%c0_3, %c0_4] : memref<4x8xf32, #tpu.memory_space<vmem>>, vector<4x8xf32>
    %cst = arith.constant dense<0.000000e+00> : vector<256x8xf32>
    %3 = tpu.matmul %1, %2, %cst {dimension_numbers = #tpu.dot_dimension_numbers<[1], [0], [0], [1], [0, 0, 1, 1], [], []>} : vector<256x4xf32>, vector<4x8xf32>, vector<256x8xf32> -> vector<256x8xf32>
    %c0_5 = arith.constant 0 : index
    %c0_6 = arith.constant 0 : index
    %4 = vector.load %arg3[%c0_5, %c0_6] : memref<1x8xf32, #tpu.memory_space<vmem>>, vector<1x8xf32>
    %5 = vector.broadcast %4 : vector<1x8xf32> to vector<256x8xf32>
    %6 = arith.addf %3, %5 : vector<256x8xf32>
    %cst_7 = arith.constant 1.702000e+00 : f32
    %7 = vector.broadcast %cst_7 : f32 to vector<256x8xf32>
    %8 = arith.mulf %7, %6 : vector<256x8xf32>
    %9 = arith.negf %8 : vector<256x8xf32>
    %10 = math.exp %9 : vector<256x8xf32>
    %cst_8 = arith.constant 1.000000e+00 : f32
    %11 = vector.broadcast %cst_8 : f32 to vector<256x8xf32>
    %12 = arith.addf %11, %10 : vector<256x8xf32>
    %13 = arith.divf %11, %12 : vector<256x8xf32>
    %14 = arith.mulf %6, %13 : vector<256x8xf32>
    %15 = vector.shape_cast %14 : vector<256x8xf32> to vector<1x16x16x8xf32>
    %cst_9 = arith.constant 0.000000e+00 : f32
    %16 = vector.broadcast %cst_9 : f32 to vector<1x1x18x8xf32>
    %cst_10 = arith.constant 0.000000e+00 : f32
    %17 = vector.broadcast %cst_10 : f32 to vector<1x16x1x8xf32>
    %c0_11 = arith.constant 0 : index
    %c0_12 = arith.constant 0 : index
    %c0_13 = arith.constant 0 : index
    %c0_14 = arith.constant 0 : index
    %18 = vector.load %arg9[%c0_11, %c0_12, %c0_13, %c0_14] : memref<1x18x18x8xf32, #tpu.memory_space<vmem>>, vector<1x1x18x8xf32>
    tpu.vector_store %arg9[%c0_11, %c0_12, %c0_13, %c0_14], %16 {strides = array<i32>} : memref<1x18x18x8xf32, #tpu.memory_space<vmem>>, vector<1x1x18x8xf32>,
    %c0_15 = arith.constant 0 : index
    %c17 = arith.constant 17 : index
    %c0_16 = arith.constant 0 : index
    %c0_17 = arith.constant 0 : index
    %19 = vector.load %arg9[%c0_15, %c17, %c0_16, %c0_17] : memref<1x18x18x8xf32, #tpu.memory_space<vmem>>, vector<1x1x18x8xf32>
    tpu.vector_store %arg9[%c0_15, %c17, %c0_16, %c0_17], %16 {strides = array<i32>} : memref<1x18x18x8xf32, #tpu.memory_space<vmem>>, vector<1x1x18x8xf32>,
    %c0_18 = arith.constant 0 : index
    %c1 = arith.constant 1 : index
    %c0_19 = arith.constant 0 : index
    %c0_20 = arith.constant 0 : index
    %20 = vector.load %arg9[%c0_18, %c1, %c0_19, %c0_20] : memref<1x18x18x8xf32, #tpu.memory_space<vmem>>, vector<1x16x1x8xf32>
    tpu.vector_store %arg9[%c0_18, %c1, %c0_19, %c0_20], %17 {strides = array<i32>} : memref<1x18x18x8xf32, #tpu.memory_space<vmem>>, vector<1x16x1x8xf32>,
    %c0_21 = arith.constant 0 : index
    %c1_22 = arith.constant 1 : index
    %c17_23 = arith.constant 17 : index
    %c0_24 = arith.constant 0 : index
    %21 = vector.load %arg9[%c0_21, %c1_22, %c17_23, %c0_24] : memref<1x18x18x8xf32, #tpu.memory_space<vmem>>, vector<1x16x1x8xf32>
    tpu.vector_store %arg9[%c0_21, %c1_22, %c17_23, %c0_24], %17 {strides = array<i32>} : memref<1x18x18x8xf32, #tpu.memory_space<vmem>>, vector<1x16x1x8xf32>,
    %c0_25 = arith.constant 0 : index
    %c1_26 = arith.constant 1 : index
    %c1_27 = arith.constant 1 : index
    %c0_28 = arith.constant 0 : index
    %22 = vector.load %arg9[%c0_25, %c1_26, %c1_27, %c0_28] : memref<1x18x18x8xf32, #tpu.memory_space<vmem>>, vector<1x16x16x8xf32>
    tpu.vector_store %arg9[%c0_25, %c1_26, %c1_27, %c0_28], %15 {strides = array<i32>} : memref<1x18x18x8xf32, #tpu.memory_space<vmem>>, vector<1x16x16x8xf32>,
    %c0_29 = arith.constant 0 : index
    %c0_30 = arith.constant 0 : index
    %c0_31 = arith.constant 0 : index
    %c0_32 = arith.constant 0 : index
    %23 = vector.load %arg9[%c0_29, %c0_30, %c0_31, %c0_32] : memref<1x18x18x8xf32, #tpu.memory_space<vmem>>, vector<1x18x18x8xf32>
    %24 = vector.extract_strided_slice %23 {offsets = [0, 0, 0, 0], sizes = [1, 16, 16, 8], strides = [1, 1, 1, 1]} : vector<1x18x18x8xf32> to vector<1x16x16x8xf32>
    %25 = vector.extract_strided_slice %23 {offsets = [0, 0, 1, 0], sizes = [1, 16, 16, 8], strides = [1, 1, 1, 1]} : vector<1x18x18x8xf32> to vector<1x16x16x8xf32>
    %26 = vector.extract_strided_slice %23 {offsets = [0, 0, 2, 0], sizes = [1, 16, 16, 8], strides = [1, 1, 1, 1]} : vector<1x18x18x8xf32> to vector<1x16x16x8xf32>
    %27 = vector.extract_strided_slice %23 {offsets = [0, 1, 0, 0], sizes = [1, 16, 16, 8], strides = [1, 1, 1, 1]} : vector<1x18x18x8xf32> to vector<1x16x16x8xf32>
    %28 = vector.extract_strided_slice %23 {offsets = [0, 1, 1, 0], sizes = [1, 16, 16, 8], strides = [1, 1, 1, 1]} : vector<1x18x18x8xf32> to vector<1x16x16x8xf32>
    %29 = vector.extract_strided_slice %23 {offsets = [0, 1, 2, 0], sizes = [1, 16, 16, 8], strides = [1, 1, 1, 1]} : vector<1x18x18x8xf32> to vector<1x16x16x8xf32>
    %30 = vector.extract_strided_slice %23 {offsets = [0, 2, 0, 0], sizes = [1, 16, 16, 8], strides = [1, 1, 1, 1]} : vector<1x18x18x8xf32> to vector<1x16x16x8xf32>
    %31 = vector.extract_strided_slice %23 {offsets = [0, 2, 1, 0], sizes = [1, 16, 16, 8], strides = [1, 1, 1, 1]} : vector<1x18x18x8xf32> to vector<1x16x16x8xf32>
    %32 = vector.extract_strided_slice %23 {offsets = [0, 2, 2, 0], sizes = [1, 16, 16, 8], strides = [1, 1, 1, 1]} : vector<1x18x18x8xf32> to vector<1x16x16x8xf32>
    %33 = tpu.concatenate %24, %25, %26, %27, %28, %29, %30, %31, %32 in 3 : vector<1x16x16x8xf32>, vector<1x16x16x8xf32>, vector<1x16x16x8xf32>, vector<1x16x16x8xf32>, vector<1x16x16x8xf32>, vector<1x16x16x8xf32>, vector<1x16x16x8xf32>, vector<1x16x16x8xf32>, vector<1x16x16x8xf32> -> vector<1x16x16x72xf32>
    %34 = vector.shape_cast %33 : vector<1x16x16x72xf32> to vector<256x72xf32>
    %c0_33 = arith.constant 0 : index
    %c0_34 = arith.constant 0 : index
    %35 = vector.load %arg4[%c0_33, %c0_34] : memref<72x8xf32, #tpu.memory_space<vmem>>, vector<72x8xf32>
    %cst_35 = arith.constant dense<0.000000e+00> : vector<256x8xf32>
    %36 = tpu.matmul %34, %35, %cst_35 {dimension_numbers = #tpu.dot_dimension_numbers<[1], [0], [0], [1], [0, 0, 1, 1], [], []>} : vector<256x72xf32>, vector<72x8xf32>, vector<256x8xf32> -> vector<256x8xf32>
    %c0_36 = arith.constant 0 : index
    %c0_37 = arith.constant 0 : index
    %37 = vector.load %arg5[%c0_36, %c0_37] : memref<1x8xf32, #tpu.memory_space<vmem>>, vector<1x8xf32>
    %38 = vector.broadcast %37 : vector<1x8xf32> to vector<256x8xf32>
    %39 = arith.addf %36, %38 : vector<256x8xf32>
    %cst_38 = arith.constant 1.702000e+00 : f32
    %40 = vector.broadcast %cst_38 : f32 to vector<256x8xf32>
    %41 = arith.mulf %40, %39 : vector<256x8xf32>
    %42 = arith.negf %41 : vector<256x8xf32>
    %43 = math.exp %42 : vector<256x8xf32>
    %cst_39 = arith.constant 1.000000e+00 : f32
    %44 = vector.broadcast %cst_39 : f32 to vector<256x8xf32>
    %45 = arith.addf %44, %43 : vector<256x8xf32>
    %46 = arith.divf %44, %45 : vector<256x8xf32>
    %47 = arith.mulf %39, %46 : vector<256x8xf32>
    %c0_40 = arith.constant 0 : index
    %c0_41 = arith.constant 0 : index
    %48 = vector.load %arg6[%c0_40, %c0_41] : memref<8x4xf32, #tpu.memory_space<vmem>>, vector<8x4xf32>
    %cst_42 = arith.constant dense<0.000000e+00> : vector<256x4xf32>
    %49 = tpu.matmul %47, %48, %cst_42 {dimension_numbers = #tpu.dot_dimension_numbers<[1], [0], [0], [1], [0, 0, 1, 1], [], []>} : vector<256x8xf32>, vector<8x4xf32>, vector<256x4xf32> -> vector<256x4xf32>
    %c0_43 = arith.constant 0 : index
    %c0_44 = arith.constant 0 : index
    %50 = vector.load %arg7[%c0_43, %c0_44] : memref<1x4xf32, #tpu.memory_space<vmem>>, vector<1x4xf32>
    %51 = vector.broadcast %50 : vector<1x4xf32> to vector<256x4xf32>
    %52 = arith.addf %49, %51 : vector<256x4xf32>
    %53 = vector.shape_cast %52 : vector<256x4xf32> to vector<1x16x16x4xf32>
    %c0_45 = arith.constant 0 : index
    %c0_46 = arith.constant 0 : index
    %c0_47 = arith.constant 0 : index
    %c0_48 = arith.constant 0 : index
    %54 = vector.load %arg8[%c0_45, %c0_46, %c0_47, %c0_48] : memref<1x16x16x4xf32, #tpu.memory_space<vmem>>, vector<1x16x16x4xf32>
    tpu.vector_store %arg8[%c0_45, %c0_46, %c0_47, %c0_48], %53 {strides = array<i32>} : memref<1x16x16x4xf32, #tpu.memory_space<vmem>>, vector<1x16x16x4xf32>,
    return
  }
  func.func @transform_0(%arg0: i32) -> (i32, i32, i32, i32) {
    %c0_i32 = arith.constant 0 : i32
    %c0_i32_0 = arith.constant 0 : i32
    %c0_i32_1 = arith.constant 0 : i32
    %c0_i32_2 = arith.constant 0 : i32
    return %arg0, %c0_i32, %c0_i32_0, %c0_i32_1 : i32, i32, i32, i32
  }
  func.func @transform_1(%arg0: i32) -> (i32, i32) {
    %c0_i32 = arith.constant 0 : i32
    %c0_i32_0 = arith.constant 0 : i32
    %c0_i32_1 = arith.constant 0 : i32
    return %c0_i32, %c0_i32_0 : i32, i32
  }
  func.func @transform_2(%arg0: i32) -> (i32, i32) {
    %c0_i32 = arith.constant 0 : i32
    %c0_i32_0 = arith.constant 0 : i32
    %c0_i32_1 = arith.constant 0 : i32
    return %c0_i32, %c0_i32_0 : i32, i32
  }
  func.func @transform_3(%arg0: i32) -> (i32, i32) {
    %c0_i32 = arith.constant 0 : i32
    %c0_i32_0 = arith.constant 0 : i32
    %c0_i32_1 = arith.constant 0 : i32
    return %c0_i32, %c0_i32_0 : i32, i32
  }
  func.func @transform_4(%arg0: i32) -> (i32, i32) {
    %c0_i32 = arith.constant 0 : i32
    %c0_i32_0 = arith.constant 0 : i32
    %c0_i32_1 = arith.constant 0 : i32
    return %c0_i32, %c0_i32_0 : i32, i32
  }
  func.func @transform_5(%arg0: i32) -> (i32, i32) {
    %c0_i32 = arith.constant 0 : i32
    %c0_i32_0 = arith.constant 0 : i32
    %c0_i32_1 = arith.constant 0 : i32
    return %c0_i32, %c0_i32_0 : i32, i32
  }
  func.func @transform_6(%arg0: i32) -> (i32, i32) {
    %c0_i32 = arith.constant 0 : i32
    %c0_i32_0 = arith.constant 0 : i32
    %c0_i32_1 = arith.constant 0 : i32
    return %c0_i32, %c0_i32_0 : i32, i32
  }
  func.func @transform_7(%arg0: i32) -> (i32, i32, i32, i32) {
    %c0_i32 = arith.constant 0 : i32
    %c0_i32_0 = arith.constant 0 : i32
    %c0_i32_1 = arith.constant 0 : i32
    %c0_i32_2 = arith.constant 0 : i32
    return %arg0, %c0_i32, %c0_i32_0, %c0_i32_1 : i32, i32, i32, i32
  }
}

</mosaic_0001>

<llo_original>
// kernel: convpass_forward.1
$region0: #{convpass_forward.1}
  #allocation0 [shape = 'u32[]', space=smem, size = 0x4, offset = 0x4, fixed_abs, tag = 'smem constant byte address 0x4 - core index']
  #allocation1 [shape = 'u32[72,128]{1,0:T(1,128)}', space=vmem, size = 0x9000, scoped, tag = 'internal scratch']
  #allocation2 [shape = 'f32[1,18,18,8]{3,2,1,0:T(8,128)}', space=vmem, size = 0x36000, scoped, tag = 'scratch operand']
  %s0 = inlined_call_operand.vmem [shape: f32[2,16,16,4], index: 0, kind: input, shape index: {}]
  %s1 = inlined_call_operand.vmem [shape: f32[4,8], index: 1, kind: input, shape index: {}]
  %s2 = inlined_call_operand.vmem [shape: f32[1,8], index: 2, kind: input, shape index: {}]
  %s3 = inlined_call_operand.vmem [shape: f32[72,8], index: 3, kind: input, shape index: {}]
  %s4 = inlined_call_operand.vmem [shape: f32[1,8], index: 4, kind: input, shape index: {}]
  %s5 = inlined_call_operand.vmem [shape: f32[8,4], index: 5, kind: input, shape index: {}]
  %s6 = inlined_call_operand.vmem [shape: f32[1,4], index: 6, kind: input, shape index: {}]
  %s7 = inlined_call_operand.vmem [shape: f32[2,16,16,4], index: 7, kind: output, shape index: {}]
  %s8 = sld [smem:[#allocation0]]
  $region61: #{convpass_forward.1} parent=0
    _
  %s10 = ssub.s32 1, %s8
  %s11 = scalar_select 0, %s10, %s8
  loop: start=0, step=1, limit=4
  $region2: #{convpass_forward.1} parent=0 // loop_pre_header
    _
  $region3: #{convpass_forward.1} parent=0 // loop_header
    %s13 = sphi 0, %s17
    %p14 = scmp.ge.s32.totalorder %s13, 4
    %s23 = sphi 0, %s25
    %s26 = sphi 0, %s23
    %s27 = sphi 0, %s26
    %s43 = sphi 0, %s27
    %s47 = sphi 0, %s47
    %s49 = sphi 0, %s47
    %s50 = sphi 0, %s49
    %s64 = sphi 0, %s50
    %s68 = sphi 0, %s68
    %s70 = sphi 0, %s68
    %s71 = sphi 0, %s70
    %s85 = sphi 0, %s71
    %s89 = sphi 0, %s89
    %s91 = sphi 0, %s89
    %s92 = sphi 0, %s91
    %s106 = sphi 0, %s92
    %s110 = sphi 0, %s110
    %s112 = sphi 0, %s110
    %s113 = sphi 0, %s112
    %s127 = sphi 0, %s113
    %s131 = sphi 0, %s131
    %s133 = sphi 0, %s131
    %s134 = sphi 0, %s133
    %s148 = sphi 0, %s134
    %s152 = sphi 0, %s152
    %s154 = sphi 0, %s152
    %s155 = sphi 0, %s154
    %s169 = sphi 0, %s155
    %s175 = sphi 0, %s177
    %s178 = sphi 0, %s175
    %s179 = sphi 0, %s178
    %s195 = sphi 0, %s179
  $region4: #{convpass_forward.1} parent=0 // loop_header_branch
    %16 = sbr.rel (%p14) target = $region8
  $region5: #{convpass_forward.1} parent=0 // loop_body
    %s18 = ssub.s32 %s13, 1
    %s19 = ssub.s32 %s13, 2
    %s20 = sadd.s32 %s13, 1
    %s21 = ssub.s32 %s13, %s20
    %p22 = scmp.eq.s32.totalorder %s21, 0
    %s24 = sadd.s32 %s23, 1
    %s25 = scalar_select %p22, %s23, %s24
    %p28 = pneg %p22
    %p29 = scmp.eq.s32.totalorder %s13, 1
    %p30 = por %p28, %p29
    %p31 = scmp.ne.s32.totalorder %s23, %s26
    %p32 = scmp.eq.s32.totalorder %s13, 0
    %p33 = por %p31, %p32
    %p34 = scmp.ne.s32.totalorder %s23, %s26
    %p35 = scmp.eq.s32.totalorder %s18, 1
    %p36 = por %p34, %p35
    %p37 = scmp.ne.s32.totalorder %s26, %s27
    %p38 = scmp.eq.s32.totalorder %s18, 0
    %p39 = por %p37, %p38
    %p40 = scmp.ne.s32.totalorder %s26, %s27
    %p41 = scmp.eq.s32.totalorder %s19, 1
    %p42 = por %p40, %p41
    %p44 = scmp.ne.s32.totalorder %s27, %s43
    %p45 = scmp.eq.s32.totalorder %s19, 0
    %p46 = por %p44, %p45
    %s48 = sadd.s32 %s47, 1
    %p51 = scmp.eq.s32.totalorder %s13, 1
    %p52 = scmp.ne.s32.totalorder %s47, %s49
    %p53 = scmp.eq.s32.totalorder %s13, 0
    %p54 = por %p52, %p53
    %p55 = scmp.ne.s32.totalorder %s47, %s49
    %p56 = scmp.eq.s32.totalorder %s18, 1
    %p57 = por %p55, %p56
    %p58 = scmp.ne.s32.totalorder %s49, %s50
    %p59 = scmp.eq.s32.totalorder %s18, 0
    %p60 = por %p58, %p59
    %p61 = scmp.ne.s32.totalorder %s49, %s50
    %p62 = scmp.eq.s32.totalorder %s19, 1
    %p63 = por %p61, %p62
    %p65 = scmp.ne.s32.totalorder %s50, %s64
    %p66 = scmp.eq.s32.totalorder %s19, 0
    %p67 = por %p65, %p66
    %s69 = sadd.s32 %s68, 1
    %p72 = scmp.eq.s32.totalorder %s13, 1
    %p73 = scmp.ne.s32.totalorder %s68, %s70
    %p74 = scmp.eq.s32.totalorder %s13, 0
    %p75 = por %p73, %p74
    %p76 = scmp.ne.s32.totalorder %s68, %s70
    %p77 = scmp.eq.s32.totalorder %s18, 1
    %p78 = por %p76, %p77
    %p79 = scmp.ne.s32.totalorder %s70, %s71
    %p80 = scmp.eq.s32.totalorder %s18, 0
    %p81 = por %p79, %p80
    %p82 = scmp.ne.s32.totalorder %s70, %s71
    %p83 = scmp.eq.s32.totalorder %s19, 1
    %p84 = por %p82, %p83
    %p86 = scmp.ne.s32.totalorder %s71, %s85
    %p87 = scmp.eq.s32.totalorder %s19, 0
    %p88 = por %p86, %p87
    %s90 = sadd.s32 %s89, 1
    %p93 = scmp.eq.s32.totalorder %s13, 1
    %p94 = scmp.ne.s32.totalorder %s89, %s91
    %p95 = scmp.eq.s32.totalorder %s13, 0
    %p96 = por %p94, %p95
    %p97 = scmp.ne.s32.totalorder %s89, %s91
    %p98 = scmp.eq.s32.totalorder %s18, 1
    %p99 = por %p97, %p98
    %p100 = scmp.ne.s32.totalorder %s91, %s92
    %p101 = scmp.eq.s32.totalorder %s18, 0
    %p102 = por %p100, %p101
    %p103 = scmp.ne.s32.totalorder %s91, %s92
    %p104 = scmp.eq.s32.totalorder %s19, 1
    %p105 = por %p103, %p104
    %p107 = scmp.ne.s32.totalorder %s92, %s106
    %p108 = scmp.eq.s32.totalorder %s19, 0
    %p109 = por %p107, %p108
    %s111 = sadd.s32 %s110, 1
    %p114 = scmp.eq.s32.totalorder %s13, 1
    %p115 = scmp.ne.s32.totalorder %s110, %s112
    %p116 = scmp.eq.s32.totalorder %s13, 0
    %p117 = por %p115, %p116
    %p118 = scmp.ne.s32.totalorder %s110, %s112
    %p119 = scmp.eq.s32.totalorder %s18, 1
    %p120 = por %p118, %p119
    %p121 = scmp.ne.s32.totalorder %s112, %s113
    %p122 = scmp.eq.s32.totalorder %s18, 0
    %p123 = por %p121, %p122
    %p124 = scmp.ne.s32.totalorder %s112, %s113
    %p125 = scmp.eq.s32.totalorder %s19, 1
    %p126 = por %p124, %p125
    %p128 = scmp.ne.s32.totalorder %s113, %s127
    %p129 = scmp.eq.s32.totalorder %s19, 0
    %p130 = por %p128, %p129
    %s132 = sadd.s32 %s131, 1
    %p135 = scmp.eq.s32.totalorder %s13, 1
    %p136 = scmp.ne.s32.totalorder %s131, %s133
    %p137 = scmp.eq.s32.totalorder %s13, 0
    %p138 = por %p136, %p137
    %p139 = scmp.ne.s32.totalorder %s131, %s133
    %p140 = scmp.eq.s32.totalorder %s18, 1
    %p141 = por %p139, %p140
    %p142 = scmp.ne.s32.totalorder %s133, %s134
    %p143 = scmp.eq.s32.totalorder %s18, 0
    %p144 = por %p142, %p143
    %p145 = scmp.ne.s32.totalorder %s133, %s134
    %p146 = scmp.eq.s32.totalorder %s19, 1
    %p147 = por %p145, %p146
    %p149 = scmp.ne.s32.totalorder %s134, %s148
    %p150 = scmp.eq.s32.totalorder %s19, 0
    %p151 = por %p149, %p150
    %s153 = sadd.s32 %s152, 1
    %p156 = scmp.eq.s32.totalorder %s13, 1
    %p157 = scmp.ne.s32.totalorder %s152, %s154
    %p158 = scmp.eq.s32.totalorder %s13, 0
    %p159 = por %p157, %p158
    %p160 = scmp.ne.s32.totalorder %s152, %s154
    %p161 = scmp.eq.s32.totalorder %s18, 1
    %p162 = por %p160, %p161
    %p163 = scmp.ne.s32.totalorder %s154, %s155
    %p164 = scmp.eq.s32.totalorder %s18, 0
    %p165 = por %p163, %p164
    %p166 = scmp.ne.s32.totalorder %s154, %s155
    %p167 = scmp.eq.s32.totalorder %s19, 1
    %p168 = por %p166, %p167
    %p170 = scmp.ne.s32.totalorder %s155, %s169
    %p171 = scmp.eq.s32.totalorder %s19, 0
    %p172 = por %p170, %p171
    %s173 = ssub.s32 %s13, %s20
    %p174 = scmp.eq.s32.totalorder %s173, 0
    %s176 = sadd.s32 %s175, 1
    %s177 = scalar_select %p174, %s175, %s176
    %p180 = pneg %p174
    %p181 = scmp.eq.s32.totalorder %s13, 1
    %p182 = por %p180, %p181
    %p183 = scmp.ne.s32.totalorder %s175, %s178
    %p184 = scmp.eq.s32.totalorder %s13, 0
    %p185 = por %p183, %p184
    %p186 = scmp.ne.s32.totalorder %s175, %s178
    %p187 = scmp.eq.s32.totalorder %s18, 1
    %p188 = por %p186, %p187
    %p189 = scmp.ne.s32.totalorder %s178, %s179
    %p190 = scmp.eq.s32.totalorder %s18, 0
    %p191 = por %p189, %p190
    %p192 = scmp.ne.s32.totalorder %s178, %s179
    %p193 = scmp.eq.s32.totalorder %s19, 1
    %p194 = por %p192, %p193
    %p196 = scmp.ne.s32.totalorder %s179, %s195
    %p197 = scmp.eq.s32.totalorder %s19, 0
    %p198 = por %p196, %p197
    %p199 = scmp.le.s32.totalorder 1, %s13
    %p200 = scmp.lt.s32.totalorder %s13, 3
    %p201 = pnand %p199, %p200
    %p202 = pneg %p201
    // Predicated region
    $region9: #{convpass_forward.1} parent=5 // pred_check
      _
    $region10: #{convpass_forward.1} parent=5 // pred_check_branch
      %204 = sbr.rel (%p201) target = $region12
    $region11: #{convpass_forward.1} parent=5 // pred_region
      %s205 = ssub.s32 %s13, 1
      // Predicated region
      $region13: #{convpass_forward.1} parent=11 // pred_check
        %p206 = pneg %p60
      $region14: #{convpass_forward.1} parent=11 // pred_check_branch
        %208 = sbr.rel (%p206) target = $region16
      $region15: #{convpass_forward.1} parent=11 // pred_region
        _
      $region16: #{convpass_forward.1} parent=11 // pred_fallthru
        _
      // Predicated region
      $region17: #{convpass_forward.1} parent=11 // pred_check
        %p209 = pneg %p81
      $region18: #{convpass_forward.1} parent=11 // pred_check_branch
        %211 = sbr.rel (%p209) target = $region20
      $region19: #{convpass_forward.1} parent=11 // pred_region
        _
      $region20: #{convpass_forward.1} parent=11 // pred_fallthru
        _
      // Predicated region
      $region21: #{convpass_forward.1} parent=11 // pred_check
        %p212 = pneg %p102
      $region22: #{convpass_forward.1} parent=11 // pred_check_branch
        %214 = sbr.rel (%p212) target = $region24
      $region23: #{convpass_forward.1} parent=11 // pred_region
        _
      $region24: #{convpass_forward.1} parent=11 // pred_fallthru
        _
      // Predicated region
      $region25: #{convpass_forward.1} parent=11 // pred_check
        %p215 = pneg %p123
      $region26: #{convpass_forward.1} parent=11 // pred_check_branch
        %217 = sbr.rel (%p215) target = $region28
      $region27: #{convpass_forward.1} parent=11 // pred_region
        _
      $region28: #{convpass_forward.1} parent=11 // pred_fallthru
        _
      // Predicated region
      $region29: #{convpass_forward.1} parent=11 // pred_check
        %p218 = pneg %p144
      $region30: #{convpass_forward.1} parent=11 // pred_check_branch
        %220 = sbr.rel (%p218) target = $region32
      $region31: #{convpass_forward.1} parent=11 // pred_region
        _
      $region32: #{convpass_forward.1} parent=11 // pred_fallthru
        _
      // Predicated region
      $region33: #{convpass_forward.1} parent=11 // pred_check
        %p221 = pneg %p165
      $region34: #{convpass_forward.1} parent=11 // pred_check_branch
        %223 = sbr.rel (%p221) target = $region36
      $region35: #{convpass_forward.1} parent=11 // pred_region
        _
      $region36: #{convpass_forward.1} parent=11 // pred_fallthru
        _
    $region12: #{convpass_forward.1} parent=5 // pred_fallthru
      _
    %p224 = scmp.lt.s32.totalorder %s13, 2
    // Predicated region
    $region37: #{convpass_forward.1} parent=5 // pred_check
      %p225 = pneg %p224
    $region38: #{convpass_forward.1} parent=5 // pred_check_branch
      %227 = sbr.rel (%p225) target = $region40
    $region39: #{convpass_forward.1} parent=5 // pred_region
      // Predicated region
      $region41: #{convpass_forward.1} parent=39 // pred_check
        %p228 = pneg %p33
      $region42: #{convpass_forward.1} parent=39 // pred_check_branch
        %230 = sbr.rel (%p228) target = $region44
      $region43: #{convpass_forward.1} parent=39 // pred_region
        %p231 = scmp.lt.s32.totalorder %s13, 1
        %s232 = scalar_select %p231, %s13, 1
        %s233 = smul.addr %s232, 32
        %s234 = smul.addr %s233, 8
        %s235 = scalar_lea.vmem %s0, %s234
      $region44: #{convpass_forward.1} parent=39 // pred_fallthru
        _
    $region40: #{convpass_forward.1} parent=5 // pred_fallthru
      _
    %p236 = scmp.le.s32.totalorder 1, %s13
    %p237 = scmp.lt.s32.totalorder %s13, 3
    %p238 = pnand %p236, %p237
    %p239 = pneg %p238
    // Predicated region
    $region45: #{convpass_forward.1} parent=5 // pred_check
      _
    $region46: #{convpass_forward.1} parent=5 // pred_check_branch
      %241 = sbr.rel (%p238) target = $region48
    $region47: #{convpass_forward.1} parent=5 // pred_region
      %s242 = ssub.s32 %s13, 1
      %p243 = scmp.lt.s32.totalorder %s18, 1
      %s244 = scalar_select %p243, %s18, 1
      %s245 = smul.addr %s244, 32
      %s246 = smul.addr %s245, 8
      %s247 = scalar_lea.vmem %s0, %s246
      %p248 = pneg %p39
      %p249 = pneg %p36
      %p250 = pneg %p60
      %p251 = pneg %p57
      %p252 = pneg %p81
      %p253 = pneg %p78
      %p254 = pneg %p102
      %p255 = pneg %p99
      %p256 = pneg %p123
      %p257 = pneg %p120
      %p258 = pneg %p144
      %p259 = pneg %p141
      %p260 = pneg %p165
      %p261 = pneg %p162
      %p262 = pneg %p191
      %p263 = pneg %p188
      %p264 = scmp.lt.s32.totalorder %s18, 1
      %s265 = scalar_select %p264, %s18, 1
      %s266 = smul.addr %s265, 32
      %s267 = smul.addr %s266, 8
      %s268 = scalar_lea.vmem %s7, %s267
      %p269 = scmp.lt.s32.totalorder %s18, 1
      %s270 = scalar_select %p269, %s18, 1
      %s271 = smul.addr %s270, 32
      %s272 = smul.addr %s271, 8
      %s273 = scalar_lea.vmem %s0, %s272
      %p274 = scmp.lt.s32.totalorder %s18, 1
      %s275 = scalar_select %p274, %s18, 1
      %s276 = smul.addr %s275, 32
      %s277 = smul.addr %s276, 8
      %s278 = scalar_lea.vmem %s7, %s277
      %v279 = vld [vmem:[%s273] sm:$0xff]
      %v280 = vld [vmem:[%s273 + $0x8] sm:$0xff]
      %v281 = vld [vmem:[%s273 + $0x10] sm:$0xff]
      %v282 = vld [vmem:[%s273 + $0x18] sm:$0xff]
      %v283 = vld [vmem:[%s273 + $0x20] sm:$0xff]
      %v284 = vld [vmem:[%s273 + $0x28] sm:$0xff]
      %v285 = vld [vmem:[%s273 + $0x30] sm:$0xff]
      %v286 = vld [vmem:[%s273 + $0x38] sm:$0xff]
      %v287 = vld [vmem:[%s273 + $0x40] sm:$0xff]
      %v288 = vld [vmem:[%s273 + $0x48] sm:$0xff]
      %v289 = vld [vmem:[%s273 + $0x50] sm:$0xff]
      %v290 = vld [vmem:[%s273 + $0x58] sm:$0xff]
      %v291 = vld [vmem:[%s273 + $0x60] sm:$0xff]
      %v292 = vld [vmem:[%s273 + $0x68] sm:$0xff]
      %v293 = vld [vmem:[%s273 + $0x70] sm:$0xff]
      %v294 = vld [vmem:[%s273 + $0x78] sm:$0xff]
      %v295 = vld [vmem:[%s273 + $0x80] sm:$0xff]
      %v296 = vld [vmem:[%s273 + $0x88] sm:$0xff]
      %v297 = vld [vmem:[%s273 + $0x90] sm:$0xff]
      %v298 = vld [vmem:[%s273 + $0x98] sm:$0xff]
      %v299 = vld [vmem:[%s273 + $0xa0] sm:$0xff]
      %v300 = vld [vmem:[%s273 + $0xa8] sm:$0xff]
      %v301 = vld [vmem:[%s273 + $0xb0] sm:$0xff]
      %v302 = vld [vmem:[%s273 + $0xb8] sm:$0xff]
      %v303 = vld [vmem:[%s273 + $0xc0] sm:$0xff]
      %v304 = vld [vmem:[%s273 + $0xc8] sm:$0xff]
      %v305 = vld [vmem:[%s273 + $0xd0] sm:$0xff]
      %v306 = vld [vmem:[%s273 + $0xd8] sm:$0xff]
      %v307 = vld [vmem:[%s273 + $0xe0] sm:$0xff]
      %v308 = vld [vmem:[%s273 + $0xe8] sm:$0xff]
      %v309 = vld [vmem:[%s273 + $0xf0] sm:$0xff]
      %v310 = vld [vmem:[%s273 + $0xf8] sm:$0xff]
      %v311 = vld [vmem:[%s1] sm:$0xf]
      %v312 = vld [vmem:[%s2] sm:$0x1]
      %v314 = vperm.slane %v312, 0
      %vm316 = vcmask 31744
      %v318 = vsel %vm316, %v279, 0
      %v321 = vsel %vm316, %v280, 0
      %v324 = vsel %vm316, %v281, 0
      %v327 = vsel %vm316, %v282, 0
      %v330 = vsel %vm316, %v283, 0
      %v333 = vsel %vm316, %v284, 0
      %v336 = vsel %vm316, %v285, 0
      %v339 = vsel %vm316, %v286, 0
      %v342 = vsel %vm316, %v287, 0
      %v345 = vsel %vm316, %v288, 0
      %v348 = vsel %vm316, %v289, 0
      %v351 = vsel %vm316, %v290, 0
      %v354 = vsel %vm316, %v291, 0
      %v357 = vsel %vm316, %v292, 0
      %v360 = vsel %vm316, %v293, 0
      %v363 = vsel %vm316, %v294, 0
      %v366 = vsel %vm316, %v295, 0
      %v369 = vsel %vm316, %v296, 0
      %v372 = vsel %vm316, %v297, 0
      %v375 = vsel %vm316, %v298, 0
      %v378 = vsel %vm316, %v299, 0
      %v381 = vsel %vm316, %v300, 0
      %v384 = vsel %vm316, %v301, 0
      %v387 = vsel %vm316, %v302, 0
      %v390 = vsel %vm316, %v303, 0
      %v393 = vsel %vm316, %v304, 0
      %v396 = vsel %vm316, %v305, 0
      %v399 = vsel %vm316, %v306, 0
      %v402 = vsel %vm316, %v307, 0
      %v405 = vsel %vm316, %v308, 0
      %v408 = vsel %vm316, %v309, 0
      %v411 = vsel %vm316, %v310, 0
      %vm413 = vcmask 1043456
      %v415 = vsel %vm413, %v311, 0
      %417 = vmatpush.msra.mxu0 0.0
      %418 = vmatpush.msra.mxu0 0.0
      %419 = vmatpush.msra.mxu0 0.0
      %420 = vmatpush.msra.mxu0 0.0
      %421 = vmatpush.msra.mxu0 0.0
      %422 = vmatpush.msra.mxu0 0.0
      %423 = vmatpush.msra.mxu0 0.0
      %424 = vmatpush.msra.mxu0 0.0
      %425 = vmatpush.msra.mxu0 0.0
      %426 = vmatpush.msra.mxu0 0.0
      %427 = vmatpush.msra.mxu0 0.0
      %428 = vmatpush.msra.mxu0 0.0
      %429 = vmatpush.msra.mxu0 0.0
      %430 = vmatpush.msra.mxu0 0.0
      %431 = vmatpush.msra.mxu0 0.0
      %432 = vmatpush.msra.mxu0 %v415
      %433 = vmatmul.f32.gmra.mxu0 %v318
      %v434 = vpop.f32.mrf.mxu0
      %v435 = vadd.f32 %v314, %v434
      %436 = vmatmul.f32.gmra.mxu0 %v321
      %v437 = vpop.f32.mrf.mxu0
      %v438 = vadd.f32 %v314, %v437
      %439 = vmatmul.f32.gmra.mxu0 %v324
      %v440 = vpop.f32.mrf.mxu0
      %v441 = vadd.f32 %v314, %v440
      %442 = vmatmul.f32.gmra.mxu0 %v327
      %v443 = vpop.f32.mrf.mxu0
      %v444 = vadd.f32 %v314, %v443
      %445 = vmatmul.f32.gmra.mxu0 %v330
      %v446 = vpop.f32.mrf.mxu0
      %v447 = vadd.f32 %v314, %v446
      %448 = vmatmul.f32.gmra.mxu0 %v333
      %v449 = vpop.f32.mrf.mxu0
      %v450 = vadd.f32 %v314, %v449
      %451 = vmatmul.f32.gmra.mxu0 %v336
      %v452 = vpop.f32.mrf.mxu0
      %v453 = vadd.f32 %v314, %v452
      %454 = vmatmul.f32.gmra.mxu0 %v339
      %v455 = vpop.f32.mrf.mxu0
      %v456 = vadd.f32 %v314, %v455
      %457 = vmatmul.f32.gmra.mxu0 %v342
      %v458 = vpop.f32.mrf.mxu0
      %v459 = vadd.f32 %v314, %v458
      %460 = vmatmul.f32.gmra.mxu0 %v345
      %v461 = vpop.f32.mrf.mxu0
      %v462 = vadd.f32 %v314, %v461
      %463 = vmatmul.f32.gmra.mxu0 %v348
      %v464 = vpop.f32.mrf.mxu0
      %v465 = vadd.f32 %v314, %v464
      %466 = vmatmul.f32.gmra.mxu0 %v351
      %v467 = vpop.f32.mrf.mxu0
      %v468 = vadd.f32 %v314, %v467
      %469 = vmatmul.f32.gmra.mxu0 %v354
      %v470 = vpop.f32.mrf.mxu0
      %v471 = vadd.f32 %v314, %v470
      %472 = vmatmul.f32.gmra.mxu0 %v357
      %v473 = vpop.f32.mrf.mxu0
      %v474 = vadd.f32 %v314, %v473
      %475 = vmatmul.f32.gmra.mxu0 %v360
      %v476 = vpop.f32.mrf.mxu0
      %v477 = vadd.f32 %v314, %v476
      %478 = vmatmul.f32.gmra.mxu0 %v363
      %v479 = vpop.f32.mrf.mxu0
      %v480 = vadd.f32 %v314, %v479
      %481 = vmatmul.f32.gmra.mxu0 %v366
      %v482 = vpop.f32.mrf.mxu0
      %v483 = vadd.f32 %v314, %v482
      %484 = vmatmul.f32.gmra.mxu0 %v369
      %v485 = vpop.f32.mrf.mxu0
      %v486 = vadd.f32 %v314, %v485
      %487 = vmatmul.f32.gmra.mxu0 %v372
      %v488 = vpop.f32.mrf.mxu0
      %v489 = vadd.f32 %v314, %v488
      %490 = vmatmul.f32.gmra.mxu0 %v375
      %v491 = vpop.f32.mrf.mxu0
      %v492 = vadd.f32 %v314, %v491
      %493 = vmatmul.f32.gmra.mxu0 %v378
      %v494 = vpop.f32.mrf.mxu0
      %v495 = vadd.f32 %v314, %v494
      %496 = vmatmul.f32.gmra.mxu0 %v381
      %v497 = vpop.f32.mrf.mxu0
      %v498 = vadd.f32 %v314, %v497
      %499 = vmatmul.f32.gmra.mxu0 %v384
      %v500 = vpop.f32.mrf.mxu0
      %v501 = vadd.f32 %v314, %v500
      %502 = vmatmul.f32.gmra.mxu0 %v387
      %v503 = vpop.f32.mrf.mxu0
      %v504 = vadd.f32 %v314, %v503
      %505 = vmatmul.f32.gmra.mxu0 %v390
      %v506 = vpop.f32.mrf.mxu0
      %v507 = vadd.f32 %v314, %v506
      %508 = vmatmul.f32.gmra.mxu0 %v393
      %v509 = vpop.f32.mrf.mxu0
      %v510 = vadd.f32 %v314, %v509
      %511 = vmatmul.f32.gmra.mxu0 %v396
      %v512 = vpop.f32.mrf.mxu0
      %v513 = vadd.f32 %v314, %v512
      %514 = vmatmul.f32.gmra.mxu0 %v399
      %v515 = vpop.f32.mrf.mxu0
      %v516 = vadd.f32 %v314, %v515
      %517 = vmatmul.f32.gmra.mxu0 %v402
      %v518 = vpop.f32.mrf.mxu0
      %v519 = vadd.f32 %v314, %v518
      %520 = vmatmul.f32.gmra.mxu0 %v405
      %v521 = vpop.f32.mrf.mxu0
      %v522 = vadd.f32 %v314, %v521
      %523 = vmatmul.f32.gmra.mxu0 %v408
      %v524 = vpop.f32.mrf.mxu0
      %v525 = vadd.f32 %v314, %v524
      %526 = vmatmul.f32.gmra.mxu0 %v411
      %v527 = vpop.f32.mrf.mxu0
      %v528 = vadd.f32 %v314, %v527
      %529 = vdwg.mxu0
      %v530 = vmul.f32 %v435, 1.702
      %v531 = vmul.f32 %v438, 1.702
      %v532 = vmul.f32 %v441, 1.702
      %v533 = vmul.f32 %v444, 1.702
      %v534 = vmul.f32 %v447, 1.702
      %v535 = vmul.f32 %v450, 1.702
      %v536 = vmul.f32 %v453, 1.702
      %v537 = vmul.f32 %v456, 1.702
      %v538 = vmul.f32 %v459, 1.702
      %v539 = vmul.f32 %v462, 1.702
      %v540 = vmul.f32 %v465, 1.702
      %v541 = vmul.f32 %v468, 1.702
      %v542 = vmul.f32 %v471, 1.702
      %v543 = vmul.f32 %v474, 1.702
      %v544 = vmul.f32 %v477, 1.702
      %v545 = vmul.f32 %v480, 1.702
      %v546 = vmul.f32 %v483, 1.702
      %v547 = vmul.f32 %v486, 1.702
      %v548 = vmul.f32 %v489, 1.702
      %v549 = vmul.f32 %v492, 1.702
      %v550 = vmul.f32 %v495, 1.702
      %v551 = vmul.f32 %v498, 1.702
      %v552 = vmul.f32 %v501, 1.702
      %v553 = vmul.f32 %v504, 1.702
      %v554 = vmul.f32 %v507, 1.702
      %v555 = vmul.f32 %v510, 1.702
      %v556 = vmul.f32 %v513, 1.702
      %v557 = vmul.f32 %v516, 1.702
      %v558 = vmul.f32 %v519, 1.702
      %v559 = vmul.f32 %v522, 1.702
      %v560 = vmul.f32 %v525, 1.702
      %v561 = vmul.f32 %v528, 1.702
      %v562 = vxor.u32 %v530, 2147483648
      %v563 = vxor.u32 %v531, 2147483648
      %v564 = vxor.u32 %v532, 2147483648
      %v565 = vxor.u32 %v533, 2147483648
      %v566 = vxor.u32 %v534, 2147483648
      %v567 = vxor.u32 %v535, 2147483648
      %v568 = vxor.u32 %v536, 2147483648
      %v569 = vxor.u32 %v537, 2147483648
      %v570 = vxor.u32 %v538, 2147483648
      %v571 = vxor.u32 %v539, 2147483648
      %v572 = vxor.u32 %v540, 2147483648
      %v573 = vxor.u32 %v541, 2147483648
      %v574 = vxor.u32 %v542, 2147483648
      %v575 = vxor.u32 %v543, 2147483648
      %v576 = vxor.u32 %v544, 2147483648
      %v577 = vxor.u32 %v545, 2147483648
      %v578 = vxor.u32 %v546, 2147483648
      %v579 = vxor.u32 %v547, 2147483648
      %v580 = vxor.u32 %v548, 2147483648
      %v581 = vxor.u32 %v549, 2147483648
      %v582 = vxor.u32 %v550, 2147483648
      %v583 = vxor.u32 %v551, 2147483648
      %v584 = vxor.u32 %v552, 2147483648
      %v585 = vxor.u32 %v553, 2147483648
      %v586 = vxor.u32 %v554, 2147483648
      %v587 = vxor.u32 %v555, 2147483648
      %v588 = vxor.u32 %v556, 2147483648
      %v589 = vxor.u32 %v557, 2147483648
      %v590 = vxor.u32 %v558, 2147483648
      %v591 = vxor.u32 %v559, 2147483648
      %v592 = vxor.u32 %v560, 2147483648
      %v593 = vxor.u32 %v561, 2147483648
      %v594 = vmul.f32 %v562, 1.442695
      %v595 = vpow.pop %v594
      %v596 = vmul.f32 %v563, 1.442695
      %v597 = vpow.pop %v596
      %v598 = vmul.f32 %v564, 1.442695
      %v599 = vpow.pop %v598
      %v600 = vmul.f32 %v565, 1.442695
      %v601 = vpow.pop %v600
      %v602 = vmul.f32 %v566, 1.442695
      %v603 = vpow.pop %v602
      %v604 = vmul.f32 %v567, 1.442695
      %v605 = vpow.pop %v604
      %v606 = vmul.f32 %v568, 1.442695
      %v607 = vpow.pop %v606
      %v608 = vmul.f32 %v569, 1.442695
      %v609 = vpow.pop %v608
      %v610 = vmul.f32 %v570, 1.442695
      %v611 = vpow.pop %v610
      %v612 = vmul.f32 %v571, 1.442695
      %v613 = vpow.pop %v612
      %v614 = vmul.f32 %v572, 1.442695
      %v615 = vpow.pop %v614
      %v616 = vmul.f32 %v573, 1.442695
      %v617 = vpow.pop %v616
      %v618 = vmul.f32 %v574, 1.442695
      %v619 = vpow.pop %v618
      %v620 = vmul.f32 %v575, 1.442695
      %v621 = vpow.pop %v620
      %v622 = vmul.f32 %v576, 1.442695
      %v623 = vpow.pop %v622
      %v624 = vmul.f32 %v577, 1.442695
      %v625 = vpow.pop %v624
      %v626 = vmul.f32 %v578, 1.442695
      %v627 = vpow.pop %v626
      %v628 = vmul.f32 %v579, 1.442695
      %v629 = vpow.pop %v628
      %v630 = vmul.f32 %v580, 1.442695
      %v631 = vpow.pop %v630
      %v632 = vmul.f32 %v581, 1.442695
      %v633 = vpow.pop %v632
      %v634 = vmul.f32 %v582, 1.442695
      %v635 = vpow.pop %v634
      %v636 = vmul.f32 %v583, 1.442695
      %v637 = vpow.pop %v636
      %v638 = vmul.f32 %v584, 1.442695
      %v639 = vpow.pop %v638
      %v640 = vmul.f32 %v585, 1.442695
      %v641 = vpow.pop %v640
      %v642 = vmul.f32 %v586, 1.442695
      %v643 = vpow.pop %v642
      %v644 = vmul.f32 %v587, 1.442695
      %v645 = vpow.pop %v644
      %v646 = vmul.f32 %v588, 1.442695
      %v647 = vpow.pop %v646
      %v648 = vmul.f32 %v589, 1.442695
      %v649 = vpow.pop %v648
      %v650 = vmul.f32 %v590, 1.442695
      %v651 = vpow.pop %v650
      %v652 = vmul.f32 %v591, 1.442695
      %v653 = vpow.pop %v652
      %v654 = vmul.f32 %v592, 1.442695
      %v655 = vpow.pop %v654
      %v656 = vmul.f32 %v593, 1.442695
      %v657 = vpow.pop %v656
      %v658 = vadd.f32 %v595, 1.0
      %v659 = vadd.f32 %v597, 1.0
      %v660 = vadd.f32 %v599, 1.0
      %v661 = vadd.f32 %v601, 1.0
      %v662 = vadd.f32 %v603, 1.0
      %v663 = vadd.f32 %v605, 1.0
      %v664 = vadd.f32 %v607, 1.0
      %v665 = vadd.f32 %v609, 1.0
      %v666 = vadd.f32 %v611, 1.0
      %v667 = vadd.f32 %v613, 1.0
      %v668 = vadd.f32 %v615, 1.0
      %v669 = vadd.f32 %v617, 1.0
      %v670 = vadd.f32 %v619, 1.0
      %v671 = vadd.f32 %v621, 1.0
      %v672 = vadd.f32 %v623, 1.0
      %v673 = vadd.f32 %v625, 1.0
      %v674 = vadd.f32 %v627, 1.0
      %v675 = vadd.f32 %v629, 1.0
      %v676 = vadd.f32 %v631, 1.0
      %v677 = vadd.f32 %v633, 1.0
      %v678 = vadd.f32 %v635, 1.0
      %v679 = vadd.f32 %v637, 1.0
      %v680 = vadd.f32 %v639, 1.0
      %v681 = vadd.f32 %v641, 1.0
      %v682 = vadd.f32 %v643, 1.0
      %v683 = vadd.f32 %v645, 1.0
      %v684 = vadd.f32 %v647, 1.0
      %v685 = vadd.f32 %v649, 1.0
      %v686 = vadd.f32 %v651, 1.0
      %v687 = vadd.f32 %v653, 1.0
      %v688 = vadd.f32 %v655, 1.0
      %v689 = vadd.f32 %v657, 1.0
      %v690 = vrcp.pop %v658
      %v691 = vmul.f32 %v658, %v690
      %v692 = vsub.f32 1.0, %v691
      %v693 = vmul.f32 %v690, %v692
      %v694 = vadd.f32 %v690, %v693
      %vm695 = vweird.f32 %v658
      %vm696 = vweird.f32 %v690
      %vm697 = vmor %vm695, %vm696
      %v698 = vsel %vm697, %v690, %v694
      %v699 = vand.u32 2147483647, %v658
      %vm700 = vcmp.eq.f32.partialorder %v699, 8.507059e+37
      %v701 = vand.u32 %v658, 2147483648
      %v702 = vor.u32 1.1754944e-38, %v701
      %v703 = vsel %vm700, %v702, %v698
      %v704 = vmul.f32 1.0, %v703
      %v705 = vrcp.pop %v659
      %v706 = vmul.f32 %v659, %v705
      %v707 = vsub.f32 1.0, %v706
      %v708 = vmul.f32 %v705, %v707
      %v709 = vadd.f32 %v705, %v708
      %vm710 = vweird.f32 %v659
      %vm711 = vweird.f32 %v705
      %vm712 = vmor %vm710, %vm711
      %v713 = vsel %vm712, %v705, %v709
      %v714 = vand.u32 2147483647, %v659
      %vm715 = vcmp.eq.f32.partialorder %v714, 8.507059e+37
      %v716 = vand.u32 %v659, 2147483648
      %v717 = vor.u32 1.1754944e-38, %v716
      %v718 = vsel %vm715, %v717, %v713
      %v719 = vmul.f32 1.0, %v718
      %v720 = vrcp.pop %v660
      %v721 = vmul.f32 %v660, %v720
      %v722 = vsub.f32 1.0, %v721
      %v723 = vmul.f32 %v720, %v722
      %v724 = vadd.f32 %v720, %v723
      %vm725 = vweird.f32 %v660
      %vm726 = vweird.f32 %v720
      %vm727 = vmor %vm725, %vm726
      %v728 = vsel %vm727, %v720, %v724
      %v729 = vand.u32 2147483647, %v660
      %vm730 = vcmp.eq.f32.partialorder %v729, 8.507059e+37
      %v731 = vand.u32 %v660, 2147483648
      %v732 = vor.u32 1.1754944e-38, %v731
      %v733 = vsel %vm730, %v732, %v728
      %v734 = vmul.f32 1.0, %v733
      %v735 = vrcp.pop %v661
      %v736 = vmul.f32 %v661, %v735
      %v737 = vsub.f32 1.0, %v736
      %v738 = vmul.f32 %v735, %v737
      %v739 = vadd.f32 %v735, %v738
      %vm740 = vweird.f32 %v661
      %vm741 = vweird.f32 %v735
      %vm742 = vmor %vm740, %vm741
      %v743 = vsel %vm742, %v735, %v739
      %v744 = vand.u32 2147483647, %v661
      %vm745 = vcmp.eq.f32.partialorder %v744, 8.507059e+37
      %v746 = vand.u32 %v661, 2147483648
      %v747 = vor.u32 1.1754944e-38, %v746
      %v748 = vsel %vm745, %v747, %v743
      %v749 = vmul.f32 1.0, %v748
      %v750 = vrcp.pop %v662
      %v751 = vmul.f32 %v662, %v750
      %v752 = vsub.f32 1.0, %v751
      %v753 = vmul.f32 %v750, %v752
      %v754 = vadd.f32 %v750, %v753
      %vm755 = vweird.f32 %v662
      %vm756 = vweird.f32 %v750
      %vm757 = vmor %vm755, %vm756
      %v758 = vsel %vm757, %v750, %v754
      %v759 = vand.u32 2147483647, %v662
      %vm760 = vcmp.eq.f32.partialorder %v759, 8.507059e+37
      %v761 = vand.u32 %v662, 2147483648
      %v762 = vor.u32 1.1754944e-38, %v761
      %v763 = vsel %vm760, %v762, %v758
      %v764 = vmul.f32 1.0, %v763
      %v765 = vrcp.pop %v663
      %v766 = vmul.f32 %v663, %v765
      %v767 = vsub.f32 1.0, %v766
      %v768 = vmul.f32 %v765, %v767
      %v769 = vadd.f32 %v765, %v768
      %vm770 = vweird.f32 %v663
      %vm771 = vweird.f32 %v765
      %vm772 = vmor %vm770, %vm771
      %v773 = vsel %vm772, %v765, %v769
      %v774 = vand.u32 2147483647, %v663
      %vm775 = vcmp.eq.f32.partialorder %v774, 8.507059e+37
      %v776 = vand.u32 %v663, 2147483648
      %v777 = vor.u32 1.1754944e-38, %v776
      %v778 = vsel %vm775, %v777, %v773
      %v779 = vmul.f32 1.0, %v778
      %v780 = vrcp.pop %v664
      %v781 = vmul.f32 %v664, %v780
      %v782 = vsub.f32 1.0, %v781
      %v783 = vmul.f32 %v780, %v782
      %v784 = vadd.f32 %v780, %v783
      %vm785 = vweird.f32 %v664
      %vm786 = vweird.f32 %v780
      %vm787 = vmor %vm785, %vm786
      %v788 = vsel %vm787, %v780, %v784
      %v789 = vand.u32 2147483647, %v664
      %vm790 = vcmp.eq.f32.partialorder %v789, 8.507059e+37
      %v791 = vand.u32 %v664, 2147483648
      %v792 = vor.u32 1.1754944e-38, %v791
      %v793 = vsel %vm790, %v792, %v788
      %v794 = vmul.f32 1.0, %v793
      %v795 = vrcp.pop %v665
      %v796 = vmul.f32 %v665, %v795
      %v797 = vsub.f32 1.0, %v796
      %v798 = vmul.f32 %v795, %v797
      %v799 = vadd.f32 %v795, %v798
      %vm800 = vweird.f32 %v665
      %vm801 = vweird.f32 %v795
      %vm802 = vmor %vm800, %vm801
      %v803 = vsel %vm802, %v795, %v799
      %v804 = vand.u32 2147483647, %v665
      %vm805 = vcmp.eq.f32.partialorder %v804, 8.507059e+37
      %v806 = vand.u32 %v665, 2147483648
      %v807 = vor.u32 1.1754944e-38, %v806
      %v808 = vsel %vm805, %v807, %v803
      %v809 = vmul.f32 1.0, %v808
      %v810 = vrcp.pop %v666
      %v811 = vmul.f32 %v666, %v810
      %v812 = vsub.f32 1.0, %v811
      %v813 = vmul.f32 %v810, %v812
      %v814 = vadd.f32 %v810, %v813
      %vm815 = vweird.f32 %v666
      %vm816 = vweird.f32 %v810
      %vm817 = vmor %vm815, %vm816
      %v818 = vsel %vm817, %v810, %v814
      %v819 = vand.u32 2147483647, %v666
      %vm820 = vcmp.eq.f32.partialorder %v819, 8.507059e+37
      %v821 = vand.u32 %v666, 2147483648
      %v822 = vor.u32 1.1754944e-38, %v821
      %v823 = vsel %vm820, %v822, %v818
      %v824 = vmul.f32 1.0, %v823
      %v825 = vrcp.pop %v667
      %v826 = vmul.f32 %v667, %v825
      %v827 = vsub.f32 1.0, %v826
      %v828 = vmul.f32 %v825, %v827
      %v829 = vadd.f32 %v825, %v828
      %vm830 = vweird.f32 %v667
      %vm831 = vweird.f32 %v825
      %vm832 = vmor %vm830, %vm831
      %v833 = vsel %vm832, %v825, %v829
      %v834 = vand.u32 2147483647, %v667
      %vm835 = vcmp.eq.f32.partialorder %v834, 8.507059e+37
      %v836 = vand.u32 %v667, 2147483648
      %v837 = vor.u32 1.1754944e-38, %v836
      %v838 = vsel %vm835, %v837, %v833
      %v839 = vmul.f32 1.0, %v838
      %v840 = vrcp.pop %v668
      %v841 = vmul.f32 %v668, %v840
      %v842 = vsub.f32 1.0, %v841
      %v843 = vmul.f32 %v840, %v842
      %v844 = vadd.f32 %v840, %v843
      %vm845 = vweird.f32 %v668
      %vm846 = vweird.f32 %v840
      %vm847 = vmor %vm845, %vm846
      %v848 = vsel %vm847, %v840, %v844
      %v849 = vand.u32 2147483647, %v668
      %vm850 = vcmp.eq.f32.partialorder %v849, 8.507059e+37
      %v851 = vand.u32 %v668, 2147483648
      %v852 = vor.u32 1.1754944e-38, %v851
      %v853 = vsel %vm850, %v852, %v848
      %v854 = vmul.f32 1.0, %v853
      %v855 = vrcp.pop %v669
      %v856 = vmul.f32 %v669, %v855
      %v857 = vsub.f32 1.0, %v856
      %v858 = vmul.f32 %v855, %v857
      %v859 = vadd.f32 %v855, %v858
      %vm860 = vweird.f32 %v669
      %vm861 = vweird.f32 %v855
      %vm862 = vmor %vm860, %vm861
      %v863 = vsel %vm862, %v855, %v859
      %v864 = vand.u32 2147483647, %v669
      %vm865 = vcmp.eq.f32.partialorder %v864, 8.507059e+37
      %v866 = vand.u32 %v669, 2147483648
      %v867 = vor.u32 1.1754944e-38, %v866
      %v868 = vsel %vm865, %v867, %v863
      %v869 = vmul.f32 1.0, %v868
      %v870 = vrcp.pop %v670
      %v871 = vmul.f32 %v670, %v870
      %v872 = vsub.f32 1.0, %v871
      %v873 = vmul.f32 %v870, %v872
      %v874 = vadd.f32 %v870, %v873
      %vm875 = vweird.f32 %v670
      %vm876 = vweird.f32 %v870
      %vm877 = vmor %vm875, %vm876
      %v878 = vsel %vm877, %v870, %v874
      %v879 = vand.u32 2147483647, %v670
      %vm880 = vcmp.eq.f32.partialorder %v879, 8.507059e+37
      %v881 = vand.u32 %v670, 2147483648
      %v882 = vor.u32 1.1754944e-38, %v881
      %v883 = vsel %vm880, %v882, %v878
      %v884 = vmul.f32 1.0, %v883
      %v885 = vrcp.pop %v671
      %v886 = vmul.f32 %v671, %v885
      %v887 = vsub.f32 1.0, %v886
      %v888 = vmul.f32 %v885, %v887
      %v889 = vadd.f32 %v885, %v888
      %vm890 = vweird.f32 %v671
      %vm891 = vweird.f32 %v885
      %vm892 = vmor %vm890, %vm891
      %v893 = vsel %vm892, %v885, %v889
      %v894 = vand.u32 2147483647, %v671
      %vm895 = vcmp.eq.f32.partialorder %v894, 8.507059e+37
      %v896 = vand.u32 %v671, 2147483648
      %v897 = vor.u32 1.1754944e-38, %v896
      %v898 = vsel %vm895, %v897, %v893
      %v899 = vmul.f32 1.0, %v898
      %v900 = vrcp.pop %v672
      %v901 = vmul.f32 %v672, %v900
      %v902 = vsub.f32 1.0, %v901
      %v903 = vmul.f32 %v900, %v902
      %v904 = vadd.f32 %v900, %v903
      %vm905 = vweird.f32 %v672
      %vm906 = vweird.f32 %v900
      %vm907 = vmor %vm905, %vm906
      %v908 = vsel %vm907, %v900, %v904
      %v909 = vand.u32 2147483647, %v672
      %vm910 = vcmp.eq.f32.partialorder %v909, 8.507059e+37
      %v911 = vand.u32 %v672, 2147483648
      %v912 = vor.u32 1.1754944e-38, %v911
      %v913 = vsel %vm910, %v912, %v908
      %v914 = vmul.f32 1.0, %v913
      %v915 = vrcp.pop %v673
      %v916 = vmul.f32 %v673, %v915
      %v917 = vsub.f32 1.0, %v916
      %v918 = vmul.f32 %v915, %v917
      %v919 = vadd.f32 %v915, %v918
      %vm920 = vweird.f32 %v673
      %vm921 = vweird.f32 %v915
      %vm922 = vmor %vm920, %vm921
      %v923 = vsel %vm922, %v915, %v919
      %v924 = vand.u32 2147483647, %v673
      %vm925 = vcmp.eq.f32.partialorder %v924, 8.507059e+37
      %v926 = vand.u32 %v673, 2147483648
      %v927 = vor.u32 1.1754944e-38, %v926
      %v928 = vsel %vm925, %v927, %v923
      %v929 = vmul.f32 1.0, %v928
      %v930 = vrcp.pop %v674
      %v931 = vmul.f32 %v674, %v930
      %v932 = vsub.f32 1.0, %v931
      %v933 = vmul.f32 %v930, %v932
      %v934 = vadd.f32 %v930, %v933
      %vm935 = vweird.f32 %v674
      %vm936 = vweird.f32 %v930
      %vm937 = vmor %vm935, %vm936
      %v938 = vsel %vm937, %v930, %v934
      %v939 = vand.u32 2147483647, %v674
      %vm940 = vcmp.eq.f32.partialorder %v939, 8.507059e+37
      %v941 = vand.u32 %v674, 2147483648
      %v942 = vor.u32 1.1754944e-38, %v941
      %v943 = vsel %vm940, %v942, %v938
      %v944 = vmul.f32 1.0, %v943
      %v945 = vrcp.pop %v675
      %v946 = vmul.f32 %v675, %v945
      %v947 = vsub.f32 1.0, %v946
      %v948 = vmul.f32 %v945, %v947
      %v949 = vadd.f32 %v945, %v948
      %vm950 = vweird.f32 %v675
      %vm951 = vweird.f32 %v945
      %vm952 = vmor %vm950, %vm951
      %v953 = vsel %vm952, %v945, %v949
      %v954 = vand.u32 2147483647, %v675
      %vm955 = vcmp.eq.f32.partialorder %v954, 8.507059e+37
      %v956 = vand.u32 %v675, 2147483648
      %v957 = vor.u32 1.1754944e-38, %v956
      %v958 = vsel %vm955, %v957, %v953
      %v959 = vmul.f32 1.0, %v958
      %v960 = vrcp.pop %v676
      %v961 = vmul.f32 %v676, %v960
      %v962 = vsub.f32 1.0, %v961
      %v963 = vmul.f32 %v960, %v962
      %v964 = vadd.f32 %v960, %v963
      %vm965 = vweird.f32 %v676
      %vm966 = vweird.f32 %v960
      %vm967 = vmor %vm965, %vm966
      %v968 = vsel %vm967, %v960, %v964
      %v969 = vand.u32 2147483647, %v676
      %vm970 = vcmp.eq.f32.partialorder %v969, 8.507059e+37
      %v971 = vand.u32 %v676, 2147483648
      %v972 = vor.u32 1.1754944e-38, %v971
      %v973 = vsel %vm970, %v972, %v968
      %v974 = vmul.f32 1.0, %v973
      %v975 = vrcp.pop %v677
      %v976 = vmul.f32 %v677, %v975
      %v977 = vsub.f32 1.0, %v976
      %v978 = vmul.f32 %v975, %v977
      %v979 = vadd.f32 %v975, %v978
      %vm980 = vweird.f32 %v677
      %vm981 = vweird.f32 %v975
      %vm982 = vmor %vm980, %vm981
      %v983 = vsel %vm982, %v975, %v979
      %v984 = vand.u32 2147483647, %v677
      %vm985 = vcmp.eq.f32.partialorder %v984, 8.507059e+37
      %v986 = vand.u32 %v677, 2147483648
      %v987 = vor.u32 1.1754944e-38, %v986
      %v988 = vsel %vm985, %v987, %v983
      %v989 = vmul.f32 1.0, %v988
      %v990 = vrcp.pop %v678
      %v991 = vmul.f32 %v678, %v990
      %v992 = vsub.f32 1.0, %v991
      %v993 = vmul.f32 %v990, %v992
      %v994 = vadd.f32 %v990, %v993
      %vm995 = vweird.f32 %v678
      %vm996 = vweird.f32 %v990
      %vm997 = vmor %vm995, %vm996
      %v998 = vsel %vm997, %v990, %v994
      %v999 = vand.u32 2147483647, %v678
      %vm1000 = vcmp.eq.f32.partialorder %v999, 8.507059e+37
      %v1001 = vand.u32 %v678, 2147483648
      %v1002 = vor.u32 1.1754944e-38, %v1001
      %v1003 = vsel %vm1000, %v1002, %v998
      %v1004 = vmul.f32 1.0, %v1003
      %v1005 = vrcp.pop %v679
      %v1006 = vmul.f32 %v679, %v1005
      %v1007 = vsub.f32 1.0, %v1006
      %v1008 = vmul.f32 %v1005, %v1007
      %v1009 = vadd.f32 %v1005, %v1008
      %vm1010 = vweird.f32 %v679
      %vm1011 = vweird.f32 %v1005
      %vm1012 = vmor %vm1010, %vm1011
      %v1013 = vsel %vm1012, %v1005, %v1009
      %v1014 = vand.u32 2147483647, %v679
      %vm1015 = vcmp.eq.f32.partialorder %v1014, 8.507059e+37
      %v1016 = vand.u32 %v679, 2147483648
      %v1017 = vor.u32 1.1754944e-38, %v1016
      %v1018 = vsel %vm1015, %v1017, %v1013
      %v1019 = vmul.f32 1.0, %v1018
      %v1020 = vrcp.pop %v680
      %v1021 = vmul.f32 %v680, %v1020
      %v1022 = vsub.f32 1.0, %v1021
      %v1023 = vmul.f32 %v1020, %v1022
      %v1024 = vadd.f32 %v1020, %v1023
      %vm1025 = vweird.f32 %v680
      %vm1026 = vweird.f32 %v1020
      %vm1027 = vmor %vm1025, %vm1026
      %v1028 = vsel %vm1027, %v1020, %v1024
      %v1029 = vand.u32 2147483647, %v680
      %vm1030 = vcmp.eq.f32.partialorder %v1029, 8.507059e+37
      %v1031 = vand.u32 %v680, 2147483648
      %v1032 = vor.u32 1.1754944e-38, %v1031
      %v1033 = vsel %vm1030, %v1032, %v1028
      %v1034 = vmul.f32 1.0, %v1033
      %v1035 = vrcp.pop %v681
      %v1036 = vmul.f32 %v681, %v1035
      %v1037 = vsub.f32 1.0, %v1036
      %v1038 = vmul.f32 %v1035, %v1037
      %v1039 = vadd.f32 %v1035, %v1038
      %vm1040 = vweird.f32 %v681
      %vm1041 = vweird.f32 %v1035
      %vm1042 = vmor %vm1040, %vm1041
      %v1043 = vsel %vm1042, %v1035, %v1039
      %v1044 = vand.u32 2147483647, %v681
      %vm1045 = vcmp.eq.f32.partialorder %v1044, 8.507059e+37
      %v1046 = vand.u32 %v681, 2147483648
      %v1047 = vor.u32 1.1754944e-38, %v1046
      %v1048 = vsel %vm1045, %v1047, %v1043
      %v1049 = vmul.f32 1.0, %v1048
      %v1050 = vrcp.pop %v682
      %v1051 = vmul.f32 %v682, %v1050
      %v1052 = vsub.f32 1.0, %v1051
      %v1053 = vmul.f32 %v1050, %v1052
      %v1054 = vadd.f32 %v1050, %v1053
      %vm1055 = vweird.f32 %v682
      %vm1056 = vweird.f32 %v1050
      %vm1057 = vmor %vm1055, %vm1056
      %v1058 = vsel %vm1057, %v1050, %v1054
      %v1059 = vand.u32 2147483647, %v682
      %vm1060 = vcmp.eq.f32.partialorder %v1059, 8.507059e+37
      %v1061 = vand.u32 %v682, 2147483648
      %v1062 = vor.u32 1.1754944e-38, %v1061
      %v1063 = vsel %vm1060, %v1062, %v1058
      %v1064 = vmul.f32 1.0, %v1063
      %v1065 = vrcp.pop %v683
      %v1066 = vmul.f32 %v683, %v1065
      %v1067 = vsub.f32 1.0, %v1066
      %v1068 = vmul.f32 %v1065, %v1067
      %v1069 = vadd.f32 %v1065, %v1068
      %vm1070 = vweird.f32 %v683
      %vm1071 = vweird.f32 %v1065
      %vm1072 = vmor %vm1070, %vm1071
      %v1073 = vsel %vm1072, %v1065, %v1069
      %v1074 = vand.u32 2147483647, %v683
      %vm1075 = vcmp.eq.f32.partialorder %v1074, 8.507059e+37
      %v1076 = vand.u32 %v683, 2147483648
      %v1077 = vor.u32 1.1754944e-38, %v1076
      %v1078 = vsel %vm1075, %v1077, %v1073
      %v1079 = vmul.f32 1.0, %v1078
      %v1080 = vrcp.pop %v684
      %v1081 = vmul.f32 %v684, %v1080
      %v1082 = vsub.f32 1.0, %v1081
      %v1083 = vmul.f32 %v1080, %v1082
      %v1084 = vadd.f32 %v1080, %v1083
      %vm1085 = vweird.f32 %v684
      %vm1086 = vweird.f32 %v1080
      %vm1087 = vmor %vm1085, %vm1086
      %v1088 = vsel %vm1087, %v1080, %v1084
      %v1089 = vand.u32 2147483647, %v684
      %vm1090 = vcmp.eq.f32.partialorder %v1089, 8.507059e+37
      %v1091 = vand.u32 %v684, 2147483648
      %v1092 = vor.u32 1.1754944e-38, %v1091
      %v1093 = vsel %vm1090, %v1092, %v1088
      %v1094 = vmul.f32 1.0, %v1093
      %v1095 = vrcp.pop %v685
      %v1096 = vmul.f32 %v685, %v1095
      %v1097 = vsub.f32 1.0, %v1096
      %v1098 = vmul.f32 %v1095, %v1097
      %v1099 = vadd.f32 %v1095, %v1098
      %vm1100 = vweird.f32 %v685
      %vm1101 = vweird.f32 %v1095
      %vm1102 = vmor %vm1100, %vm1101
      %v1103 = vsel %vm1102, %v1095, %v1099
      %v1104 = vand.u32 2147483647, %v685
      %vm1105 = vcmp.eq.f32.partialorder %v1104, 8.507059e+37
      %v1106 = vand.u32 %v685, 2147483648
      %v1107 = vor.u32 1.1754944e-38, %v1106
      %v1108 = vsel %vm1105, %v1107, %v1103
      %v1109 = vmul.f32 1.0, %v1108
      %v1110 = vrcp.pop %v686
      %v1111 = vmul.f32 %v686, %v1110
      %v1112 = vsub.f32 1.0, %v1111
      %v1113 = vmul.f32 %v1110, %v1112
      %v1114 = vadd.f32 %v1110, %v1113
      %vm1115 = vweird.f32 %v686
      %vm1116 = vweird.f32 %v1110
      %vm1117 = vmor %vm1115, %vm1116
      %v1118 = vsel %vm1117, %v1110, %v1114
      %v1119 = vand.u32 2147483647, %v686
      %vm1120 = vcmp.eq.f32.partialorder %v1119, 8.507059e+37
      %v1121 = vand.u32 %v686, 2147483648
      %v1122 = vor.u32 1.1754944e-38, %v1121
      %v1123 = vsel %vm1120, %v1122, %v1118
      %v1124 = vmul.f32 1.0, %v1123
      %v1125 = vrcp.pop %v687
      %v1126 = vmul.f32 %v687, %v1125
      %v1127 = vsub.f32 1.0, %v1126
      %v1128 = vmul.f32 %v1125, %v1127
      %v1129 = vadd.f32 %v1125, %v1128
      %vm1130 = vweird.f32 %v687
      %vm1131 = vweird.f32 %v1125
      %vm1132 = vmor %vm1130, %vm1131
      %v1133 = vsel %vm1132, %v1125, %v1129
      %v1134 = vand.u32 2147483647, %v687
      %vm1135 = vcmp.eq.f32.partialorder %v1134, 8.507059e+37
      %v1136 = vand.u32 %v687, 2147483648
      %v1137 = vor.u32 1.1754944e-38, %v1136
      %v1138 = vsel %vm1135, %v1137, %v1133
      %v1139 = vmul.f32 1.0, %v1138
      %v1140 = vrcp.pop %v688
      %v1141 = vmul.f32 %v688, %v1140
      %v1142 = vsub.f32 1.0, %v1141
      %v1143 = vmul.f32 %v1140, %v1142
      %v1144 = vadd.f32 %v1140, %v1143
      %vm1145 = vweird.f32 %v688
      %vm1146 = vweird.f32 %v1140
      %vm1147 = vmor %vm1145, %vm1146
      %v1148 = vsel %vm1147, %v1140, %v1144
      %v1149 = vand.u32 2147483647, %v688
      %vm1150 = vcmp.eq.f32.partialorder %v1149, 8.507059e+37
      %v1151 = vand.u32 %v688, 2147483648
      %v1152 = vor.u32 1.1754944e-38, %v1151
      %v1153 = vsel %vm1150, %v1152, %v1148
      %v1154 = vmul.f32 1.0, %v1153
      %v1155 = vrcp.pop %v689
      %v1156 = vmul.f32 %v689, %v1155
      %v1157 = vsub.f32 1.0, %v1156
      %v1158 = vmul.f32 %v1155, %v1157
      %v1159 = vadd.f32 %v1155, %v1158
      %vm1160 = vweird.f32 %v689
      %vm1161 = vweird.f32 %v1155
      %vm1162 = vmor %vm1160, %vm1161
      %v1163 = vsel %vm1162, %v1155, %v1159
      %v1164 = vand.u32 2147483647, %v689
      %vm1165 = vcmp.eq.f32.partialorder %v1164, 8.507059e+37
      %v1166 = vand.u32 %v689, 2147483648
      %v1167 = vor.u32 1.1754944e-38, %v1166
      %v1168 = vsel %vm1165, %v1167, %v1163
      %v1169 = vmul.f32 1.0, %v1168
      %v1170 = vmul.f32 %v435, %v704
      %v1171 = vmul.f32 %v438, %v719
      %v1172 = vmul.f32 %v441, %v734
      %v1173 = vmul.f32 %v444, %v749
      %v1174 = vmul.f32 %v447, %v764
      %v1175 = vmul.f32 %v450, %v779
      %v1176 = vmul.f32 %v453, %v794
      %v1177 = vmul.f32 %v456, %v809
      %v1178 = vmul.f32 %v459, %v824
      %v1179 = vmul.f32 %v462, %v839
      %v1180 = vmul.f32 %v465, %v854
      %v1181 = vmul.f32 %v468, %v869
      %v1182 = vmul.f32 %v471, %v884
      %v1183 = vmul.f32 %v474, %v899
      %v1184 = vmul.f32 %v477, %v914
      %v1185 = vmul.f32 %v480, %v929
      %v1186 = vmul.f32 %v483, %v944
      %v1187 = vmul.f32 %v486, %v959
      %v1188 = vmul.f32 %v489, %v974
      %v1189 = vmul.f32 %v492, %v989
      %v1190 = vmul.f32 %v495, %v1004
      %v1191 = vmul.f32 %v498, %v1019
      %v1192 = vmul.f32 %v501, %v1034
      %v1193 = vmul.f32 %v504, %v1049
      %v1194 = vmul.f32 %v507, %v1064
      %v1195 = vmul.f32 %v510, %v1079
      %v1196 = vmul.f32 %v513, %v1094
      %v1197 = vmul.f32 %v516, %v1109
      %v1198 = vmul.f32 %v519, %v1124
      %v1199 = vmul.f32 %v522, %v1139
      %v1200 = vmul.f32 %v525, %v1154
      %v1201 = vmul.f32 %v528, %v1169
      %vm1202 = vcmask 64512
      %1203 = vst.msk [vmem:[#allocation2] sm:$0xff] %vm1202, 0.0
      %1204 = vst.msk [vmem:[#allocation2 + $0x8] sm:$0xff] %vm1202, 0.0
      %vm1205 = vcmask 58368
      %1206 = vst.msk [vmem:[#allocation2 + $0x10] sm:$0x3] %vm1205, 0.0
      %s1207 = scalar_lea.vmem [#allocation2], 408
      %1208 = vst.msk [vmem:[%s1207] sm:$0xff] %vm1202, 0.0
      %1209 = vst.msk [vmem:[%s1207 + $0x8] sm:$0xff] %vm1202, 0.0
      %1210 = vst.msk [vmem:[%s1207 + $0x10] sm:$0x3] %vm1205, 0.0
      %s1211 = scalar_lea.vmem [#allocation2], 24
      %vm1212 = vcmask 57344
      %1213 = vst.msk [vmem:[%s1211] sm:$0x1] %vm1212, 0.0
      %1214 = vst.msk [vmem:[%s1211 + $0x18] sm:$0x1] %vm1212, 0.0
      %1215 = vst.msk [vmem:[%s1211 + $0x30] sm:$0x1] %vm1212, 0.0
      %1216 = vst.msk [vmem:[%s1211 + $0x48] sm:$0x1] %vm1212, 0.0
      %1217 = vst.msk [vmem:[%s1211 + $0x60] sm:$0x1] %vm1212, 0.0
      %1218 = vst.msk [vmem:[%s1211 + $0x78] sm:$0x1] %vm1212, 0.0
      %1219 = vst.msk [vmem:[%s1211 + $0x90] sm:$0x1] %vm1212, 0.0
      %1220 = vst.msk [vmem:[%s1211 + $0xa8] sm:$0x1] %vm1212, 0.0
      %1221 = vst.msk [vmem:[%s1211 + $0xc0] sm:$0x1] %vm1212, 0.0
      %1222 = vst.msk [vmem:[%s1211 + $0xd8] sm:$0x1] %vm1212, 0.0
      %1223 = vst.msk [vmem:[%s1211 + $0xf0] sm:$0x1] %vm1212, 0.0
      %1224 = vst.msk [vmem:[%s1211 + $0x108] sm:$0x1] %vm1212, 0.0
      %1225 = vst.msk [vmem:[%s1211 + $0x120] sm:$0x1] %vm1212, 0.0
      %1226 = vst.msk [vmem:[%s1211 + $0x138] sm:$0x1] %vm1212, 0.0
      %1227 = vst.msk [vmem:[%s1211 + $0x150] sm:$0x1] %vm1212, 0.0
      %1228 = vst.msk [vmem:[%s1211 + $0x168] sm:$0x1] %vm1212, 0.0
      %1229 = vst.msk [vmem:[%s1211 + $0x11] sm:$0x1] %vm1212, 0.0
      %1230 = vst.msk [vmem:[%s1211 + $0x29] sm:$0x1] %vm1212, 0.0
      %1231 = vst.msk [vmem:[%s1211 + $0x41] sm:$0x1] %vm1212, 0.0
      %1232 = vst.msk [vmem:[%s1211 + $0x59] sm:$0x1] %vm1212, 0.0
      %1233 = vst.msk [vmem:[%s1211 + $0x71] sm:$0x1] %vm1212, 0.0
      %1234 = vst.msk [vmem:[%s1211 + $0x89] sm:$0x1] %vm1212, 0.0
      %1235 = vst.msk [vmem:[%s1211 + $0xa1] sm:$0x1] %vm1212, 0.0
      %1236 = vst.msk [vmem:[%s1211 + $0xb9] sm:$0x1] %vm1212, 0.0
      %1237 = vst.msk [vmem:[%s1211 + $0xd1] sm:$0x1] %vm1212, 0.0
      %1238 = vst.msk [vmem:[%s1211 + $0xe9] sm:$0x1] %vm1212, 0.0
      %1239 = vst.msk [vmem:[%s1211 + $0x101] sm:$0x1] %vm1212, 0.0
      %1240 = vst.msk [vmem:[%s1211 + $0x119] sm:$0x1] %vm1212, 0.0
      %1241 = vst.msk [vmem:[%s1211 + $0x131] sm:$0x1] %vm1212, 0.0
      %1242 = vst.msk [vmem:[%s1211 + $0x149] sm:$0x1] %vm1212, 0.0
      %1243 = vst.msk [vmem:[%s1211 + $0x161] sm:$0x1] %vm1212, 0.0
      %1244 = vst.msk [vmem:[%s1211 + $0x179] sm:$0x1] %vm1212, 0.0
      %1245 = vst.msk [vmem:[%s1211 + $0x1] sm:$0xff] %vm1202, %v1170
      %1246 = vst.msk [vmem:[%s1211 + $0x9] sm:$0xff] %vm1202, %v1171
      %1247 = vst.msk [vmem:[%s1211 + $0x19] sm:$0xff] %vm1202, %v1172
      %1248 = vst.msk [vmem:[%s1211 + $0x21] sm:$0xff] %vm1202, %v1173
      %1249 = vst.msk [vmem:[%s1211 + $0x31] sm:$0xff] %vm1202, %v1174
      %1250 = vst.msk [vmem:[%s1211 + $0x39] sm:$0xff] %vm1202, %v1175
      %1251 = vst.msk [vmem:[%s1211 + $0x49] sm:$0xff] %vm1202, %v1176
      %1252 = vst.msk [vmem:[%s1211 + $0x51] sm:$0xff] %vm1202, %v1177
      %1253 = vst.msk [vmem:[%s1211 + $0x61] sm:$0xff] %vm1202, %v1178
      %1254 = vst.msk [vmem:[%s1211 + $0x69] sm:$0xff] %vm1202, %v1179
      %1255 = vst.msk [vmem:[%s1211 + $0x79] sm:$0xff] %vm1202, %v1180
      %1256 = vst.msk [vmem:[%s1211 + $0x81] sm:$0xff] %vm1202, %v1181
      %1257 = vst.msk [vmem:[%s1211 + $0x91] sm:$0xff] %vm1202, %v1182
      %1258 = vst.msk [vmem:[%s1211 + $0x99] sm:$0xff] %vm1202, %v1183
      %1259 = vst.msk [vmem:[%s1211 + $0xa9] sm:$0xff] %vm1202, %v1184
      %1260 = vst.msk [vmem:[%s1211 + $0xb1] sm:$0xff] %vm1202, %v1185
      %1261 = vst.msk [vmem:[%s1211 + $0xc1] sm:$0xff] %vm1202, %v1186
      %1262 = vst.msk [vmem:[%s1211 + $0xc9] sm:$0xff] %vm1202, %v1187
      %1263 = vst.msk [vmem:[%s1211 + $0xd9] sm:$0xff] %vm1202, %v1188
      %1264 = vst.msk [vmem:[%s1211 + $0xe1] sm:$0xff] %vm1202, %v1189
      %1265 = vst.msk [vmem:[%s1211 + $0xf1] sm:$0xff] %vm1202, %v1190
      %1266 = vst.msk [vmem:[%s1211 + $0xf9] sm:$0xff] %vm1202, %v1191
      %1267 = vst.msk [vmem:[%s1211 + $0x109] sm:$0xff] %vm1202, %v1192
      %1268 = vst.msk [vmem:[%s1211 + $0x111] sm:$0xff] %vm1202, %v1193
      %1269 = vst.msk [vmem:[%s1211 + $0x121] sm:$0xff] %vm1202, %v1194
      %1270 = vst.msk [vmem:[%s1211 + $0x129] sm:$0xff] %vm1202, %v1195
      %1271 = vst.msk [vmem:[%s1211 + $0x139] sm:$0xff] %vm1202, %v1196
      %1272 = vst.msk [vmem:[%s1211 + $0x141] sm:$0xff] %vm1202, %v1197
      %1273 = vst.msk [vmem:[%s1211 + $0x151] sm:$0xff] %vm1202, %v1198
      %1274 = vst.msk [vmem:[%s1211 + $0x159] sm:$0xff] %vm1202, %v1199
      %1275 = vst.msk [vmem:[%s1211 + $0x169] sm:$0xff] %vm1202, %v1200
      %1276 = vst.msk [vmem:[%s1211 + $0x171] sm:$0xff] %vm1202, %v1201
      %v1277 = vld [vmem:[#allocation2] sm:$0xff]
      %v1278 = vld [vmem:[#allocation2 + $0x8] sm:$0xff]
      %v1279 = vld [vmem:[#allocation2 + $0x10] sm:$0x3]
      %v1280 = vld [vmem:[#allocation2 + $0x18] sm:$0xff]
      %v1281 = vld [vmem:[#allocation2 + $0x20] sm:$0xff]
      %v1282 = vld [vmem:[#allocation2 + $0x28] sm:$0x3]
      %v1283 = vld [vmem:[#allocation2 + $0x30] sm:$0xff]
      %v1284 = vld [vmem:[#allocation2 + $0x38] sm:$0xff]
      %v1285 = vld [vmem:[#allocation2 + $0x40] sm:$0x3]
      %v1286 = vld [vmem:[#allocation2 + $0x48] sm:$0xff]
      %v1287 = vld [vmem:[#allocation2 + $0x50] sm:$0xff]
      %v1288 = vld [vmem:[#allocation2 + $0x58] sm:$0x3]
      %v1289 = vld [vmem:[#allocation2 + $0x60] sm:$0xff]
      %v1290 = vld [vmem:[#allocation2 + $0x68] sm:$0xff]
      %v1291 = vld [vmem:[#allocation2 + $0x70] sm:$0x3]
      %v1292 = vld [vmem:[#allocation2 + $0x78] sm:$0xff]
      %v1293 = vld [vmem:[#allocation2 + $0x80] sm:$0xff]
      %v1294 = vld [vmem:[#allocation2 + $0x88] sm:$0x3]
      %v1295 = vld [vmem:[#allocation2 + $0x90] sm:$0xff]
      %v1296 = vld [vmem:[#allocation2 + $0x98] sm:$0xff]
      %v1297 = vld [vmem:[#allocation2 + $0xa0] sm:$0x3]
      %v1298 = vld [vmem:[#allocation2 + $0xa8] sm:$0xff]
      %v1299 = vld [vmem:[#allocation2 + $0xb0] sm:$0xff]
      %v1300 = vld [vmem:[#allocation2 + $0xb8] sm:$0x3]
      %v1301 = vld [vmem:[#allocation2 + $0xc0] sm:$0xff]
      %v1302 = vld [vmem:[#allocation2 + $0xc8] sm:$0xff]
      %v1303 = vld [vmem:[#allocation2 + $0xd0] sm:$0x3]
      %v1304 = vld [vmem:[#allocation2 + $0xd8] sm:$0xff]
      %v1305 = vld [vmem:[#allocation2 + $0xe0] sm:$0xff]
      %v1306 = vld [vmem:[#allocation2 + $0xe8] sm:$0x3]
      %v1307 = vld [vmem:[#allocation2 + $0xf0] sm:$0xff]
      %v1308 = vld [vmem:[#allocation2 + $0xf8] sm:$0xff]
      %v1309 = vld [vmem:[#allocation2 + $0x100] sm:$0x3]
      %v1310 = vld [vmem:[#allocation2 + $0x108] sm:$0xff]
      %v1311 = vld [vmem:[#allocation2 + $0x110] sm:$0xff]
      %v1312 = vld [vmem:[#allocation2 + $0x118] sm:$0x3]
      %v1313 = vld [vmem:[#allocation2 + $0x120] sm:$0xff]
      %v1314 = vld [vmem:[#allocation2 + $0x128] sm:$0xff]
      %v1315 = vld [vmem:[#allocation2 + $0x130] sm:$0x3]
      %v1316 = vld [vmem:[#allocation2 + $0x138] sm:$0xff]
      %v1317 = vld [vmem:[#allocation2 + $0x140] sm:$0xff]
      %v1318 = vld [vmem:[#allocation2 + $0x148] sm:$0x3]
      %v1319 = vld [vmem:[#allocation2 + $0x150] sm:$0xff]
      %v1320 = vld [vmem:[#allocation2 + $0x158] sm:$0xff]
      %v1321 = vld [vmem:[#allocation2 + $0x160] sm:$0x3]
      %v1322 = vld [vmem:[#allocation2 + $0x168] sm:$0xff]
      %v1323 = vld [vmem:[#allocation2 + $0x170] sm:$0xff]
      %v1324 = vld [vmem:[#allocation2 + $0x178] sm:$0x3]
      %v1325 = vld [vmem:[#allocation2 + $0x180] sm:$0xff]
      %v1326 = vld [vmem:[#allocation2 + $0x188] sm:$0xff]
      %v1327 = vld [vmem:[#allocation2 + $0x190] sm:$0x3]
      %v1328 = vld [vmem:[#allocation2 + $0x198] sm:$0xff]
      %v1329 = vld [vmem:[#allocation2 + $0x1a0] sm:$0xff]
      %v1330 = vld [vmem:[#allocation2 + $0x1a8] sm:$0x3]
      %vm1379 = vcmask 1046528
      %v1380 = vrot.slane %v1277, 1
      %v1381 = vrot.slane %v1278, 1
      %v1382 = vsel %vm1379, %v1380, %v1381
      %v1383 = vrot.slane %v1279, 1
      %v1384 = vsel %vm1379, %v1381, %v1383
      %v1385 = vrot.slane %v1280, 1
      %v1386 = vrot.slane %v1281, 1
      %v1387 = vsel %vm1379, %v1385, %v1386
      %v1388 = vrot.slane %v1282, 1
      %v1389 = vsel %vm1379, %v1386, %v1388
      %v1390 = vrot.slane %v1283, 1
      %v1391 = vrot.slane %v1284, 1
      %v1392 = vsel %vm1379, %v1390, %v1391
      %v1393 = vrot.slane %v1285, 1
      %v1394 = vsel %vm1379, %v1391, %v1393
      %v1395 = vrot.slane %v1286, 1
      %v1396 = vrot.slane %v1287, 1
      %v1397 = vsel %vm1379, %v1395, %v1396
      %v1398 = vrot.slane %v1288, 1
      %v1399 = vsel %vm1379, %v1396, %v1398
      %v1400 = vrot.slane %v1289, 1
      %v1401 = vrot.slane %v1290, 1
      %v1402 = vsel %vm1379, %v1400, %v1401
      %v1403 = vrot.slane %v1291, 1
      %v1404 = vsel %vm1379, %v1401, %v1403
      %v1405 = vrot.slane %v1292, 1
      %v1406 = vrot.slane %v1293, 1
      %v1407 = vsel %vm1379, %v1405, %v1406
      %v1408 = vrot.slane %v1294, 1
      %v1409 = vsel %vm1379, %v1406, %v1408
      %v1410 = vrot.slane %v1295, 1
      %v1411 = vrot.slane %v1296, 1
      %v1412 = vsel %vm1379, %v1410, %v1411
      %v1413 = vrot.slane %v1297, 1
      %v1414 = vsel %vm1379, %v1411, %v1413
      %v1415 = vrot.slane %v1298, 1
      %v1416 = vrot.slane %v1299, 1
      %v1417 = vsel %vm1379, %v1415, %v1416
      %v1418 = vrot.slane %v1300, 1
      %v1419 = vsel %vm1379, %v1416, %v1418
      %v1420 = vrot.slane %v1301, 1
      %v1421 = vrot.slane %v1302, 1
      %v1422 = vsel %vm1379, %v1420, %v1421
      %v1423 = vrot.slane %v1303, 1
      %v1424 = vsel %vm1379, %v1421, %v1423
      %v1425 = vrot.slane %v1304, 1
      %v1426 = vrot.slane %v1305, 1
      %v1427 = vsel %vm1379, %v1425, %v1426
      %v1428 = vrot.slane %v1306, 1
      %v1429 = vsel %vm1379, %v1426, %v1428
      %v1430 = vrot.slane %v1307, 1
      %v1431 = vrot.slane %v1308, 1
      %v1432 = vsel %vm1379, %v1430, %v1431
      %v1433 = vrot.slane %v1309, 1
      %v1434 = vsel %vm1379, %v1431, %v1433
      %v1435 = vrot.slane %v1310, 1
      %v1436 = vrot.slane %v1311, 1
      %v1437 = vsel %vm1379, %v1435, %v1436
      %v1438 = vrot.slane %v1312, 1
      %v1439 = vsel %vm1379, %v1436, %v1438
      %v1440 = vrot.slane %v1313, 1
      %v1441 = vrot.slane %v1314, 1
      %v1442 = vsel %vm1379, %v1440, %v1441
      %v1443 = vrot.slane %v1315, 1
      %v1444 = vsel %vm1379, %v1441, %v1443
      %v1445 = vrot.slane %v1316, 1
      %v1446 = vrot.slane %v1317, 1
      %v1447 = vsel %vm1379, %v1445, %v1446
      %v1448 = vrot.slane %v1318, 1
      %v1449 = vsel %vm1379, %v1446, %v1448
      %v1450 = vrot.slane %v1319, 1
      %v1451 = vrot.slane %v1320, 1
      %v1452 = vsel %vm1379, %v1450, %v1451
      %v1453 = vrot.slane %v1321, 1
      %v1454 = vsel %vm1379, %v1451, %v1453
      %v1455 = vrot.slane %v1322, 1
      %v1456 = vrot.slane %v1323, 1
      %v1457 = vsel %vm1379, %v1455, %v1456
      %v1458 = vrot.slane %v1324, 1
      %v1459 = vsel %vm1379, %v1456, %v1458
      %1460 = vrot.lane.b32.xlu0 %v1382, 8
      %v1461 = vpop.permute.xlu0 %1460
      %1462 = vrot.lane.b32.xlu0 %v1384, 8
      %v1463 = vpop.permute.xlu0 %1462
      %1464 = vrot.lane.b32.xlu0 %v1387, 8
      %v1465 = vpop.permute.xlu0 %1464
      %1466 = vrot.lane.b32.xlu0 %v1389, 8
      %v1467 = vpop.permute.xlu0 %1466
      %1468 = vrot.lane.b32.xlu0 %v1392, 8
      %v1469 = vpop.permute.xlu0 %1468
      %1470 = vrot.lane.b32.xlu0 %v1394, 8
      %v1471 = vpop.permute.xlu0 %1470
      %1472 = vrot.lane.b32.xlu0 %v1397, 8
      %v1473 = vpop.permute.xlu0 %1472
      %1474 = vrot.lane.b32.xlu0 %v1399, 8
      %v1475 = vpop.permute.xlu0 %1474
      %1476 = vrot.lane.b32.xlu0 %v1402, 8
      %v1477 = vpop.permute.xlu0 %1476
      %1478 = vrot.lane.b32.xlu0 %v1404, 8
      %v1479 = vpop.permute.xlu0 %1478
      %1480 = vrot.lane.b32.xlu0 %v1407, 8
      %v1481 = vpop.permute.xlu0 %1480
      %1482 = vrot.lane.b32.xlu0 %v1409, 8
      %v1483 = vpop.permute.xlu0 %1482
      %1484 = vrot.lane.b32.xlu0 %v1412, 8
      %v1485 = vpop.permute.xlu0 %1484
      %1486 = vrot.lane.b32.xlu0 %v1414, 8
      %v1487 = vpop.permute.xlu0 %1486
      %1488 = vrot.lane.b32.xlu0 %v1417, 8
      %v1489 = vpop.permute.xlu0 %1488
      %1490 = vrot.lane.b32.xlu0 %v1419, 8
      %v1491 = vpop.permute.xlu0 %1490
      %1492 = vrot.lane.b32.xlu0 %v1422, 8
      %v1493 = vpop.permute.xlu0 %1492
      %1494 = vrot.lane.b32.xlu0 %v1424, 8
      %v1495 = vpop.permute.xlu0 %1494
      %1496 = vrot.lane.b32.xlu0 %v1427, 8
      %v1497 = vpop.permute.xlu0 %1496
      %1498 = vrot.lane.b32.xlu0 %v1429, 8
      %v1499 = vpop.permute.xlu0 %1498
      %1500 = vrot.lane.b32.xlu0 %v1432, 8
      %v1501 = vpop.permute.xlu0 %1500
      %1502 = vrot.lane.b32.xlu0 %v1434, 8
      %v1503 = vpop.permute.xlu0 %1502
      %1504 = vrot.lane.b32.xlu0 %v1437, 8
      %v1505 = vpop.permute.xlu0 %1504
      %1506 = vrot.lane.b32.xlu0 %v1439, 8
      %v1507 = vpop.permute.xlu0 %1506
      %1508 = vrot.lane.b32.xlu0 %v1442, 8
      %v1509 = vpop.permute.xlu0 %1508
      %1510 = vrot.lane.b32.xlu0 %v1444, 8
      %v1511 = vpop.permute.xlu0 %1510
      %1512 = vrot.lane.b32.xlu0 %v1447, 8
      %v1513 = vpop.permute.xlu0 %1512
      %1514 = vrot.lane.b32.xlu0 %v1449, 8
      %v1515 = vpop.permute.xlu0 %1514
      %1516 = vrot.lane.b32.xlu0 %v1452, 8
      %v1517 = vpop.permute.xlu0 %1516
      %1518 = vrot.lane.b32.xlu0 %v1454, 8
      %v1519 = vpop.permute.xlu0 %1518
      %1520 = vrot.lane.b32.xlu0 %v1457, 8
      %v1521 = vpop.permute.xlu0 %1520
      %1522 = vrot.lane.b32.xlu0 %v1459, 8
      %v1523 = vpop.permute.xlu0 %1522
      %vm1556 = vcmask 1045504
      %v1557 = vrot.slane %v1277, 2
      %v1558 = vrot.slane %v1278, 2
      %v1559 = vsel %vm1556, %v1557, %v1558
      %v1560 = vrot.slane %v1279, 2
      %v1561 = vsel %vm1556, %v1558, %v1560
      %v1562 = vrot.slane %v1280, 2
      %v1563 = vrot.slane %v1281, 2
      %v1564 = vsel %vm1556, %v1562, %v1563
      %v1565 = vrot.slane %v1282, 2
      %v1566 = vsel %vm1556, %v1563, %v1565
      %v1567 = vrot.slane %v1283, 2
      %v1568 = vrot.slane %v1284, 2
      %v1569 = vsel %vm1556, %v1567, %v1568
      %v1570 = vrot.slane %v1285, 2
      %v1571 = vsel %vm1556, %v1568, %v1570
      %v1572 = vrot.slane %v1286, 2
      %v1573 = vrot.slane %v1287, 2
      %v1574 = vsel %vm1556, %v1572, %v1573
      %v1575 = vrot.slane %v1288, 2
      %v1576 = vsel %vm1556, %v1573, %v1575
      %v1577 = vrot.slane %v1289, 2
      %v1578 = vrot.slane %v1290, 2
      %v1579 = vsel %vm1556, %v1577, %v1578
      %v1580 = vrot.slane %v1291, 2
      %v1581 = vsel %vm1556, %v1578, %v1580
      %v1582 = vrot.slane %v1292, 2
      %v1583 = vrot.slane %v1293, 2
      %v1584 = vsel %vm1556, %v1582, %v1583
      %v1585 = vrot.slane %v1294, 2
      %v1586 = vsel %vm1556, %v1583, %v1585
      %v1587 = vrot.slane %v1295, 2
      %v1588 = vrot.slane %v1296, 2
      %v1589 = vsel %vm1556, %v1587, %v1588
      %v1590 = vrot.slane %v1297, 2
      %v1591 = vsel %vm1556, %v1588, %v1590
      %v1592 = vrot.slane %v1298, 2
      %v1593 = vrot.slane %v1299, 2
      %v1594 = vsel %vm1556, %v1592, %v1593
      %v1595 = vrot.slane %v1300, 2
      %v1596 = vsel %vm1556, %v1593, %v1595
      %v1597 = vrot.slane %v1301, 2
      %v1598 = vrot.slane %v1302, 2
      %v1599 = vsel %vm1556, %v1597, %v1598
      %v1600 = vrot.slane %v1303, 2
      %v1601 = vsel %vm1556, %v1598, %v1600
      %v1602 = vrot.slane %v1304, 2
      %v1603 = vrot.slane %v1305, 2
      %v1604 = vsel %vm1556, %v1602, %v1603
      %v1605 = vrot.slane %v1306, 2
      %v1606 = vsel %vm1556, %v1603, %v1605
      %v1607 = vrot.slane %v1307, 2
      %v1608 = vrot.slane %v1308, 2
      %v1609 = vsel %vm1556, %v1607, %v1608
      %v1610 = vrot.slane %v1309, 2
      %v1611 = vsel %vm1556, %v1608, %v1610
      %v1612 = vrot.slane %v1310, 2
      %v1613 = vrot.slane %v1311, 2
      %v1614 = vsel %vm1556, %v1612, %v1613
      %v1615 = vrot.slane %v1312, 2
      %v1616 = vsel %vm1556, %v1613, %v1615
      %v1617 = vrot.slane %v1313, 2
      %v1618 = vrot.slane %v1314, 2
      %v1619 = vsel %vm1556, %v1617, %v1618
      %v1620 = vrot.slane %v1315, 2
      %v1621 = vsel %vm1556, %v1618, %v1620
      %v1622 = vrot.slane %v1316, 2
      %v1623 = vrot.slane %v1317, 2
      %v1624 = vsel %vm1556, %v1622, %v1623
      %v1625 = vrot.slane %v1318, 2
      %v1626 = vsel %vm1556, %v1623, %v1625
      %v1627 = vrot.slane %v1319, 2
      %v1628 = vrot.slane %v1320, 2
      %v1629 = vsel %vm1556, %v1627, %v1628
      %v1630 = vrot.slane %v1321, 2
      %v1631 = vsel %vm1556, %v1628, %v1630
      %v1632 = vrot.slane %v1322, 2
      %v1633 = vrot.slane %v1323, 2
      %v1634 = vsel %vm1556, %v1632, %v1633
      %v1635 = vrot.slane %v1324, 2
      %v1636 = vsel %vm1556, %v1633, %v1635
      %1637 = vrot.lane.b32.xlu0 %v1559, 16
      %v1638 = vpop.permute.xlu0 %1637
      %1639 = vrot.lane.b32.xlu0 %v1561, 16
      %v1640 = vpop.permute.xlu0 %1639
      %1641 = vrot.lane.b32.xlu0 %v1564, 16
      %v1642 = vpop.permute.xlu0 %1641
      %1643 = vrot.lane.b32.xlu0 %v1566, 16
      %v1644 = vpop.permute.xlu0 %1643
      %1645 = vrot.lane.b32.xlu0 %v1569, 16
      %v1646 = vpop.permute.xlu0 %1645
      %1647 = vrot.lane.b32.xlu0 %v1571, 16
      %v1648 = vpop.permute.xlu0 %1647
      %1649 = vrot.lane.b32.xlu0 %v1574, 16
      %v1650 = vpop.permute.xlu0 %1649
      %1651 = vrot.lane.b32.xlu0 %v1576, 16
      %v1652 = vpop.permute.xlu0 %1651
      %1653 = vrot.lane.b32.xlu0 %v1579, 16
      %v1654 = vpop.permute.xlu0 %1653
      %1655 = vrot.lane.b32.xlu0 %v1581, 16
      %v1656 = vpop.permute.xlu0 %1655
      %1657 = vrot.lane.b32.xlu0 %v1584, 16
      %v1658 = vpop.permute.xlu0 %1657
      %1659 = vrot.lane.b32.xlu0 %v1586, 16
      %v1660 = vpop.permute.xlu0 %1659
      %1661 = vrot.lane.b32.xlu0 %v1589, 16
      %v1662 = vpop.permute.xlu0 %1661
      %1663 = vrot.lane.b32.xlu0 %v1591, 16
      %v1664 = vpop.permute.xlu0 %1663
      %1665 = vrot.lane.b32.xlu0 %v1594, 16
      %v1666 = vpop.permute.xlu0 %1665
      %1667 = vrot.lane.b32.xlu0 %v1596, 16
      %v1668 = vpop.permute.xlu0 %1667
      %1669 = vrot.lane.b32.xlu0 %v1599, 16
      %v1670 = vpop.permute.xlu0 %1669
      %1671 = vrot.lane.b32.xlu0 %v1601, 16
      %v1672 = vpop.permute.xlu0 %1671
      %1673 = vrot.lane.b32.xlu0 %v1604, 16
      %v1674 = vpop.permute.xlu0 %1673
      %1675 = vrot.lane.b32.xlu0 %v1606, 16
      %v1676 = vpop.permute.xlu0 %1675
      %1677 = vrot.lane.b32.xlu0 %v1609, 16
      %v1678 = vpop.permute.xlu0 %1677
      %1679 = vrot.lane.b32.xlu0 %v1611, 16
      %v1680 = vpop.permute.xlu0 %1679
      %1681 = vrot.lane.b32.xlu0 %v1614, 16
      %v1682 = vpop.permute.xlu0 %1681
      %1683 = vrot.lane.b32.xlu0 %v1616, 16
      %v1684 = vpop.permute.xlu0 %1683
      %1685 = vrot.lane.b32.xlu0 %v1619, 16
      %v1686 = vpop.permute.xlu0 %1685
      %1687 = vrot.lane.b32.xlu0 %v1621, 16
      %v1688 = vpop.permute.xlu0 %1687
      %1689 = vrot.lane.b32.xlu0 %v1624, 16
      %v1690 = vpop.permute.xlu0 %1689
      %1691 = vrot.lane.b32.xlu0 %v1626, 16
      %v1692 = vpop.permute.xlu0 %1691
      %1693 = vrot.lane.b32.xlu0 %v1629, 16
      %v1694 = vpop.permute.xlu0 %1693
      %1695 = vrot.lane.b32.xlu0 %v1631, 16
      %v1696 = vpop.permute.xlu0 %1695
      %1697 = vrot.lane.b32.xlu0 %v1634, 16
      %v1698 = vpop.permute.xlu0 %1697
      %1699 = vrot.lane.b32.xlu0 %v1636, 16
      %v1700 = vpop.permute.xlu0 %1699
      %1735 = vrot.lane.b32.xlu0 %v1280, 24
      %v1736 = vpop.permute.xlu0 %1735
      %1737 = vrot.lane.b32.xlu0 %v1281, 24
      %v1738 = vpop.permute.xlu0 %1737
      %1739 = vrot.lane.b32.xlu0 %v1283, 24
      %v1740 = vpop.permute.xlu0 %1739
      %1741 = vrot.lane.b32.xlu0 %v1284, 24
      %v1742 = vpop.permute.xlu0 %1741
      %1743 = vrot.lane.b32.xlu0 %v1286, 24
      %v1744 = vpop.permute.xlu0 %1743
      %1745 = vrot.lane.b32.xlu0 %v1287, 24
      %v1746 = vpop.permute.xlu0 %1745
      %1747 = vrot.lane.b32.xlu0 %v1289, 24
      %v1748 = vpop.permute.xlu0 %1747
      %1749 = vrot.lane.b32.xlu0 %v1290, 24
      %v1750 = vpop.permute.xlu0 %1749
      %1751 = vrot.lane.b32.xlu0 %v1292, 24
      %v1752 = vpop.permute.xlu0 %1751
      %1753 = vrot.lane.b32.xlu0 %v1293, 24
      %v1754 = vpop.permute.xlu0 %1753
      %1755 = vrot.lane.b32.xlu0 %v1295, 24
      %v1756 = vpop.permute.xlu0 %1755
      %1757 = vrot.lane.b32.xlu0 %v1296, 24
      %v1758 = vpop.permute.xlu0 %1757
      %1759 = vrot.lane.b32.xlu0 %v1298, 24
      %v1760 = vpop.permute.xlu0 %1759
      %1761 = vrot.lane.b32.xlu0 %v1299, 24
      %v1762 = vpop.permute.xlu0 %1761
      %1763 = vrot.lane.b32.xlu0 %v1301, 24
      %v1764 = vpop.permute.xlu0 %1763
      %1765 = vrot.lane.b32.xlu0 %v1302, 24
      %v1766 = vpop.permute.xlu0 %1765
      %1767 = vrot.lane.b32.xlu0 %v1304, 24
      %v1768 = vpop.permute.xlu0 %1767
      %1769 = vrot.lane.b32.xlu0 %v1305, 24
      %v1770 = vpop.permute.xlu0 %1769
      %1771 = vrot.lane.b32.xlu0 %v1307, 24
      %v1772 = vpop.permute.xlu0 %1771
      %1773 = vrot.lane.b32.xlu0 %v1308, 24
      %v1774 = vpop.permute.xlu0 %1773
      %1775 = vrot.lane.b32.xlu0 %v1310, 24
      %v1776 = vpop.permute.xlu0 %1775
      %1777 = vrot.lane.b32.xlu0 %v1311, 24
      %v1778 = vpop.permute.xlu0 %1777
      %1779 = vrot.lane.b32.xlu0 %v1313, 24
      %v1780 = vpop.permute.xlu0 %1779
      %1781 = vrot.lane.b32.xlu0 %v1314, 24
      %v1782 = vpop.permute.xlu0 %1781
      %1783 = vrot.lane.b32.xlu0 %v1316, 24
      %v1784 = vpop.permute.xlu0 %1783
      %1785 = vrot.lane.b32.xlu0 %v1317, 24
      %v1786 = vpop.permute.xlu0 %1785
      %1787 = vrot.lane.b32.xlu0 %v1319, 24
      %v1788 = vpop.permute.xlu0 %1787
      %1789 = vrot.lane.b32.xlu0 %v1320, 24
      %v1790 = vpop.permute.xlu0 %1789
      %1791 = vrot.lane.b32.xlu0 %v1322, 24
      %v1792 = vpop.permute.xlu0 %1791
      %1793 = vrot.lane.b32.xlu0 %v1323, 24
      %v1794 = vpop.permute.xlu0 %1793
      %1795 = vrot.lane.b32.xlu0 %v1325, 24
      %v1796 = vpop.permute.xlu0 %1795
      %1797 = vrot.lane.b32.xlu0 %v1326, 24
      %v1798 = vpop.permute.xlu0 %1797
      %v1832 = vrot.slane %v1325, 1
      %v1833 = vrot.slane %v1326, 1
      %v1834 = vsel %vm1379, %v1832, %v1833
      %v1835 = vrot.slane %v1327, 1
      %v1836 = vsel %vm1379, %v1833, %v1835
      %1837 = vrot.lane.b32.xlu0 %v1387, 32
      %v1838 = vpop.permute.xlu0 %1837
      %1839 = vrot.lane.b32.xlu0 %v1389, 32
      %v1840 = vpop.permute.xlu0 %1839
      %1841 = vrot.lane.b32.xlu0 %v1392, 32
      %v1842 = vpop.permute.xlu0 %1841
      %1843 = vrot.lane.b32.xlu0 %v1394, 32
      %v1844 = vpop.permute.xlu0 %1843
      %1845 = vrot.lane.b32.xlu0 %v1397, 32
      %v1846 = vpop.permute.xlu0 %1845
      %1847 = vrot.lane.b32.xlu0 %v1399, 32
      %v1848 = vpop.permute.xlu0 %1847
      %1849 = vrot.lane.b32.xlu0 %v1402, 32
      %v1850 = vpop.permute.xlu0 %1849
      %1851 = vrot.lane.b32.xlu0 %v1404, 32
      %v1852 = vpop.permute.xlu0 %1851
      %1853 = vrot.lane.b32.xlu0 %v1407, 32
      %v1854 = vpop.permute.xlu0 %1853
      %1855 = vrot.lane.b32.xlu0 %v1409, 32
      %v1856 = vpop.permute.xlu0 %1855
      %1857 = vrot.lane.b32.xlu0 %v1412, 32
      %v1858 = vpop.permute.xlu0 %1857
      %1859 = vrot.lane.b32.xlu0 %v1414, 32
      %v1860 = vpop.permute.xlu0 %1859
      %1861 = vrot.lane.b32.xlu0 %v1417, 32
      %v1862 = vpop.permute.xlu0 %1861
      %1863 = vrot.lane.b32.xlu0 %v1419, 32
      %v1864 = vpop.permute.xlu0 %1863
      %1865 = vrot.lane.b32.xlu0 %v1422, 32
      %v1866 = vpop.permute.xlu0 %1865
      %1867 = vrot.lane.b32.xlu0 %v1424, 32
      %v1868 = vpop.permute.xlu0 %1867
      %1869 = vrot.lane.b32.xlu0 %v1427, 32
      %v1870 = vpop.permute.xlu0 %1869
      %1871 = vrot.lane.b32.xlu0 %v1429, 32
      %v1872 = vpop.permute.xlu0 %1871
      %1873 = vrot.lane.b32.xlu0 %v1432, 32
      %v1874 = vpop.permute.xlu0 %1873
      %1875 = vrot.lane.b32.xlu0 %v1434, 32
      %v1876 = vpop.permute.xlu0 %1875
      %1877 = vrot.lane.b32.xlu0 %v1437, 32
      %v1878 = vpop.permute.xlu0 %1877
      %1879 = vrot.lane.b32.xlu0 %v1439, 32
      %v1880 = vpop.permute.xlu0 %1879
      %1881 = vrot.lane.b32.xlu0 %v1442, 32
      %v1882 = vpop.permute.xlu0 %1881
      %1883 = vrot.lane.b32.xlu0 %v1444, 32
      %v1884 = vpop.permute.xlu0 %1883
      %1885 = vrot.lane.b32.xlu0 %v1447, 32
      %v1886 = vpop.permute.xlu0 %1885
      %1887 = vrot.lane.b32.xlu0 %v1449, 32
      %v1888 = vpop.permute.xlu0 %1887
      %1889 = vrot.lane.b32.xlu0 %v1452, 32
      %v1890 = vpop.permute.xlu0 %1889
      %1891 = vrot.lane.b32.xlu0 %v1454, 32
      %v1892 = vpop.permute.xlu0 %1891
      %1893 = vrot.lane.b32.xlu0 %v1457, 32
      %v1894 = vpop.permute.xlu0 %1893
      %1895 = vrot.lane.b32.xlu0 %v1459, 32
      %v1896 = vpop.permute.xlu0 %1895
      %1897 = vrot.lane.b32.xlu0 %v1834, 32
      %v1898 = vpop.permute.xlu0 %1897
      %1899 = vrot.lane.b32.xlu0 %v1836, 32
      %v1900 = vpop.permute.xlu0 %1899
      %v1933 = vrot.slane %v1325, 2
      %v1934 = vrot.slane %v1326, 2
      %v1935 = vsel %vm1556, %v1933, %v1934
      %v1936 = vrot.slane %v1327, 2
      %v1937 = vsel %vm1556, %v1934, %v1936
      %1938 = vrot.lane.b32.xlu0 %v1564, 40
      %v1939 = vpop.permute.xlu0 %1938
      %1940 = vrot.lane.b32.xlu0 %v1566, 40
      %v1941 = vpop.permute.xlu0 %1940
      %1942 = vrot.lane.b32.xlu0 %v1569, 40
      %v1943 = vpop.permute.xlu0 %1942
      %1944 = vrot.lane.b32.xlu0 %v1571, 40
      %v1945 = vpop.permute.xlu0 %1944
      %1946 = vrot.lane.b32.xlu0 %v1574, 40
      %v1947 = vpop.permute.xlu0 %1946
      %1948 = vrot.lane.b32.xlu0 %v1576, 40
      %v1949 = vpop.permute.xlu0 %1948
      %1950 = vrot.lane.b32.xlu0 %v1579, 40
      %v1951 = vpop.permute.xlu0 %1950
      %1952 = vrot.lane.b32.xlu0 %v1581, 40
      %v1953 = vpop.permute.xlu0 %1952
      %1954 = vrot.lane.b32.xlu0 %v1584, 40
      %v1955 = vpop.permute.xlu0 %1954
      %1956 = vrot.lane.b32.xlu0 %v1586, 40
      %v1957 = vpop.permute.xlu0 %1956
      %1958 = vrot.lane.b32.xlu0 %v1589, 40
      %v1959 = vpop.permute.xlu0 %1958
      %1960 = vrot.lane.b32.xlu0 %v1591, 40
      %v1961 = vpop.permute.xlu0 %1960
      %1962 = vrot.lane.b32.xlu0 %v1594, 40
      %v1963 = vpop.permute.xlu0 %1962
      %1964 = vrot.lane.b32.xlu0 %v1596, 40
      %v1965 = vpop.permute.xlu0 %1964
      %1966 = vrot.lane.b32.xlu0 %v1599, 40
      %v1967 = vpop.permute.xlu0 %1966
      %1968 = vrot.lane.b32.xlu0 %v1601, 40
      %v1969 = vpop.permute.xlu0 %1968
      %1970 = vrot.lane.b32.xlu0 %v1604, 40
      %v1971 = vpop.permute.xlu0 %1970
      %1972 = vrot.lane.b32.xlu0 %v1606, 40
      %v1973 = vpop.permute.xlu0 %1972
      %1974 = vrot.lane.b32.xlu0 %v1609, 40
      %v1975 = vpop.permute.xlu0 %1974
      %1976 = vrot.lane.b32.xlu0 %v1611, 40
      %v1977 = vpop.permute.xlu0 %1976
      %1978 = vrot.lane.b32.xlu0 %v1614, 40
      %v1979 = vpop.permute.xlu0 %1978
      %1980 = vrot.lane.b32.xlu0 %v1616, 40
      %v1981 = vpop.permute.xlu0 %1980
      %1982 = vrot.lane.b32.xlu0 %v1619, 40
      %v1983 = vpop.permute.xlu0 %1982
      %1984 = vrot.lane.b32.xlu0 %v1621, 40
      %v1985 = vpop.permute.xlu0 %1984
      %1986 = vrot.lane.b32.xlu0 %v1624, 40
      %v1987 = vpop.permute.xlu0 %1986
      %1988 = vrot.lane.b32.xlu0 %v1626, 40
      %v1989 = vpop.permute.xlu0 %1988
      %1990 = vrot.lane.b32.xlu0 %v1629, 40
      %v1991 = vpop.permute.xlu0 %1990
      %1992 = vrot.lane.b32.xlu0 %v1631, 40
      %v1993 = vpop.permute.xlu0 %1992
      %1994 = vrot.lane.b32.xlu0 %v1634, 40
      %v1995 = vpop.permute.xlu0 %1994
      %1996 = vrot.lane.b32.xlu0 %v1636, 40
      %v1997 = vpop.permute.xlu0 %1996
      %1998 = vrot.lane.b32.xlu0 %v1935, 40
      %v1999 = vpop.permute.xlu0 %1998
      %2000 = vrot.lane.b32.xlu0 %v1937, 40
      %v2001 = vpop.permute.xlu0 %2000
      %2036 = vrot.lane.b32.xlu0 %v1283, 48
      %v2037 = vpop.permute.xlu0 %2036
      %2038 = vrot.lane.b32.xlu0 %v1284, 48
      %v2039 = vpop.permute.xlu0 %2038
      %2040 = vrot.lane.b32.xlu0 %v1286, 48
      %v2041 = vpop.permute.xlu0 %2040
      %2042 = vrot.lane.b32.xlu0 %v1287, 48
      %v2043 = vpop.permute.xlu0 %2042
      %2044 = vrot.lane.b32.xlu0 %v1289, 48
      %v2045 = vpop.permute.xlu0 %2044
      %2046 = vrot.lane.b32.xlu0 %v1290, 48
      %v2047 = vpop.permute.xlu0 %2046
      %2048 = vrot.lane.b32.xlu0 %v1292, 48
      %v2049 = vpop.permute.xlu0 %2048
      %2050 = vrot.lane.b32.xlu0 %v1293, 48
      %v2051 = vpop.permute.xlu0 %2050
      %2052 = vrot.lane.b32.xlu0 %v1295, 48
      %v2053 = vpop.permute.xlu0 %2052
      %2054 = vrot.lane.b32.xlu0 %v1296, 48
      %v2055 = vpop.permute.xlu0 %2054
      %2056 = vrot.lane.b32.xlu0 %v1298, 48
      %v2057 = vpop.permute.xlu0 %2056
      %2058 = vrot.lane.b32.xlu0 %v1299, 48
      %v2059 = vpop.permute.xlu0 %2058
      %2060 = vrot.lane.b32.xlu0 %v1301, 48
      %v2061 = vpop.permute.xlu0 %2060
      %2062 = vrot.lane.b32.xlu0 %v1302, 48
      %v2063 = vpop.permute.xlu0 %2062
      %2064 = vrot.lane.b32.xlu0 %v1304, 48
      %v2065 = vpop.permute.xlu0 %2064
      %2066 = vrot.lane.b32.xlu0 %v1305, 48
      %v2067 = vpop.permute.xlu0 %2066
      %2068 = vrot.lane.b32.xlu0 %v1307, 48
      %v2069 = vpop.permute.xlu0 %2068
      %2070 = vrot.lane.b32.xlu0 %v1308, 48
      %v2071 = vpop.permute.xlu0 %2070
      %2072 = vrot.lane.b32.xlu0 %v1310, 48
      %v2073 = vpop.permute.xlu0 %2072
      %2074 = vrot.lane.b32.xlu0 %v1311, 48
      %v2075 = vpop.permute.xlu0 %2074
      %2076 = vrot.lane.b32.xlu0 %v1313, 48
      %v2077 = vpop.permute.xlu0 %2076
      %2078 = vrot.lane.b32.xlu0 %v1314, 48
      %v2079 = vpop.permute.xlu0 %2078
      %2080 = vrot.lane.b32.xlu0 %v1316, 48
      %v2081 = vpop.permute.xlu0 %2080
      %2082 = vrot.lane.b32.xlu0 %v1317, 48
      %v2083 = vpop.permute.xlu0 %2082
      %2084 = vrot.lane.b32.xlu0 %v1319, 48
      %v2085 = vpop.permute.xlu0 %2084
      %2086 = vrot.lane.b32.xlu0 %v1320, 48
      %v2087 = vpop.permute.xlu0 %2086
      %2088 = vrot.lane.b32.xlu0 %v1322, 48
      %v2089 = vpop.permute.xlu0 %2088
      %2090 = vrot.lane.b32.xlu0 %v1323, 48
      %v2091 = vpop.permute.xlu0 %2090
      %2092 = vrot.lane.b32.xlu0 %v1325, 48
      %v2093 = vpop.permute.xlu0 %2092
      %2094 = vrot.lane.b32.xlu0 %v1326, 48
      %v2095 = vpop.permute.xlu0 %2094
      %2096 = vrot.lane.b32.xlu0 %v1328, 48
      %v2097 = vpop.permute.xlu0 %2096
      %2098 = vrot.lane.b32.xlu0 %v1329, 48
      %v2099 = vpop.permute.xlu0 %2098
      %v2133 = vrot.slane %v1328, 1
      %v2134 = vrot.slane %v1329, 1
      %v2135 = vsel %vm1379, %v2133, %v2134
      %v2136 = vrot.slane %v1330, 1
      %v2137 = vsel %vm1379, %v2134, %v2136
      %2138 = vrot.lane.b32.xlu0 %v1392, 56
      %v2139 = vpop.permute.xlu0 %2138
      %2140 = vrot.lane.b32.xlu0 %v1394, 56
      %v2141 = vpop.permute.xlu0 %2140
      %2142 = vrot.lane.b32.xlu0 %v1397, 56
      %v2143 = vpop.permute.xlu0 %2142
      %2144 = vrot.lane.b32.xlu0 %v1399, 56
      %v2145 = vpop.permute.xlu0 %2144
      %2146 = vrot.lane.b32.xlu0 %v1402, 56
      %v2147 = vpop.permute.xlu0 %2146
      %2148 = vrot.lane.b32.xlu0 %v1404, 56
      %v2149 = vpop.permute.xlu0 %2148
      %2150 = vrot.lane.b32.xlu0 %v1407, 56
      %v2151 = vpop.permute.xlu0 %2150
      %2152 = vrot.lane.b32.xlu0 %v1409, 56
      %v2153 = vpop.permute.xlu0 %2152
      %2154 = vrot.lane.b32.xlu0 %v1412, 56
      %v2155 = vpop.permute.xlu0 %2154
      %2156 = vrot.lane.b32.xlu0 %v1414, 56
      %v2157 = vpop.permute.xlu0 %2156
      %2158 = vrot.lane.b32.xlu0 %v1417, 56
      %v2159 = vpop.permute.xlu0 %2158
      %2160 = vrot.lane.b32.xlu0 %v1419, 56
      %v2161 = vpop.permute.xlu0 %2160
      %2162 = vrot.lane.b32.xlu0 %v1422, 56
      %v2163 = vpop.permute.xlu0 %2162
      %2164 = vrot.lane.b32.xlu0 %v1424, 56
      %v2165 = vpop.permute.xlu0 %2164
      %2166 = vrot.lane.b32.xlu0 %v1427, 56
      %v2167 = vpop.permute.xlu0 %2166
      %2168 = vrot.lane.b32.xlu0 %v1429, 56
      %v2169 = vpop.permute.xlu0 %2168
      %2170 = vrot.lane.b32.xlu0 %v1432, 56
      %v2171 = vpop.permute.xlu0 %2170
      %2172 = vrot.lane.b32.xlu0 %v1434, 56
      %v2173 = vpop.permute.xlu0 %2172
      %2174 = vrot.lane.b32.xlu0 %v1437, 56
      %v2175 = vpop.permute.xlu0 %2174
      %2176 = vrot.lane.b32.xlu0 %v1439, 56
      %v2177 = vpop.permute.xlu0 %2176
      %2178 = vrot.lane.b32.xlu0 %v1442, 56
      %v2179 = vpop.permute.xlu0 %2178
      %2180 = vrot.lane.b32.xlu0 %v1444, 56
      %v2181 = vpop.permute.xlu0 %2180
      %2182 = vrot.lane.b32.xlu0 %v1447, 56
      %v2183 = vpop.permute.xlu0 %2182
      %2184 = vrot.lane.b32.xlu0 %v1449, 56
      %v2185 = vpop.permute.xlu0 %2184
      %2186 = vrot.lane.b32.xlu0 %v1452, 56
      %v2187 = vpop.permute.xlu0 %2186
      %2188 = vrot.lane.b32.xlu0 %v1454, 56
      %v2189 = vpop.permute.xlu0 %2188
      %2190 = vrot.lane.b32.xlu0 %v1457, 56
      %v2191 = vpop.permute.xlu0 %2190
      %2192 = vrot.lane.b32.xlu0 %v1459, 56
      %v2193 = vpop.permute.xlu0 %2192
      %2194 = vrot.lane.b32.xlu0 %v1834, 56
      %v2195 = vpop.permute.xlu0 %2194
      %2196 = vrot.lane.b32.xlu0 %v1836, 56
      %v2197 = vpop.permute.xlu0 %2196
      %2198 = vrot.lane.b32.xlu0 %v2135, 56
      %v2199 = vpop.permute.xlu0 %2198
      %2200 = vrot.lane.b32.xlu0 %v2137, 56
      %v2201 = vpop.permute.xlu0 %2200
      %v2234 = vrot.slane %v1328, 2
      %v2235 = vrot.slane %v1329, 2
      %v2236 = vsel %vm1556, %v2234, %v2235
      %v2237 = vrot.slane %v1330, 2
      %v2238 = vsel %vm1556, %v2235, %v2237
      %2239 = vrot.lane.b32.xlu0 %v1569, 64
      %v2240 = vpop.permute.xlu0 %2239
      %2241 = vrot.lane.b32.xlu0 %v1571, 64
      %v2242 = vpop.permute.xlu0 %2241
      %2243 = vrot.lane.b32.xlu0 %v1574, 64
      %v2244 = vpop.permute.xlu0 %2243
      %2245 = vrot.lane.b32.xlu0 %v1576, 64
      %v2246 = vpop.permute.xlu0 %2245
      %2247 = vrot.lane.b32.xlu0 %v1579, 64
      %v2248 = vpop.permute.xlu0 %2247
      %2249 = vrot.lane.b32.xlu0 %v1581, 64
      %v2250 = vpop.permute.xlu0 %2249
      %2251 = vrot.lane.b32.xlu0 %v1584, 64
      %v2252 = vpop.permute.xlu0 %2251
      %2253 = vrot.lane.b32.xlu0 %v1586, 64
      %v2254 = vpop.permute.xlu0 %2253
      %2255 = vrot.lane.b32.xlu0 %v1589, 64
      %v2256 = vpop.permute.xlu0 %2255
      %2257 = vrot.lane.b32.xlu0 %v1591, 64
      %v2258 = vpop.permute.xlu0 %2257
      %2259 = vrot.lane.b32.xlu0 %v1594, 64
      %v2260 = vpop.permute.xlu0 %2259
      %2261 = vrot.lane.b32.xlu0 %v1596, 64
      %v2262 = vpop.permute.xlu0 %2261
      %2263 = vrot.lane.b32.xlu0 %v1599, 64
      %v2264 = vpop.permute.xlu0 %2263
      %2265 = vrot.lane.b32.xlu0 %v1601, 64
      %v2266 = vpop.permute.xlu0 %2265
      %2267 = vrot.lane.b32.xlu0 %v1604, 64
      %v2268 = vpop.permute.xlu0 %2267
      %2269 = vrot.lane.b32.xlu0 %v1606, 64
      %v2270 = vpop.permute.xlu0 %2269
      %2271 = vrot.lane.b32.xlu0 %v1609, 64
      %v2272 = vpop.permute.xlu0 %2271
      %2273 = vrot.lane.b32.xlu0 %v1611, 64
      %v2274 = vpop.permute.xlu0 %2273
      %2275 = vrot.lane.b32.xlu0 %v1614, 64
      %v2276 = vpop.permute.xlu0 %2275
      %2277 = vrot.lane.b32.xlu0 %v1616, 64
      %v2278 = vpop.permute.xlu0 %2277
      %2279 = vrot.lane.b32.xlu0 %v1619, 64
      %v2280 = vpop.permute.xlu0 %2279
      %2281 = vrot.lane.b32.xlu0 %v1621, 64
      %v2282 = vpop.permute.xlu0 %2281
      %2283 = vrot.lane.b32.xlu0 %v1624, 64
      %v2284 = vpop.permute.xlu0 %2283
      %2285 = vrot.lane.b32.xlu0 %v1626, 64
      %v2286 = vpop.permute.xlu0 %2285
      %2287 = vrot.lane.b32.xlu0 %v1629, 64
      %v2288 = vpop.permute.xlu0 %2287
      %2289 = vrot.lane.b32.xlu0 %v1631, 64
      %v2290 = vpop.permute.xlu0 %2289
      %2291 = vrot.lane.b32.xlu0 %v1634, 64
      %v2292 = vpop.permute.xlu0 %2291
      %2293 = vrot.lane.b32.xlu0 %v1636, 64
      %v2294 = vpop.permute.xlu0 %2293
      %2295 = vrot.lane.b32.xlu0 %v1935, 64
      %v2296 = vpop.permute.xlu0 %2295
      %2297 = vrot.lane.b32.xlu0 %v1937, 64
      %v2298 = vpop.permute.xlu0 %2297
      %2299 = vrot.lane.b32.xlu0 %v2236, 64
      %v2300 = vpop.permute.xlu0 %2299
      %2301 = vrot.lane.b32.xlu0 %v2238, 64
      %v2302 = vpop.permute.xlu0 %2301
      %v2335 = vsel %vm1202, %v1277, %v1461
      %v2336 = vsel %vm1202, %v1278, %v1463
      %v2337 = vsel %vm1202, %v1280, %v1465
      %v2338 = vsel %vm1202, %v1281, %v1467
      %v2339 = vsel %vm1202, %v1283, %v1469
      %v2340 = vsel %vm1202, %v1284, %v1471
      %v2341 = vsel %vm1202, %v1286, %v1473
      %v2342 = vsel %vm1202, %v1287, %v1475
      %v2343 = vsel %vm1202, %v1289, %v1477
      %v2344 = vsel %vm1202, %v1290, %v1479
      %v2345 = vsel %vm1202, %v1292, %v1481
      %v2346 = vsel %vm1202, %v1293, %v1483
      %v2347 = vsel %vm1202, %v1295, %v1485
      %v2348 = vsel %vm1202, %v1296, %v1487
      %v2349 = vsel %vm1202, %v1298, %v1489
      %v2350 = vsel %vm1202, %v1299, %v1491
      %v2351 = vsel %vm1202, %v1301, %v1493
      %v2352 = vsel %vm1202, %v1302, %v1495
      %v2353 = vsel %vm1202, %v1304, %v1497
      %v2354 = vsel %vm1202, %v1305, %v1499
      %v2355 = vsel %vm1202, %v1307, %v1501
      %v2356 = vsel %vm1202, %v1308, %v1503
      %v2357 = vsel %vm1202, %v1310, %v1505
      %v2358 = vsel %vm1202, %v1311, %v1507
      %v2359 = vsel %vm1202, %v1313, %v1509
      %v2360 = vsel %vm1202, %v1314, %v1511
      %v2361 = vsel %vm1202, %v1316, %v1513
      %v2362 = vsel %vm1202, %v1317, %v1515
      %v2363 = vsel %vm1202, %v1319, %v1517
      %v2364 = vsel %vm1202, %v1320, %v1519
      %v2365 = vsel %vm1202, %v1322, %v1521
      %v2366 = vsel %vm1202, %v1323, %v1523
      %vm2367 = vcmask 130048
      %v2368 = vsel %vm2367, %v2335, %v1638
      %v2369 = vsel %vm2367, %v2336, %v1640
      %v2370 = vsel %vm2367, %v2337, %v1642
      %v2371 = vsel %vm2367, %v2338, %v1644
      %v2372 = vsel %vm2367, %v2339, %v1646
      %v2373 = vsel %vm2367, %v2340, %v1648
      %v2374 = vsel %vm2367, %v2341, %v1650
      %v2375 = vsel %vm2367, %v2342, %v1652
      %v2376 = vsel %vm2367, %v2343, %v1654
      %v2377 = vsel %vm2367, %v2344, %v1656
      %v2378 = vsel %vm2367, %v2345, %v1658
      %v2379 = vsel %vm2367, %v2346, %v1660
      %v2380 = vsel %vm2367, %v2347, %v1662
      %v2381 = vsel %vm2367, %v2348, %v1664
      %v2382 = vsel %vm2367, %v2349, %v1666
      %v2383 = vsel %vm2367, %v2350, %v1668
      %v2384 = vsel %vm2367, %v2351, %v1670
      %v2385 = vsel %vm2367, %v2352, %v1672
      %v2386 = vsel %vm2367, %v2353, %v1674
      %v2387 = vsel %vm2367, %v2354, %v1676
      %v2388 = vsel %vm2367, %v2355, %v1678
      %v2389 = vsel %vm2367, %v2356, %v1680
      %v2390 = vsel %vm2367, %v2357, %v1682
      %v2391 = vsel %vm2367, %v2358, %v1684
      %v2392 = vsel %vm2367, %v2359, %v1686
      %v2393 = vsel %vm2367, %v2360, %v1688
      %v2394 = vsel %vm2367, %v2361, %v1690
      %v2395 = vsel %vm2367, %v2362, %v1692
      %v2396 = vsel %vm2367, %v2363, %v1694
      %v2397 = vsel %vm2367, %v2364, %v1696
      %v2398 = vsel %vm2367, %v2365, %v1698
      %v2399 = vsel %vm2367, %v2366, %v1700
      %vm2400 = vcmask 195584
      %v2401 = vsel %vm2400, %v2368, %v1736
      %v2402 = vsel %vm2400, %v2369, %v1738
      %v2403 = vsel %vm2400, %v2370, %v1740
      %v2404 = vsel %vm2400, %v2371, %v1742
      %v2405 = vsel %vm2400, %v2372, %v1744
      %v2406 = vsel %vm2400, %v2373, %v1746
      %v2407 = vsel %vm2400, %v2374, %v1748
      %v2408 = vsel %vm2400, %v2375, %v1750
      %v2409 = vsel %vm2400, %v2376, %v1752
      %v2410 = vsel %vm2400, %v2377, %v1754
      %v2411 = vsel %vm2400, %v2378, %v1756
      %v2412 = vsel %vm2400, %v2379, %v1758
      %v2413 = vsel %vm2400, %v2380, %v1760
      %v2414 = vsel %vm2400, %v2381, %v1762
      %v2415 = vsel %vm2400, %v2382, %v1764
      %v2416 = vsel %vm2400, %v2383, %v1766
      %v2417 = vsel %vm2400, %v2384, %v1768
      %v2418 = vsel %vm2400, %v2385, %v1770
      %v2419 = vsel %vm2400, %v2386, %v1772
      %v2420 = vsel %vm2400, %v2387, %v1774
      %v2421 = vsel %vm2400, %v2388, %v1776
      %v2422 = vsel %vm2400, %v2389, %v1778
      %v2423 = vsel %vm2400, %v2390, %v1780
      %v2424 = vsel %vm2400, %v2391, %v1782
      %v2425 = vsel %vm2400, %v2392, %v1784
      %v2426 = vsel %vm2400, %v2393, %v1786
      %v2427 = vsel %vm2400, %v2394, %v1788
      %v2428 = vsel %vm2400, %v2395, %v1790
      %v2429 = vsel %vm2400, %v2396, %v1792
      %v2430 = vsel %vm2400, %v2397, %v1794
      %v2431 = vsel %vm2400, %v2398, %v1796
      %v2432 = vsel %vm2400, %v2399, %v1798
      %vm2433 = vcmask 261120
      %v2434 = vsel %vm2433, %v2401, %v1838
      %v2435 = vsel %vm2433, %v2402, %v1840
      %v2436 = vsel %vm2433, %v2403, %v1842
      %v2437 = vsel %vm2433, %v2404, %v1844
      %v2438 = vsel %vm2433, %v2405, %v1846
      %v2439 = vsel %vm2433, %v2406, %v1848
      %v2440 = vsel %vm2433, %v2407, %v1850
      %v2441 = vsel %vm2433, %v2408, %v1852
      %v2442 = vsel %vm2433, %v2409, %v1854
      %v2443 = vsel %vm2433, %v2410, %v1856
      %v2444 = vsel %vm2433, %v2411, %v1858
      %v2445 = vsel %vm2433, %v2412, %v1860
      %v2446 = vsel %vm2433, %v2413, %v1862
      %v2447 = vsel %vm2433, %v2414, %v1864
      %v2448 = vsel %vm2433, %v2415, %v1866
      %v2449 = vsel %vm2433, %v2416, %v1868
      %v2450 = vsel %vm2433, %v2417, %v1870
      %v2451 = vsel %vm2433, %v2418, %v1872
      %v2452 = vsel %vm2433, %v2419, %v1874
      %v2453 = vsel %vm2433, %v2420, %v1876
      %v2454 = vsel %vm2433, %v2421, %v1878
      %v2455 = vsel %vm2433, %v2422, %v1880
      %v2456 = vsel %vm2433, %v2423, %v1882
      %v2457 = vsel %vm2433, %v2424, %v1884
      %v2458 = vsel %vm2433, %v2425, %v1886
      %v2459 = vsel %vm2433, %v2426, %v1888
      %v2460 = vsel %vm2433, %v2427, %v1890
      %v2461 = vsel %vm2433, %v2428, %v1892
      %v2462 = vsel %vm2433, %v2429, %v1894
      %v2463 = vsel %vm2433, %v2430, %v1896
      %v2464 = vsel %vm2433, %v2431, %v1898
      %v2465 = vsel %vm2433, %v2432, %v1900
      %vm2466 = vcmask 326656
      %v2467 = vsel %vm2466, %v2434, %v1939
      %v2468 = vsel %vm2466, %v2435, %v1941
      %v2469 = vsel %vm2466, %v2436, %v1943
      %v2470 = vsel %vm2466, %v2437, %v1945
      %v2471 = vsel %vm2466, %v2438, %v1947
      %v2472 = vsel %vm2466, %v2439, %v1949
      %v2473 = vsel %vm2466, %v2440, %v1951
      %v2474 = vsel %vm2466, %v2441, %v1953
      %v2475 = vsel %vm2466, %v2442, %v1955
      %v2476 = vsel %vm2466, %v2443, %v1957
      %v2477 = vsel %vm2466, %v2444, %v1959
      %v2478 = vsel %vm2466, %v2445, %v1961
      %v2479 = vsel %vm2466, %v2446, %v1963
      %v2480 = vsel %vm2466, %v2447, %v1965
      %v2481 = vsel %vm2466, %v2448, %v1967
      %v2482 = vsel %vm2466, %v2449, %v1969
      %v2483 = vsel %vm2466, %v2450, %v1971
      %v2484 = vsel %vm2466, %v2451, %v1973
      %v2485 = vsel %vm2466, %v2452, %v1975
      %v2486 = vsel %vm2466, %v2453, %v1977
      %v2487 = vsel %vm2466, %v2454, %v1979
      %v2488 = vsel %vm2466, %v2455, %v1981
      %v2489 = vsel %vm2466, %v2456, %v1983
      %v2490 = vsel %vm2466, %v2457, %v1985
      %v2491 = vsel %vm2466, %v2458, %v1987
      %v2492 = vsel %vm2466, %v2459, %v1989
      %v2493 = vsel %vm2466, %v2460, %v1991
      %v2494 = vsel %vm2466, %v2461, %v1993
      %v2495 = vsel %vm2466, %v2462, %v1995
      %v2496 = vsel %vm2466, %v2463, %v1997
      %v2497 = vsel %vm2466, %v2464, %v1999
      %v2498 = vsel %vm2466, %v2465, %v2001
      %vm2499 = vcmask 392192
      %v2500 = vsel %vm2499, %v2467, %v2037
      %v2501 = vsel %vm2499, %v2468, %v2039
      %v2502 = vsel %vm2499, %v2469, %v2041
      %v2503 = vsel %vm2499, %v2470, %v2043
      %v2504 = vsel %vm2499, %v2471, %v2045
      %v2505 = vsel %vm2499, %v2472, %v2047
      %v2506 = vsel %vm2499, %v2473, %v2049
      %v2507 = vsel %vm2499, %v2474, %v2051
      %v2508 = vsel %vm2499, %v2475, %v2053
      %v2509 = vsel %vm2499, %v2476, %v2055
      %v2510 = vsel %vm2499, %v2477, %v2057
      %v2511 = vsel %vm2499, %v2478, %v2059
      %v2512 = vsel %vm2499, %v2479, %v2061
      %v2513 = vsel %vm2499, %v2480, %v2063
      %v2514 = vsel %vm2499, %v2481, %v2065
      %v2515 = vsel %vm2499, %v2482, %v2067
      %v2516 = vsel %vm2499, %v2483, %v2069
      %v2517 = vsel %vm2499, %v2484, %v2071
      %v2518 = vsel %vm2499, %v2485, %v2073
      %v2519 = vsel %vm2499, %v2486, %v2075
      %v2520 = vsel %vm2499, %v2487, %v2077
      %v2521 = vsel %vm2499, %v2488, %v2079
      %v2522 = vsel %vm2499, %v2489, %v2081
      %v2523 = vsel %vm2499, %v2490, %v2083
      %v2524 = vsel %vm2499, %v2491, %v2085
      %v2525 = vsel %vm2499, %v2492, %v2087
      %v2526 = vsel %vm2499, %v2493, %v2089
      %v2527 = vsel %vm2499, %v2494, %v2091
      %v2528 = vsel %vm2499, %v2495, %v2093
      %v2529 = vsel %vm2499, %v2496, %v2095
      %v2530 = vsel %vm2499, %v2497, %v2097
      %v2531 = vsel %vm2499, %v2498, %v2099
      %vm2532 = vcmask 457728
      %v2533 = vsel %vm2532, %v2500, %v2139
      %v2534 = vsel %vm2532, %v2501, %v2141
      %v2535 = vsel %vm2532, %v2502, %v2143
      %v2536 = vsel %vm2532, %v2503, %v2145
      %v2537 = vsel %vm2532, %v2504, %v2147
      %v2538 = vsel %vm2532, %v2505, %v2149
      %v2539 = vsel %vm2532, %v2506, %v2151
      %v2540 = vsel %vm2532, %v2507, %v2153
      %v2541 = vsel %vm2532, %v2508, %v2155
      %v2542 = vsel %vm2532, %v2509, %v2157
      %v2543 = vsel %vm2532, %v2510, %v2159
      %v2544 = vsel %vm2532, %v2511, %v2161
      %v2545 = vsel %vm2532, %v2512, %v2163
      %v2546 = vsel %vm2532, %v2513, %v2165
      %v2547 = vsel %vm2532, %v2514, %v2167
      %v2548 = vsel %vm2532, %v2515, %v2169
      %v2549 = vsel %vm2532, %v2516, %v2171
      %v2550 = vsel %vm2532, %v2517, %v2173
      %v2551 = vsel %vm2532, %v2518, %v2175
      %v2552 = vsel %vm2532, %v2519, %v2177
      %v2553 = vsel %vm2532, %v2520, %v2179
      %v2554 = vsel %vm2532, %v2521, %v2181
      %v2555 = vsel %vm2532, %v2522, %v2183
      %v2556 = vsel %vm2532, %v2523, %v2185
      %v2557 = vsel %vm2532, %v2524, %v2187
      %v2558 = vsel %vm2532, %v2525, %v2189
      %v2559 = vsel %vm2532, %v2526, %v2191
      %v2560 = vsel %vm2532, %v2527, %v2193
      %v2561 = vsel %vm2532, %v2528, %v2195
      %v2562 = vsel %vm2532, %v2529, %v2197
      %v2563 = vsel %vm2532, %v2530, %v2199
      %v2564 = vsel %vm2532, %v2531, %v2201
      %vm2565 = vcmask 523264
      %v2566 = vsel %vm2565, %v2533, %v2240
      %v2567 = vsel %vm2565, %v2534, %v2242
      %v2568 = vsel %vm2565, %v2535, %v2244
      %v2569 = vsel %vm2565, %v2536, %v2246
      %v2570 = vsel %vm2565, %v2537, %v2248
      %v2571 = vsel %vm2565, %v2538, %v2250
      %v2572 = vsel %vm2565, %v2539, %v2252
      %v2573 = vsel %vm2565, %v2540, %v2254
      %v2574 = vsel %vm2565, %v2541, %v2256
      %v2575 = vsel %vm2565, %v2542, %v2258
      %v2576 = vsel %vm2565, %v2543, %v2260
      %v2577 = vsel %vm2565, %v2544, %v2262
      %v2578 = vsel %vm2565, %v2545, %v2264
      %v2579 = vsel %vm2565, %v2546, %v2266
      %v2580 = vsel %vm2565, %v2547, %v2268
      %v2581 = vsel %vm2565, %v2548, %v2270
      %v2582 = vsel %vm2565, %v2549, %v2272
      %v2583 = vsel %vm2565, %v2550, %v2274
      %v2584 = vsel %vm2565, %v2551, %v2276
      %v2585 = vsel %vm2565, %v2552, %v2278
      %v2586 = vsel %vm2565, %v2553, %v2280
      %v2587 = vsel %vm2565, %v2554, %v2282
      %v2588 = vsel %vm2565, %v2555, %v2284
      %v2589 = vsel %vm2565, %v2556, %v2286
      %v2590 = vsel %vm2565, %v2557, %v2288
      %v2591 = vsel %vm2565, %v2558, %v2290
      %v2592 = vsel %vm2565, %v2559, %v2292
      %v2593 = vsel %vm2565, %v2560, %v2294
      %v2594 = vsel %vm2565, %v2561, %v2296
      %v2595 = vsel %vm2565, %v2562, %v2298
      %v2596 = vsel %vm2565, %v2563, %v2300
      %v2597 = vsel %vm2565, %v2564, %v2302
      %v2598 = vld [vmem:[%s3] sm:$0xff]
      %v2599 = vld [vmem:[%s3 + $0x8] sm:$0xff]
      %v2600 = vld [vmem:[%s3 + $0x10] sm:$0xff]
      %v2601 = vld [vmem:[%s3 + $0x18] sm:$0xff]
      %v2602 = vld [vmem:[%s3 + $0x20] sm:$0xff]
      %v2603 = vld [vmem:[%s3 + $0x28] sm:$0xff]
      %v2604 = vld [vmem:[%s3 + $0x30] sm:$0xff]
      %v2605 = vld [vmem:[%s3 + $0x38] sm:$0xff]
      %v2606 = vld [vmem:[%s3 + $0x40] sm:$0xff]
      %v2607 = vld [vmem:[%s4] sm:$0x1]
      %v2609 = vperm.slane %v2607, 0
      %vm2611 = vcmask 588800
      %v2613 = vsel %vm2611, %v2566, 0
      %v2616 = vsel %vm2611, %v2567, 0
      %v2619 = vsel %vm2611, %v2568, 0
      %v2622 = vsel %vm2611, %v2569, 0
      %v2625 = vsel %vm2611, %v2570, 0
      %v2628 = vsel %vm2611, %v2571, 0
      %v2631 = vsel %vm2611, %v2572, 0
      %v2634 = vsel %vm2611, %v2573, 0
      %v2637 = vsel %vm2611, %v2574, 0
      %v2640 = vsel %vm2611, %v2575, 0
      %v2643 = vsel %vm2611, %v2576, 0
      %v2646 = vsel %vm2611, %v2577, 0
      %v2649 = vsel %vm2611, %v2578, 0
      %v2652 = vsel %vm2611, %v2579, 0
      %v2655 = vsel %vm2611, %v2580, 0
      %v2658 = vsel %vm2611, %v2581, 0
      %v2661 = vsel %vm2611, %v2582, 0
      %v2664 = vsel %vm2611, %v2583, 0
      %v2667 = vsel %vm2611, %v2584, 0
      %v2670 = vsel %vm2611, %v2585, 0
      %v2673 = vsel %vm2611, %v2586, 0
      %v2676 = vsel %vm2611, %v2587, 0
      %v2679 = vsel %vm2611, %v2588, 0
      %v2682 = vsel %vm2611, %v2589, 0
      %v2685 = vsel %vm2611, %v2590, 0
      %v2688 = vsel %vm2611, %v2591, 0
      %v2691 = vsel %vm2611, %v2592, 0
      %v2694 = vsel %vm2611, %v2593, 0
      %v2697 = vsel %vm2611, %v2594, 0
      %v2700 = vsel %vm2611, %v2595, 0
      %v2703 = vsel %vm2611, %v2596, 0
      %v2706 = vsel %vm2611, %v2597, 0
      %2708 = vmatpush.msra.mxu0 0.0
      %2709 = vmatpush.msra.mxu0 0.0
      %2710 = vmatpush.msra.mxu0 0.0
      %2711 = vmatpush.msra.mxu0 0.0
      %2712 = vmatpush.msra.mxu0 0.0
      %2713 = vmatpush.msra.mxu0 0.0
      %2714 = vmatpush.msra.mxu0 0.0
      %2715 = vmatpush.msra.mxu0 %v2606
      %2716 = vmatpush.msra.mxu0 %v2605
      %2717 = vmatpush.msra.mxu0 %v2604
      %2718 = vmatpush.msra.mxu0 %v2603
      %2719 = vmatpush.msra.mxu0 %v2602
      %2720 = vmatpush.msra.mxu0 %v2601
      %2721 = vmatpush.msra.mxu0 %v2600
      %2722 = vmatpush.msra.mxu0 %v2599
      %2723 = vmatpush.msra.mxu0 %v2598
      %2724 = vmatmul.f32.gmra.mxu0 %v2613
      %v2725 = vpop.f32.mrf.mxu0
      %v2726 = vadd.f32 %v2609, %v2725
      %2727 = vmatmul.f32.gmra.mxu0 %v2616
      %v2728 = vpop.f32.mrf.mxu0
      %v2729 = vadd.f32 %v2609, %v2728
      %2730 = vmatmul.f32.gmra.mxu0 %v2619
      %v2731 = vpop.f32.mrf.mxu0
      %v2732 = vadd.f32 %v2609, %v2731
      %2733 = vmatmul.f32.gmra.mxu0 %v2622
      %v2734 = vpop.f32.mrf.mxu0
      %v2735 = vadd.f32 %v2609, %v2734
      %2736 = vmatmul.f32.gmra.mxu0 %v2625
      %v2737 = vpop.f32.mrf.mxu0
      %v2738 = vadd.f32 %v2609, %v2737
      %2739 = vmatmul.f32.gmra.mxu0 %v2628
      %v2740 = vpop.f32.mrf.mxu0
      %v2741 = vadd.f32 %v2609, %v2740
      %2742 = vmatmul.f32.gmra.mxu0 %v2631
      %v2743 = vpop.f32.mrf.mxu0
      %v2744 = vadd.f32 %v2609, %v2743
      %2745 = vmatmul.f32.gmra.mxu0 %v2634
      %v2746 = vpop.f32.mrf.mxu0
      %v2747 = vadd.f32 %v2609, %v2746
      %2748 = vmatmul.f32.gmra.mxu0 %v2637
      %v2749 = vpop.f32.mrf.mxu0
      %v2750 = vadd.f32 %v2609, %v2749
      %2751 = vmatmul.f32.gmra.mxu0 %v2640
      %v2752 = vpop.f32.mrf.mxu0
      %v2753 = vadd.f32 %v2609, %v2752
      %2754 = vmatmul.f32.gmra.mxu0 %v2643
      %v2755 = vpop.f32.mrf.mxu0
      %v2756 = vadd.f32 %v2609, %v2755
      %2757 = vmatmul.f32.gmra.mxu0 %v2646
      %v2758 = vpop.f32.mrf.mxu0
      %v2759 = vadd.f32 %v2609, %v2758
      %2760 = vmatmul.f32.gmra.mxu0 %v2649
      %v2761 = vpop.f32.mrf.mxu0
      %v2762 = vadd.f32 %v2609, %v2761
      %2763 = vmatmul.f32.gmra.mxu0 %v2652
      %v2764 = vpop.f32.mrf.mxu0
      %v2765 = vadd.f32 %v2609, %v2764
      %2766 = vmatmul.f32.gmra.mxu0 %v2655
      %v2767 = vpop.f32.mrf.mxu0
      %v2768 = vadd.f32 %v2609, %v2767
      %2769 = vmatmul.f32.gmra.mxu0 %v2658
      %v2770 = vpop.f32.mrf.mxu0
      %v2771 = vadd.f32 %v2609, %v2770
      %2772 = vmatmul.f32.gmra.mxu0 %v2661
      %v2773 = vpop.f32.mrf.mxu0
      %v2774 = vadd.f32 %v2609, %v2773
      %2775 = vmatmul.f32.gmra.mxu0 %v2664
      %v2776 = vpop.f32.mrf.mxu0
      %v2777 = vadd.f32 %v2609, %v2776
      %2778 = vmatmul.f32.gmra.mxu0 %v2667
      %v2779 = vpop.f32.mrf.mxu0
      %v2780 = vadd.f32 %v2609, %v2779
      %2781 = vmatmul.f32.gmra.mxu0 %v2670
      %v2782 = vpop.f32.mrf.mxu0
      %v2783 = vadd.f32 %v2609, %v2782
      %2784 = vmatmul.f32.gmra.mxu0 %v2673
      %v2785 = vpop.f32.mrf.mxu0
      %v2786 = vadd.f32 %v2609, %v2785
      %2787 = vmatmul.f32.gmra.mxu0 %v2676
      %v2788 = vpop.f32.mrf.mxu0
      %v2789 = vadd.f32 %v2609, %v2788
      %2790 = vmatmul.f32.gmra.mxu0 %v2679
      %v2791 = vpop.f32.mrf.mxu0
      %v2792 = vadd.f32 %v2609, %v2791
      %2793 = vmatmul.f32.gmra.mxu0 %v2682
      %v2794 = vpop.f32.mrf.mxu0
      %v2795 = vadd.f32 %v2609, %v2794
      %2796 = vmatmul.f32.gmra.mxu0 %v2685
      %v2797 = vpop.f32.mrf.mxu0
      %v2798 = vadd.f32 %v2609, %v2797
      %2799 = vmatmul.f32.gmra.mxu0 %v2688
      %v2800 = vpop.f32.mrf.mxu0
      %v2801 = vadd.f32 %v2609, %v2800
      %2802 = vmatmul.f32.gmra.mxu0 %v2691
      %v2803 = vpop.f32.mrf.mxu0
      %v2804 = vadd.f32 %v2609, %v2803
      %2805 = vmatmul.f32.gmra.mxu0 %v2694
      %v2806 = vpop.f32.mrf.mxu0
      %v2807 = vadd.f32 %v2609, %v2806
      %2808 = vmatmul.f32.gmra.mxu0 %v2697
      %v2809 = vpop.f32.mrf.mxu0
      %v2810 = vadd.f32 %v2609, %v2809
      %2811 = vmatmul.f32.gmra.mxu0 %v2700
      %v2812 = vpop.f32.mrf.mxu0
      %v2813 = vadd.f32 %v2609, %v2812
      %2814 = vmatmul.f32.gmra.mxu0 %v2703
      %v2815 = vpop.f32.mrf.mxu0
      %v2816 = vadd.f32 %v2609, %v2815
      %2817 = vmatmul.f32.gmra.mxu0 %v2706
      %v2818 = vpop.f32.mrf.mxu0
      %v2819 = vadd.f32 %v2609, %v2818
      %2820 = vdwg.mxu0
      %v2821 = vmul.f32 %v2726, 1.702
      %v2822 = vmul.f32 %v2729, 1.702
      %v2823 = vmul.f32 %v2732, 1.702
      %v2824 = vmul.f32 %v2735, 1.702
      %v2825 = vmul.f32 %v2738, 1.702
      %v2826 = vmul.f32 %v2741, 1.702
      %v2827 = vmul.f32 %v2744, 1.702
      %v2828 = vmul.f32 %v2747, 1.702
      %v2829 = vmul.f32 %v2750, 1.702
      %v2830 = vmul.f32 %v2753, 1.702
      %v2831 = vmul.f32 %v2756, 1.702
      %v2832 = vmul.f32 %v2759, 1.702
      %v2833 = vmul.f32 %v2762, 1.702
      %v2834 = vmul.f32 %v2765, 1.702
      %v2835 = vmul.f32 %v2768, 1.702
      %v2836 = vmul.f32 %v2771, 1.702
      %v2837 = vmul.f32 %v2774, 1.702
      %v2838 = vmul.f32 %v2777, 1.702
      %v2839 = vmul.f32 %v2780, 1.702
      %v2840 = vmul.f32 %v2783, 1.702
      %v2841 = vmul.f32 %v2786, 1.702
      %v2842 = vmul.f32 %v2789, 1.702
      %v2843 = vmul.f32 %v2792, 1.702
      %v2844 = vmul.f32 %v2795, 1.702
      %v2845 = vmul.f32 %v2798, 1.702
      %v2846 = vmul.f32 %v2801, 1.702
      %v2847 = vmul.f32 %v2804, 1.702
      %v2848 = vmul.f32 %v2807, 1.702
      %v2849 = vmul.f32 %v2810, 1.702
      %v2850 = vmul.f32 %v2813, 1.702
      %v2851 = vmul.f32 %v2816, 1.702
      %v2852 = vmul.f32 %v2819, 1.702
      %v2853 = vxor.u32 %v2821, 2147483648
      %v2854 = vxor.u32 %v2822, 2147483648
      %v2855 = vxor.u32 %v2823, 2147483648
      %v2856 = vxor.u32 %v2824, 2147483648
      %v2857 = vxor.u32 %v2825, 2147483648
      %v2858 = vxor.u32 %v2826, 2147483648
      %v2859 = vxor.u32 %v2827, 2147483648
      %v2860 = vxor.u32 %v2828, 2147483648
      %v2861 = vxor.u32 %v2829, 2147483648
      %v2862 = vxor.u32 %v2830, 2147483648
      %v2863 = vxor.u32 %v2831, 2147483648
      %v2864 = vxor.u32 %v2832, 2147483648
      %v2865 = vxor.u32 %v2833, 2147483648
      %v2866 = vxor.u32 %v2834, 2147483648
      %v2867 = vxor.u32 %v2835, 2147483648
      %v2868 = vxor.u32 %v2836, 2147483648
      %v2869 = vxor.u32 %v2837, 2147483648
      %v2870 = vxor.u32 %v2838, 2147483648
      %v2871 = vxor.u32 %v2839, 2147483648
      %v2872 = vxor.u32 %v2840, 2147483648
      %v2873 = vxor.u32 %v2841, 2147483648
      %v2874 = vxor.u32 %v2842, 2147483648
      %v2875 = vxor.u32 %v2843, 2147483648
      %v2876 = vxor.u32 %v2844, 2147483648
      %v2877 = vxor.u32 %v2845, 2147483648
      %v2878 = vxor.u32 %v2846, 2147483648
      %v2879 = vxor.u32 %v2847, 2147483648
      %v2880 = vxor.u32 %v2848, 2147483648
      %v2881 = vxor.u32 %v2849, 2147483648
      %v2882 = vxor.u32 %v2850, 2147483648
      %v2883 = vxor.u32 %v2851, 2147483648
      %v2884 = vxor.u32 %v2852, 2147483648
      %v2885 = vmul.f32 %v2853, 1.442695
      %v2886 = vpow.pop %v2885
      %v2887 = vmul.f32 %v2854, 1.442695
      %v2888 = vpow.pop %v2887
      %v2889 = vmul.f32 %v2855, 1.442695
      %v2890 = vpow.pop %v2889
      %v2891 = vmul.f32 %v2856, 1.442695
      %v2892 = vpow.pop %v2891
      %v2893 = vmul.f32 %v2857, 1.442695
      %v2894 = vpow.pop %v2893
      %v2895 = vmul.f32 %v2858, 1.442695
      %v2896 = vpow.pop %v2895
      %v2897 = vmul.f32 %v2859, 1.442695
      %v2898 = vpow.pop %v2897
      %v2899 = vmul.f32 %v2860, 1.442695
      %v2900 = vpow.pop %v2899
      %v2901 = vmul.f32 %v2861, 1.442695
      %v2902 = vpow.pop %v2901
      %v2903 = vmul.f32 %v2862, 1.442695
      %v2904 = vpow.pop %v2903
      %v2905 = vmul.f32 %v2863, 1.442695
      %v2906 = vpow.pop %v2905
      %v2907 = vmul.f32 %v2864, 1.442695
      %v2908 = vpow.pop %v2907
      %v2909 = vmul.f32 %v2865, 1.442695
      %v2910 = vpow.pop %v2909
      %v2911 = vmul.f32 %v2866, 1.442695
      %v2912 = vpow.pop %v2911
      %v2913 = vmul.f32 %v2867, 1.442695
      %v2914 = vpow.pop %v2913
      %v2915 = vmul.f32 %v2868, 1.442695
      %v2916 = vpow.pop %v2915
      %v2917 = vmul.f32 %v2869, 1.442695
      %v2918 = vpow.pop %v2917
      %v2919 = vmul.f32 %v2870, 1.442695
      %v2920 = vpow.pop %v2919
      %v2921 = vmul.f32 %v2871, 1.442695
      %v2922 = vpow.pop %v2921
      %v2923 = vmul.f32 %v2872, 1.442695
      %v2924 = vpow.pop %v2923
      %v2925 = vmul.f32 %v2873, 1.442695
      %v2926 = vpow.pop %v2925
      %v2927 = vmul.f32 %v2874, 1.442695
      %v2928 = vpow.pop %v2927
      %v2929 = vmul.f32 %v2875, 1.442695
      %v2930 = vpow.pop %v2929
      %v2931 = vmul.f32 %v2876, 1.442695
      %v2932 = vpow.pop %v2931
      %v2933 = vmul.f32 %v2877, 1.442695
      %v2934 = vpow.pop %v2933
      %v2935 = vmul.f32 %v2878, 1.442695
      %v2936 = vpow.pop %v2935
      %v2937 = vmul.f32 %v2879, 1.442695
      %v2938 = vpow.pop %v2937
      %v2939 = vmul.f32 %v2880, 1.442695
      %v2940 = vpow.pop %v2939
      %v2941 = vmul.f32 %v2881, 1.442695
      %v2942 = vpow.pop %v2941
      %v2943 = vmul.f32 %v2882, 1.442695
      %v2944 = vpow.pop %v2943
      %v2945 = vmul.f32 %v2883, 1.442695
      %v2946 = vpow.pop %v2945
      %v2947 = vmul.f32 %v2884, 1.442695
      %v2948 = vpow.pop %v2947
      %v2949 = vadd.f32 %v2886, 1.0
      %v2950 = vadd.f32 %v2888, 1.0
      %v2951 = vadd.f32 %v2890, 1.0
      %v2952 = vadd.f32 %v2892, 1.0
      %v2953 = vadd.f32 %v2894, 1.0
      %v2954 = vadd.f32 %v2896, 1.0
      %v2955 = vadd.f32 %v2898, 1.0
      %v2956 = vadd.f32 %v2900, 1.0
      %v2957 = vadd.f32 %v2902, 1.0
      %v2958 = vadd.f32 %v2904, 1.0
      %v2959 = vadd.f32 %v2906, 1.0
      %v2960 = vadd.f32 %v2908, 1.0
      %v2961 = vadd.f32 %v2910, 1.0
      %v2962 = vadd.f32 %v2912, 1.0
      %v2963 = vadd.f32 %v2914, 1.0
      %v2964 = vadd.f32 %v2916, 1.0
      %v2965 = vadd.f32 %v2918, 1.0
      %v2966 = vadd.f32 %v2920, 1.0
      %v2967 = vadd.f32 %v2922, 1.0
      %v2968 = vadd.f32 %v2924, 1.0
      %v2969 = vadd.f32 %v2926, 1.0
      %v2970 = vadd.f32 %v2928, 1.0
      %v2971 = vadd.f32 %v2930, 1.0
      %v2972 = vadd.f32 %v2932, 1.0
      %v2973 = vadd.f32 %v2934, 1.0
      %v2974 = vadd.f32 %v2936, 1.0
      %v2975 = vadd.f32 %v2938, 1.0
      %v2976 = vadd.f32 %v2940, 1.0
      %v2977 = vadd.f32 %v2942, 1.0
      %v2978 = vadd.f32 %v2944, 1.0
      %v2979 = vadd.f32 %v2946, 1.0
      %v2980 = vadd.f32 %v2948, 1.0
      %v2981 = vrcp.pop %v2949
      %v2982 = vmul.f32 %v2949, %v2981
      %v2983 = vsub.f32 1.0, %v2982
      %v2984 = vmul.f32 %v2981, %v2983
      %v2985 = vadd.f32 %v2981, %v2984
      %vm2986 = vweird.f32 %v2949
      %vm2987 = vweird.f32 %v2981
      %vm2988 = vmor %vm2986, %vm2987
      %v2989 = vsel %vm2988, %v2981, %v2985
      %v2990 = vand.u32 2147483647, %v2949
      %vm2991 = vcmp.eq.f32.partialorder %v2990, 8.507059e+37
      %v2992 = vand.u32 %v2949, 2147483648
      %v2993 = vor.u32 1.1754944e-38, %v2992
      %v2994 = vsel %vm2991, %v2993, %v2989
      %v2995 = vmul.f32 1.0, %v2994
      %v2996 = vrcp.pop %v2950
      %v2997 = vmul.f32 %v2950, %v2996
      %v2998 = vsub.f32 1.0, %v2997
      %v2999 = vmul.f32 %v2996, %v2998
      %v3000 = vadd.f32 %v2996, %v2999
      %vm3001 = vweird.f32 %v2950
      %vm3002 = vweird.f32 %v2996
      %vm3003 = vmor %vm3001, %vm3002
      %v3004 = vsel %vm3003, %v2996, %v3000
      %v3005 = vand.u32 2147483647, %v2950
      %vm3006 = vcmp.eq.f32.partialorder %v3005, 8.507059e+37
      %v3007 = vand.u32 %v2950, 2147483648
      %v3008 = vor.u32 1.1754944e-38, %v3007
      %v3009 = vsel %vm3006, %v3008, %v3004
      %v3010 = vmul.f32 1.0, %v3009
      %v3011 = vrcp.pop %v2951
      %v3012 = vmul.f32 %v2951, %v3011
      %v3013 = vsub.f32 1.0, %v3012
      %v3014 = vmul.f32 %v3011, %v3013
      %v3015 = vadd.f32 %v3011, %v3014
      %vm3016 = vweird.f32 %v2951
      %vm3017 = vweird.f32 %v3011
      %vm3018 = vmor %vm3016, %vm3017
      %v3019 = vsel %vm3018, %v3011, %v3015
      %v3020 = vand.u32 2147483647, %v2951
      %vm3021 = vcmp.eq.f32.partialorder %v3020, 8.507059e+37
      %v3022 = vand.u32 %v2951, 2147483648
      %v3023 = vor.u32 1.1754944e-38, %v3022
      %v3024 = vsel %vm3021, %v3023, %v3019
      %v3025 = vmul.f32 1.0, %v3024
      %v3026 = vrcp.pop %v2952
      %v3027 = vmul.f32 %v2952, %v3026
      %v3028 = vsub.f32 1.0, %v3027
      %v3029 = vmul.f32 %v3026, %v3028
      %v3030 = vadd.f32 %v3026, %v3029
      %vm3031 = vweird.f32 %v2952
      %vm3032 = vweird.f32 %v3026
      %vm3033 = vmor %vm3031, %vm3032
      %v3034 = vsel %vm3033, %v3026, %v3030
      %v3035 = vand.u32 2147483647, %v2952
      %vm3036 = vcmp.eq.f32.partialorder %v3035, 8.507059e+37
      %v3037 = vand.u32 %v2952, 2147483648
      %v3038 = vor.u32 1.1754944e-38, %v3037
      %v3039 = vsel %vm3036, %v3038, %v3034
      %v3040 = vmul.f32 1.0, %v3039
      %v3041 = vrcp.pop %v2953
      %v3042 = vmul.f32 %v2953, %v3041
      %v3043 = vsub.f32 1.0, %v3042
      %v3044 = vmul.f32 %v3041, %v3043
      %v3045 = vadd.f32 %v3041, %v3044
      %vm3046 = vweird.f32 %v2953
      %vm3047 = vweird.f32 %v3041
      %vm3048 = vmor %vm3046, %vm3047
      %v3049 = vsel %vm3048, %v3041, %v3045
      %v3050 = vand.u32 2147483647, %v2953
      %vm3051 = vcmp.eq.f32.partialorder %v3050, 8.507059e+37
      %v3052 = vand.u32 %v2953, 2147483648
      %v3053 = vor.u32 1.1754944e-38, %v3052
      %v3054 = vsel %vm3051, %v3053, %v3049
      %v3055 = vmul.f32 1.0, %v3054
      %v3056 = vrcp.pop %v2954
      %v3057 = vmul.f32 %v2954, %v3056
      %v3058 = vsub.f32 1.0, %v3057
      %v3059 = vmul.f32 %v3056, %v3058
      %v3060 = vadd.f32 %v3056, %v3059
      %vm3061 = vweird.f32 %v2954
      %vm3062 = vweird.f32 %v3056
      %vm3063 = vmor %vm3061, %vm3062
      %v3064 = vsel %vm3063, %v3056, %v3060
      %v3065 = vand.u32 2147483647, %v2954
      %vm3066 = vcmp.eq.f32.partialorder %v3065, 8.507059e+37
      %v3067 = vand.u32 %v2954, 2147483648
      %v3068 = vor.u32 1.1754944e-38, %v3067
      %v3069 = vsel %vm3066, %v3068, %v3064
      %v3070 = vmul.f32 1.0, %v3069
      %v3071 = vrcp.pop %v2955
      %v3072 = vmul.f32 %v2955, %v3071
      %v3073 = vsub.f32 1.0, %v3072
      %v3074 = vmul.f32 %v3071, %v3073
      %v3075 = vadd.f32 %v3071, %v3074
      %vm3076 = vweird.f32 %v2955
      %vm3077 = vweird.f32 %v3071
      %vm3078 = vmor %vm3076, %vm3077
      %v3079 = vsel %vm3078, %v3071, %v3075
      %v3080 = vand.u32 2147483647, %v2955
      %vm3081 = vcmp.eq.f32.partialorder %v3080, 8.507059e+37
      %v3082 = vand.u32 %v2955, 2147483648
      %v3083 = vor.u32 1.1754944e-38, %v3082
      %v3084 = vsel %vm3081, %v3083, %v3079
      %v3085 = vmul.f32 1.0, %v3084
      %v3086 = vrcp.pop %v2956
      %v3087 = vmul.f32 %v2956, %v3086
      %v3088 = vsub.f32 1.0, %v3087
      %v3089 = vmul.f32 %v3086, %v3088
      %v3090 = vadd.f32 %v3086, %v3089
      %vm3091 = vweird.f32 %v2956
      %vm3092 = vweird.f32 %v3086
      %vm3093 = vmor %vm3091, %vm3092
      %v3094 = vsel %vm3093, %v3086, %v3090
      %v3095 = vand.u32 2147483647, %v2956
      %vm3096 = vcmp.eq.f32.partialorder %v3095, 8.507059e+37
      %v3097 = vand.u32 %v2956, 2147483648
      %v3098 = vor.u32 1.1754944e-38, %v3097
      %v3099 = vsel %vm3096, %v3098, %v3094
      %v3100 = vmul.f32 1.0, %v3099
      %v3101 = vrcp.pop %v2957
      %v3102 = vmul.f32 %v2957, %v3101
      %v3103 = vsub.f32 1.0, %v3102
      %v3104 = vmul.f32 %v3101, %v3103
      %v3105 = vadd.f32 %v3101, %v3104
      %vm3106 = vweird.f32 %v2957
      %vm3107 = vweird.f32 %v3101
      %vm3108 = vmor %vm3106, %vm3107
      %v3109 = vsel %vm3108, %v3101, %v3105
      %v3110 = vand.u32 2147483647, %v2957
      %vm3111 = vcmp.eq.f32.partialorder %v3110, 8.507059e+37
      %v3112 = vand.u32 %v2957, 2147483648
      %v3113 = vor.u32 1.1754944e-38, %v3112
      %v3114 = vsel %vm3111, %v3113, %v3109
      %v3115 = vmul.f32 1.0, %v3114
      %v3116 = vrcp.pop %v2958
      %v3117 = vmul.f32 %v2958, %v3116
      %v3118 = vsub.f32 1.0, %v3117
      %v3119 = vmul.f32 %v3116, %v3118
      %v3120 = vadd.f32 %v3116, %v3119
      %vm3121 = vweird.f32 %v2958
      %vm3122 = vweird.f32 %v3116
      %vm3123 = vmor %vm3121, %vm3122
      %v3124 = vsel %vm3123, %v3116, %v3120
      %v3125 = vand.u32 2147483647, %v2958
      %vm3126 = vcmp.eq.f32.partialorder %v3125, 8.507059e+37
      %v3127 = vand.u32 %v2958, 2147483648
      %v3128 = vor.u32 1.1754944e-38, %v3127
      %v3129 = vsel %vm3126, %v3128, %v3124
      %v3130 = vmul.f32 1.0, %v3129
      %v3131 = vrcp.pop %v2959
      %v3132 = vmul.f32 %v2959, %v3131
      %v3133 = vsub.f32 1.0, %v3132
      %v3134 = vmul.f32 %v3131, %v3133
      %v3135 = vadd.f32 %v3131, %v3134
      %vm3136 = vweird.f32 %v2959
      %vm3137 = vweird.f32 %v3131
      %vm3138 = vmor %vm3136, %vm3137
      %v3139 = vsel %vm3138, %v3131, %v3135
      %v3140 = vand.u32 2147483647, %v2959
      %vm3141 = vcmp.eq.f32.partialorder %v3140, 8.507059e+37
      %v3142 = vand.u32 %v2959, 2147483648
      %v3143 = vor.u32 1.1754944e-38, %v3142
      %v3144 = vsel %vm3141, %v3143, %v3139
      %v3145 = vmul.f32 1.0, %v3144
      %v3146 = vrcp.pop %v2960
      %v3147 = vmul.f32 %v2960, %v3146
      %v3148 = vsub.f32 1.0, %v3147
      %v3149 = vmul.f32 %v3146, %v3148
      %v3150 = vadd.f32 %v3146, %v3149
      %vm3151 = vweird.f32 %v2960
      %vm3152 = vweird.f32 %v3146
      %vm3153 = vmor %vm3151, %vm3152
      %v3154 = vsel %vm3153, %v3146, %v3150
      %v3155 = vand.u32 2147483647, %v2960
      %vm3156 = vcmp.eq.f32.partialorder %v3155, 8.507059e+37
      %v3157 = vand.u32 %v2960, 2147483648
      %v3158 = vor.u32 1.1754944e-38, %v3157
      %v3159 = vsel %vm3156, %v3158, %v3154
      %v3160 = vmul.f32 1.0, %v3159
      %v3161 = vrcp.pop %v2961
      %v3162 = vmul.f32 %v2961, %v3161
      %v3163 = vsub.f32 1.0, %v3162
      %v3164 = vmul.f32 %v3161, %v3163
      %v3165 = vadd.f32 %v3161, %v3164
      %vm3166 = vweird.f32 %v2961
      %vm3167 = vweird.f32 %v3161
      %vm3168 = vmor %vm3166, %vm3167
      %v3169 = vsel %vm3168, %v3161, %v3165
      %v3170 = vand.u32 2147483647, %v2961
      %vm3171 = vcmp.eq.f32.partialorder %v3170, 8.507059e+37
      %v3172 = vand.u32 %v2961, 2147483648
      %v3173 = vor.u32 1.1754944e-38, %v3172
      %v3174 = vsel %vm3171, %v3173, %v3169
      %v3175 = vmul.f32 1.0, %v3174
      %v3176 = vrcp.pop %v2962
      %v3177 = vmul.f32 %v2962, %v3176
      %v3178 = vsub.f32 1.0, %v3177
      %v3179 = vmul.f32 %v3176, %v3178
      %v3180 = vadd.f32 %v3176, %v3179
      %vm3181 = vweird.f32 %v2962
      %vm3182 = vweird.f32 %v3176
      %vm3183 = vmor %vm3181, %vm3182
      %v3184 = vsel %vm3183, %v3176, %v3180
      %v3185 = vand.u32 2147483647, %v2962
      %vm3186 = vcmp.eq.f32.partialorder %v3185, 8.507059e+37
      %v3187 = vand.u32 %v2962, 2147483648
      %v3188 = vor.u32 1.1754944e-38, %v3187
      %v3189 = vsel %vm3186, %v3188, %v3184
      %v3190 = vmul.f32 1.0, %v3189
      %v3191 = vrcp.pop %v2963
      %v3192 = vmul.f32 %v2963, %v3191
      %v3193 = vsub.f32 1.0, %v3192
      %v3194 = vmul.f32 %v3191, %v3193
      %v3195 = vadd.f32 %v3191, %v3194
      %vm3196 = vweird.f32 %v2963
      %vm3197 = vweird.f32 %v3191
      %vm3198 = vmor %vm3196, %vm3197
      %v3199 = vsel %vm3198, %v3191, %v3195
      %v3200 = vand.u32 2147483647, %v2963
      %vm3201 = vcmp.eq.f32.partialorder %v3200, 8.507059e+37
      %v3202 = vand.u32 %v2963, 2147483648
      %v3203 = vor.u32 1.1754944e-38, %v3202
      %v3204 = vsel %vm3201, %v3203, %v3199
      %v3205 = vmul.f32 1.0, %v3204
      %v3206 = vrcp.pop %v2964
      %v3207 = vmul.f32 %v2964, %v3206
      %v3208 = vsub.f32 1.0, %v3207
      %v3209 = vmul.f32 %v3206, %v3208
      %v3210 = vadd.f32 %v3206, %v3209
      %vm3211 = vweird.f32 %v2964
      %vm3212 = vweird.f32 %v3206
      %vm3213 = vmor %vm3211, %vm3212
      %v3214 = vsel %vm3213, %v3206, %v3210
      %v3215 = vand.u32 2147483647, %v2964
      %vm3216 = vcmp.eq.f32.partialorder %v3215, 8.507059e+37
      %v3217 = vand.u32 %v2964, 2147483648
      %v3218 = vor.u32 1.1754944e-38, %v3217
      %v3219 = vsel %vm3216, %v3218, %v3214
      %v3220 = vmul.f32 1.0, %v3219
      %v3221 = vrcp.pop %v2965
      %v3222 = vmul.f32 %v2965, %v3221
      %v3223 = vsub.f32 1.0, %v3222
      %v3224 = vmul.f32 %v3221, %v3223
      %v3225 = vadd.f32 %v3221, %v3224
      %vm3226 = vweird.f32 %v2965
      %vm3227 = vweird.f32 %v3221
      %vm3228 = vmor %vm3226, %vm3227
      %v3229 = vsel %vm3228, %v3221, %v3225
      %v3230 = vand.u32 2147483647, %v2965
      %vm3231 = vcmp.eq.f32.partialorder %v3230, 8.507059e+37
      %v3232 = vand.u32 %v2965, 2147483648
      %v3233 = vor.u32 1.1754944e-38, %v3232
      %v3234 = vsel %vm3231, %v3233, %v3229
      %v3235 = vmul.f32 1.0, %v3234
      %v3236 = vrcp.pop %v2966
      %v3237 = vmul.f32 %v2966, %v3236
      %v3238 = vsub.f32 1.0, %v3237
      %v3239 = vmul.f32 %v3236, %v3238
      %v3240 = vadd.f32 %v3236, %v3239
      %vm3241 = vweird.f32 %v2966
      %vm3242 = vweird.f32 %v3236
      %vm3243 = vmor %vm3241, %vm3242
      %v3244 = vsel %vm3243, %v3236, %v3240
      %v3245 = vand.u32 2147483647, %v2966
      %vm3246 = vcmp.eq.f32.partialorder %v3245, 8.507059e+37
      %v3247 = vand.u32 %v2966, 2147483648
      %v3248 = vor.u32 1.1754944e-38, %v3247
      %v3249 = vsel %vm3246, %v3248, %v3244
      %v3250 = vmul.f32 1.0, %v3249
      %v3251 = vrcp.pop %v2967
      %v3252 = vmul.f32 %v2967, %v3251
      %v3253 = vsub.f32 1.0, %v3252
      %v3254 = vmul.f32 %v3251, %v3253
      %v3255 = vadd.f32 %v3251, %v3254
      %vm3256 = vweird.f32 %v2967
      %vm3257 = vweird.f32 %v3251
      %vm3258 = vmor %vm3256, %vm3257
      %v3259 = vsel %vm3258, %v3251, %v3255
      %v3260 = vand.u32 2147483647, %v2967
      %vm3261 = vcmp.eq.f32.partialorder %v3260, 8.507059e+37
      %v3262 = vand.u32 %v2967, 2147483648
      %v3263 = vor.u32 1.1754944e-38, %v3262
      %v3264 = vsel %vm3261, %v3263, %v3259
      %v3265 = vmul.f32 1.0, %v3264
      %v3266 = vrcp.pop %v2968
      %v3267 = vmul.f32 %v2968, %v3266
      %v3268 = vsub.f32 1.0, %v3267
      %v3269 = vmul.f32 %v3266, %v3268
      %v3270 = vadd.f32 %v3266, %v3269
      %vm3271 = vweird.f32 %v2968
      %vm3272 = vweird.f32 %v3266
      %vm3273 = vmor %vm3271, %vm3272
      %v3274 = vsel %vm3273, %v3266, %v3270
      %v3275 = vand.u32 2147483647, %v2968
      %vm3276 = vcmp.eq.f32.partialorder %v3275, 8.507059e+37
      %v3277 = vand.u32 %v2968, 2147483648
      %v3278 = vor.u32 1.1754944e-38, %v3277
      %v3279 = vsel %vm3276, %v3278, %v3274
      %v3280 = vmul.f32 1.0, %v3279
      %v3281 = vrcp.pop %v2969
      %v3282 = vmul.f32 %v2969, %v3281
      %v3283 = vsub.f32 1.0, %v3282
      %v3284 = vmul.f32 %v3281, %v3283
      %v3285 = vadd.f32 %v3281, %v3284
      %vm3286 = vweird.f32 %v2969
      %vm3287 = vweird.f32 %v3281
      %vm3288 = vmor %vm3286, %vm3287
      %v3289 = vsel %vm3288, %v3281, %v3285
      %v3290 = vand.u32 2147483647, %v2969
      %vm3291 = vcmp.eq.f32.partialorder %v3290, 8.507059e+37
      %v3292 = vand.u32 %v2969, 2147483648
      %v3293 = vor.u32 1.1754944e-38, %v3292
      %v3294 = vsel %vm3291, %v3293, %v3289
      %v3295 = vmul.f32 1.0, %v3294
      %v3296 = vrcp.pop %v2970
      %v3297 = vmul.f32 %v2970, %v3296
      %v3298 = vsub.f32 1.0, %v3297
      %v3299 = vmul.f32 %v3296, %v3298
      %v3300 = vadd.f32 %v3296, %v3299
      %vm3301 = vweird.f32 %v2970
      %vm3302 = vweird.f32 %v3296
      %vm3303 = vmor %vm3301, %vm3302
      %v3304 = vsel %vm3303, %v3296, %v3300
      %v3305 = vand.u32 2147483647, %v2970
      %vm3306 = vcmp.eq.f32.partialorder %v3305, 8.507059e+37
      %v3307 = vand.u32 %v2970, 2147483648
      %v3308 = vor.u32 1.1754944e-38, %v3307
      %v3309 = vsel %vm3306, %v3308, %v3304
      %v3310 = vmul.f32 1.0, %v3309
      %v3311 = vrcp.pop %v2971
      %v3312 = vmul.f32 %v2971, %v3311
      %v3313 = vsub.f32 1.0, %v3312
      %v3314 = vmul.f32 %v3311, %v3313
      %v3315 = vadd.f32 %v3311, %v3314
      %vm3316 = vweird.f32 %v2971
      %vm3317 = vweird.f32 %v3311
      %vm3318 = vmor %vm3316, %vm3317
      %v3319 = vsel %vm3318, %v3311, %v3315
      %v3320 = vand.u32 2147483647, %v2971
      %vm3321 = vcmp.eq.f32.partialorder %v3320, 8.507059e+37
      %v3322 = vand.u32 %v2971, 2147483648
      %v3323 = vor.u32 1.1754944e-38, %v3322
      %v3324 = vsel %vm3321, %v3323, %v3319
      %v3325 = vmul.f32 1.0, %v3324
      %v3326 = vrcp.pop %v2972
      %v3327 = vmul.f32 %v2972, %v3326
      %v3328 = vsub.f32 1.0, %v3327
      %v3329 = vmul.f32 %v3326, %v3328
      %v3330 = vadd.f32 %v3326, %v3329
      %vm3331 = vweird.f32 %v2972
      %vm3332 = vweird.f32 %v3326
      %vm3333 = vmor %vm3331, %vm3332
      %v3334 = vsel %vm3333, %v3326, %v3330
      %v3335 = vand.u32 2147483647, %v2972
      %vm3336 = vcmp.eq.f32.partialorder %v3335, 8.507059e+37
      %v3337 = vand.u32 %v2972, 2147483648
      %v3338 = vor.u32 1.1754944e-38, %v3337
      %v3339 = vsel %vm3336, %v3338, %v3334
      %v3340 = vmul.f32 1.0, %v3339
      %v3341 = vrcp.pop %v2973
      %v3342 = vmul.f32 %v2973, %v3341
      %v3343 = vsub.f32 1.0, %v3342
      %v3344 = vmul.f32 %v3341, %v3343
      %v3345 = vadd.f32 %v3341, %v3344
      %vm3346 = vweird.f32 %v2973
      %vm3347 = vweird.f32 %v3341
      %vm3348 = vmor %vm3346, %vm3347
      %v3349 = vsel %vm3348, %v3341, %v3345
      %v3350 = vand.u32 2147483647, %v2973
      %vm3351 = vcmp.eq.f32.partialorder %v3350, 8.507059e+37
      %v3352 = vand.u32 %v2973, 2147483648
      %v3353 = vor.u32 1.1754944e-38, %v3352
      %v3354 = vsel %vm3351, %v3353, %v3349
      %v3355 = vmul.f32 1.0, %v3354
      %v3356 = vrcp.pop %v2974
      %v3357 = vmul.f32 %v2974, %v3356
      %v3358 = vsub.f32 1.0, %v3357
      %v3359 = vmul.f32 %v3356, %v3358
      %v3360 = vadd.f32 %v3356, %v3359
      %vm3361 = vweird.f32 %v2974
      %vm3362 = vweird.f32 %v3356
      %vm3363 = vmor %vm3361, %vm3362
      %v3364 = vsel %vm3363, %v3356, %v3360
      %v3365 = vand.u32 2147483647, %v2974
      %vm3366 = vcmp.eq.f32.partialorder %v3365, 8.507059e+37
      %v3367 = vand.u32 %v2974, 2147483648
      %v3368 = vor.u32 1.1754944e-38, %v3367
      %v3369 = vsel %vm3366, %v3368, %v3364
      %v3370 = vmul.f32 1.0, %v3369
      %v3371 = vrcp.pop %v2975
      %v3372 = vmul.f32 %v2975, %v3371
      %v3373 = vsub.f32 1.0, %v3372
      %v3374 = vmul.f32 %v3371, %v3373
      %v3375 = vadd.f32 %v3371, %v3374
      %vm3376 = vweird.f32 %v2975
      %vm3377 = vweird.f32 %v3371
      %vm3378 = vmor %vm3376, %vm3377
      %v3379 = vsel %vm3378, %v3371, %v3375
      %v3380 = vand.u32 2147483647, %v2975
      %vm3381 = vcmp.eq.f32.partialorder %v3380, 8.507059e+37
      %v3382 = vand.u32 %v2975, 2147483648
      %v3383 = vor.u32 1.1754944e-38, %v3382
      %v3384 = vsel %vm3381, %v3383, %v3379
      %v3385 = vmul.f32 1.0, %v3384
      %v3386 = vrcp.pop %v2976
      %v3387 = vmul.f32 %v2976, %v3386
      %v3388 = vsub.f32 1.0, %v3387
      %v3389 = vmul.f32 %v3386, %v3388
      %v3390 = vadd.f32 %v3386, %v3389
      %vm3391 = vweird.f32 %v2976
      %vm3392 = vweird.f32 %v3386
      %vm3393 = vmor %vm3391, %vm3392
      %v3394 = vsel %vm3393, %v3386, %v3390
      %v3395 = vand.u32 2147483647, %v2976
      %vm3396 = vcmp.eq.f32.partialorder %v3395, 8.507059e+37
      %v3397 = vand.u32 %v2976, 2147483648
      %v3398 = vor.u32 1.1754944e-38, %v3397
      %v3399 = vsel %vm3396, %v3398, %v3394
      %v3400 = vmul.f32 1.0, %v3399
      %v3401 = vrcp.pop %v2977
      %v3402 = vmul.f32 %v2977, %v3401
      %v3403 = vsub.f32 1.0, %v3402
      %v3404 = vmul.f32 %v3401, %v3403
      %v3405 = vadd.f32 %v3401, %v3404
      %vm3406 = vweird.f32 %v2977
      %vm3407 = vweird.f32 %v3401
      %vm3408 = vmor %vm3406, %vm3407
      %v3409 = vsel %vm3408, %v3401, %v3405
      %v3410 = vand.u32 2147483647, %v2977
      %vm3411 = vcmp.eq.f32.partialorder %v3410, 8.507059e+37
      %v3412 = vand.u32 %v2977, 2147483648
      %v3413 = vor.u32 1.1754944e-38, %v3412
      %v3414 = vsel %vm3411, %v3413, %v3409
      %v3415 = vmul.f32 1.0, %v3414
      %v3416 = vrcp.pop %v2978
      %v3417 = vmul.f32 %v2978, %v3416
      %v3418 = vsub.f32 1.0, %v3417
      %v3419 = vmul.f32 %v3416, %v3418
      %v3420 = vadd.f32 %v3416, %v3419
      %vm3421 = vweird.f32 %v2978
      %vm3422 = vweird.f32 %v3416
      %vm3423 = vmor %vm3421, %vm3422
      %v3424 = vsel %vm3423, %v3416, %v3420
      %v3425 = vand.u32 2147483647, %v2978
      %vm3426 = vcmp.eq.f32.partialorder %v3425, 8.507059e+37
      %v3427 = vand.u32 %v2978, 2147483648
      %v3428 = vor.u32 1.1754944e-38, %v3427
      %v3429 = vsel %vm3426, %v3428, %v3424
      %v3430 = vmul.f32 1.0, %v3429
      %v3431 = vrcp.pop %v2979
      %v3432 = vmul.f32 %v2979, %v3431
      %v3433 = vsub.f32 1.0, %v3432
      %v3434 = vmul.f32 %v3431, %v3433
      %v3435 = vadd.f32 %v3431, %v3434
      %vm3436 = vweird.f32 %v2979
      %vm3437 = vweird.f32 %v3431
      %vm3438 = vmor %vm3436, %vm3437
      %v3439 = vsel %vm3438, %v3431, %v3435
      %v3440 = vand.u32 2147483647, %v2979
      %vm3441 = vcmp.eq.f32.partialorder %v3440, 8.507059e+37
      %v3442 = vand.u32 %v2979, 2147483648
      %v3443 = vor.u32 1.1754944e-38, %v3442
      %v3444 = vsel %vm3441, %v3443, %v3439
      %v3445 = vmul.f32 1.0, %v3444
      %v3446 = vrcp.pop %v2980
      %v3447 = vmul.f32 %v2980, %v3446
      %v3448 = vsub.f32 1.0, %v3447
      %v3449 = vmul.f32 %v3446, %v3448
      %v3450 = vadd.f32 %v3446, %v3449
      %vm3451 = vweird.f32 %v2980
      %vm3452 = vweird.f32 %v3446
      %vm3453 = vmor %vm3451, %vm3452
      %v3454 = vsel %vm3453, %v3446, %v3450
      %v3455 = vand.u32 2147483647, %v2980
      %vm3456 = vcmp.eq.f32.partialorder %v3455, 8.507059e+37
      %v3457 = vand.u32 %v2980, 2147483648
      %v3458 = vor.u32 1.1754944e-38, %v3457
      %v3459 = vsel %vm3456, %v3458, %v3454
      %v3460 = vmul.f32 1.0, %v3459
      %v3461 = vmul.f32 %v2726, %v2995
      %v3462 = vmul.f32 %v2729, %v3010
      %v3463 = vmul.f32 %v2732, %v3025
      %v3464 = vmul.f32 %v2735, %v3040
      %v3465 = vmul.f32 %v2738, %v3055
      %v3466 = vmul.f32 %v2741, %v3070
      %v3467 = vmul.f32 %v2744, %v3085
      %v3468 = vmul.f32 %v2747, %v3100
      %v3469 = vmul.f32 %v2750, %v3115
      %v3470 = vmul.f32 %v2753, %v3130
      %v3471 = vmul.f32 %v2756, %v3145
      %v3472 = vmul.f32 %v2759, %v3160
      %v3473 = vmul.f32 %v2762, %v3175
      %v3474 = vmul.f32 %v2765, %v3190
      %v3475 = vmul.f32 %v2768, %v3205
      %v3476 = vmul.f32 %v2771, %v3220
      %v3477 = vmul.f32 %v2774, %v3235
      %v3478 = vmul.f32 %v2777, %v3250
      %v3479 = vmul.f32 %v2780, %v3265
      %v3480 = vmul.f32 %v2783, %v3280
      %v3481 = vmul.f32 %v2786, %v3295
      %v3482 = vmul.f32 %v2789, %v3310
      %v3483 = vmul.f32 %v2792, %v3325
      %v3484 = vmul.f32 %v2795, %v3340
      %v3485 = vmul.f32 %v2798, %v3355
      %v3486 = vmul.f32 %v2801, %v3370
      %v3487 = vmul.f32 %v2804, %v3385
      %v3488 = vmul.f32 %v2807, %v3400
      %v3489 = vmul.f32 %v2810, %v3415
      %v3490 = vmul.f32 %v2813, %v3430
      %v3491 = vmul.f32 %v2816, %v3445
      %v3492 = vmul.f32 %v2819, %v3460
      %v3493 = vld [vmem:[%s5] sm:$0xff]
      %v3494 = vld [vmem:[%s6] sm:$0x1]
      %v3496 = vperm.slane %v3494, 0
      %v3499 = vsel %vm1202, %v3461, 0
      %v3502 = vsel %vm1202, %v3462, 0
      %v3505 = vsel %vm1202, %v3463, 0
      %v3508 = vsel %vm1202, %v3464, 0
      %v3511 = vsel %vm1202, %v3465, 0
      %v3514 = vsel %vm1202, %v3466, 0
      %v3517 = vsel %vm1202, %v3467, 0
      %v3520 = vsel %vm1202, %v3468, 0
      %v3523 = vsel %vm1202, %v3469, 0
      %v3526 = vsel %vm1202, %v3470, 0
      %v3529 = vsel %vm1202, %v3471, 0
      %v3532 = vsel %vm1202, %v3472, 0
      %v3535 = vsel %vm1202, %v3473, 0
      %v3538 = vsel %vm1202, %v3474, 0
      %v3541 = vsel %vm1202, %v3475, 0
      %v3544 = vsel %vm1202, %v3476, 0
      %v3547 = vsel %vm1202, %v3477, 0
      %v3550 = vsel %vm1202, %v3478, 0
      %v3553 = vsel %vm1202, %v3479, 0
      %v3556 = vsel %vm1202, %v3480, 0
      %v3559 = vsel %vm1202, %v3481, 0
      %v3562 = vsel %vm1202, %v3482, 0
      %v3565 = vsel %vm1202, %v3483, 0
      %v3568 = vsel %vm1202, %v3484, 0
      %v3571 = vsel %vm1202, %v3485, 0
      %v3574 = vsel %vm1202, %v3486, 0
      %v3577 = vsel %vm1202, %v3487, 0
      %v3580 = vsel %vm1202, %v3488, 0
      %v3583 = vsel %vm1202, %v3489, 0
      %v3586 = vsel %vm1202, %v3490, 0
      %v3589 = vsel %vm1202, %v3491, 0
      %v3592 = vsel %vm1202, %v3492, 0
      %3594 = vmatpush.msra.mxu0 0.0
      %3595 = vmatpush.msra.mxu0 0.0
      %3596 = vmatpush.msra.mxu0 0.0
      %3597 = vmatpush.msra.mxu0 0.0
      %3598 = vmatpush.msra.mxu0 0.0
      %3599 = vmatpush.msra.mxu0 0.0
      %3600 = vmatpush.msra.mxu0 0.0
      %3601 = vmatpush.msra.mxu0 0.0
      %3602 = vmatpush.msra.mxu0 0.0
      %3603 = vmatpush.msra.mxu0 0.0
      %3604 = vmatpush.msra.mxu0 0.0
      %3605 = vmatpush.msra.mxu0 0.0
      %3606 = vmatpush.msra.mxu0 0.0
      %3607 = vmatpush.msra.mxu0 0.0
      %3608 = vmatpush.msra.mxu0 0.0
      %3609 = vmatpush.msra.mxu0 %v3493
      %3610 = vmatmul.f32.gmra.mxu0 %v3499
      %v3611 = vpop.f32.mrf.mxu0
      %v3612 = vadd.f32 %v3496, %v3611
      %3613 = vmatmul.f32.gmra.mxu0 %v3502
      %v3614 = vpop.f32.mrf.mxu0
      %v3615 = vadd.f32 %v3496, %v3614
      %3616 = vmatmul.f32.gmra.mxu0 %v3505
      %v3617 = vpop.f32.mrf.mxu0
      %v3618 = vadd.f32 %v3496, %v3617
      %3619 = vmatmul.f32.gmra.mxu0 %v3508
      %v3620 = vpop.f32.mrf.mxu0
      %v3621 = vadd.f32 %v3496, %v3620
      %3622 = vmatmul.f32.gmra.mxu0 %v3511
      %v3623 = vpop.f32.mrf.mxu0
      %v3624 = vadd.f32 %v3496, %v3623
      %3625 = vmatmul.f32.gmra.mxu0 %v3514
      %v3626 = vpop.f32.mrf.mxu0
      %v3627 = vadd.f32 %v3496, %v3626
      %3628 = vmatmul.f32.gmra.mxu0 %v3517
      %v3629 = vpop.f32.mrf.mxu0
      %v3630 = vadd.f32 %v3496, %v3629
      %3631 = vmatmul.f32.gmra.mxu0 %v3520
      %v3632 = vpop.f32.mrf.mxu0
      %v3633 = vadd.f32 %v3496, %v3632
      %3634 = vmatmul.f32.gmra.mxu0 %v3523
      %v3635 = vpop.f32.mrf.mxu0
      %v3636 = vadd.f32 %v3496, %v3635
      %3637 = vmatmul.f32.gmra.mxu0 %v3526
      %v3638 = vpop.f32.mrf.mxu0
      %v3639 = vadd.f32 %v3496, %v3638
      %3640 = vmatmul.f32.gmra.mxu0 %v3529
      %v3641 = vpop.f32.mrf.mxu0
      %v3642 = vadd.f32 %v3496, %v3641
      %3643 = vmatmul.f32.gmra.mxu0 %v3532
      %v3644 = vpop.f32.mrf.mxu0
      %v3645 = vadd.f32 %v3496, %v3644
      %3646 = vmatmul.f32.gmra.mxu0 %v3535
      %v3647 = vpop.f32.mrf.mxu0
      %v3648 = vadd.f32 %v3496, %v3647
      %3649 = vmatmul.f32.gmra.mxu0 %v3538
      %v3650 = vpop.f32.mrf.mxu0
      %v3651 = vadd.f32 %v3496, %v3650
      %3652 = vmatmul.f32.gmra.mxu0 %v3541
      %v3653 = vpop.f32.mrf.mxu0
      %v3654 = vadd.f32 %v3496, %v3653
      %3655 = vmatmul.f32.gmra.mxu0 %v3544
      %v3656 = vpop.f32.mrf.mxu0
      %v3657 = vadd.f32 %v3496, %v3656
      %3658 = vmatmul.f32.gmra.mxu0 %v3547
      %v3659 = vpop.f32.mrf.mxu0
      %v3660 = vadd.f32 %v3496, %v3659
      %3661 = vmatmul.f32.gmra.mxu0 %v3550
      %v3662 = vpop.f32.mrf.mxu0
      %v3663 = vadd.f32 %v3496, %v3662
      %3664 = vmatmul.f32.gmra.mxu0 %v3553
      %v3665 = vpop.f32.mrf.mxu0
      %v3666 = vadd.f32 %v3496, %v3665
      %3667 = vmatmul.f32.gmra.mxu0 %v3556
      %v3668 = vpop.f32.mrf.mxu0
      %v3669 = vadd.f32 %v3496, %v3668
      %3670 = vmatmul.f32.gmra.mxu0 %v3559
      %v3671 = vpop.f32.mrf.mxu0
      %v3672 = vadd.f32 %v3496, %v3671
      %3673 = vmatmul.f32.gmra.mxu0 %v3562
      %v3674 = vpop.f32.mrf.mxu0
      %v3675 = vadd.f32 %v3496, %v3674
      %3676 = vmatmul.f32.gmra.mxu0 %v3565
      %v3677 = vpop.f32.mrf.mxu0
      %v3678 = vadd.f32 %v3496, %v3677
      %3679 = vmatmul.f32.gmra.mxu0 %v3568
      %v3680 = vpop.f32.mrf.mxu0
      %v3681 = vadd.f32 %v3496, %v3680
      %3682 = vmatmul.f32.gmra.mxu0 %v3571
      %v3683 = vpop.f32.mrf.mxu0
      %v3684 = vadd.f32 %v3496, %v3683
      %3685 = vmatmul.f32.gmra.mxu0 %v3574
      %v3686 = vpop.f32.mrf.mxu0
      %v3687 = vadd.f32 %v3496, %v3686
      %3688 = vmatmul.f32.gmra.mxu0 %v3577
      %v3689 = vpop.f32.mrf.mxu0
      %v3690 = vadd.f32 %v3496, %v3689
      %3691 = vmatmul.f32.gmra.mxu0 %v3580
      %v3692 = vpop.f32.mrf.mxu0
      %v3693 = vadd.f32 %v3496, %v3692
      %3694 = vmatmul.f32.gmra.mxu0 %v3583
      %v3695 = vpop.f32.mrf.mxu0
      %v3696 = vadd.f32 %v3496, %v3695
      %3697 = vmatmul.f32.gmra.mxu0 %v3586
      %v3698 = vpop.f32.mrf.mxu0
      %v3699 = vadd.f32 %v3496, %v3698
      %3700 = vmatmul.f32.gmra.mxu0 %v3589
      %v3701 = vpop.f32.mrf.mxu0
      %v3702 = vadd.f32 %v3496, %v3701
      %3703 = vmatmul.f32.gmra.mxu0 %v3592
      %v3704 = vpop.f32.mrf.mxu0
      %v3705 = vadd.f32 %v3496, %v3704
      %3706 = vdwg.mxu0
      %3707 = vst.msk [vmem:[%s278] sm:$0xff] %vm316, %v3612
      %3708 = vst.msk [vmem:[%s278 + $0x8] sm:$0xff] %vm316, %v3615
      %3709 = vst.msk [vmem:[%s278 + $0x10] sm:$0xff] %vm316, %v3618
      %3710 = vst.msk [vmem:[%s278 + $0x18] sm:$0xff] %vm316, %v3621
      %3711 = vst.msk [vmem:[%s278 + $0x20] sm:$0xff] %vm316, %v3624
      %3712 = vst.msk [vmem:[%s278 + $0x28] sm:$0xff] %vm316, %v3627
      %3713 = vst.msk [vmem:[%s278 + $0x30] sm:$0xff] %vm316, %v3630
      %3714 = vst.msk [vmem:[%s278 + $0x38] sm:$0xff] %vm316, %v3633
      %3715 = vst.msk [vmem:[%s278 + $0x40] sm:$0xff] %vm316, %v3636
      %3716 = vst.msk [vmem:[%s278 + $0x48] sm:$0xff] %vm316, %v3639
      %3717 = vst.msk [vmem:[%s278 + $0x50] sm:$0xff] %vm316, %v3642
      %3718 = vst.msk [vmem:[%s278 + $0x58] sm:$0xff] %vm316, %v3645
      %3719 = vst.msk [vmem:[%s278 + $0x60] sm:$0xff] %vm316, %v3648
      %3720 = vst.msk [vmem:[%s278 + $0x68] sm:$0xff] %vm316, %v3651
      %3721 = vst.msk [vmem:[%s278 + $0x70] sm:$0xff] %vm316, %v3654
      %3722 = vst.msk [vmem:[%s278 + $0x78] sm:$0xff] %vm316, %v3657
      %3723 = vst.msk [vmem:[%s278 + $0x80] sm:$0xff] %vm316, %v3660
      %3724 = vst.msk [vmem:[%s278 + $0x88] sm:$0xff] %vm316, %v3663
      %3725 = vst.msk [vmem:[%s278 + $0x90] sm:$0xff] %vm316, %v3666
      %3726 = vst.msk [vmem:[%s278 + $0x98] sm:$0xff] %vm316, %v3669
      %3727 = vst.msk [vmem:[%s278 + $0xa0] sm:$0xff] %vm316, %v3672
      %3728 = vst.msk [vmem:[%s278 + $0xa8] sm:$0xff] %vm316, %v3675
      %3729 = vst.msk [vmem:[%s278 + $0xb0] sm:$0xff] %vm316, %v3678
      %3730 = vst.msk [vmem:[%s278 + $0xb8] sm:$0xff] %vm316, %v3681
      %3731 = vst.msk [vmem:[%s278 + $0xc0] sm:$0xff] %vm316, %v3684
      %3732 = vst.msk [vmem:[%s278 + $0xc8] sm:$0xff] %vm316, %v3687
      %3733 = vst.msk [vmem:[%s278 + $0xd0] sm:$0xff] %vm316, %v3690
      %3734 = vst.msk [vmem:[%s278 + $0xd8] sm:$0xff] %vm316, %v3693
      %3735 = vst.msk [vmem:[%s278 + $0xe0] sm:$0xff] %vm316, %v3696
      %3736 = vst.msk [vmem:[%s278 + $0xe8] sm:$0xff] %vm316, %v3699
      %3737 = vst.msk [vmem:[%s278 + $0xf0] sm:$0xff] %vm316, %v3702
      %3738 = vst.msk [vmem:[%s278 + $0xf8] sm:$0xff] %vm316, %v3705
      %p3739 = scmp.lt.s32.totalorder %s18, 1
      %s3740 = scalar_select %p3739, %s18, 1
      %s3741 = smul.addr %s3740, 32
      %s3742 = smul.addr %s3741, 8
      %s3743 = scalar_lea.vmem %s7, %s3742
      // Predicated region
      $region49: #{convpass_forward.1} parent=47 // pred_check
        %p3744 = pneg %p188
      $region50: #{convpass_forward.1} parent=47 // pred_check_branch
        %3746 = sbr.rel (%p3744) target = $region52
      $region51: #{convpass_forward.1} parent=47 // pred_region
        _
      $region52: #{convpass_forward.1} parent=47 // pred_fallthru
        _
    $region48: #{convpass_forward.1} parent=5 // pred_fallthru
      _
    %p3747 = scmp.le.s32.totalorder 2, %s13
    // Predicated region
    $region53: #{convpass_forward.1} parent=5 // pred_check
      %p3748 = pneg %p3747
    $region54: #{convpass_forward.1} parent=5 // pred_check_branch
      %3750 = sbr.rel (%p3748) target = $region56
    $region55: #{convpass_forward.1} parent=5 // pred_region
      %s3751 = ssub.s32 %s13, 2
      // Predicated region
      $region57: #{convpass_forward.1} parent=55 // pred_check
        %p3752 = pneg %p194
      $region58: #{convpass_forward.1} parent=55 // pred_check_branch
        %3754 = sbr.rel (%p3752) target = $region60
      $region59: #{convpass_forward.1} parent=55 // pred_region
        %p3755 = scmp.lt.s32.totalorder %s19, 1
        %s3756 = scalar_select %p3755, %s19, 1
        %s3757 = smul.addr %s3756, 32
        %s3758 = smul.addr %s3757, 8
        %s3759 = scalar_lea.vmem %s7, %s3758
      $region60: #{convpass_forward.1} parent=55 // pred_fallthru
        _
    $region56: #{convpass_forward.1} parent=5 // pred_fallthru
      _
  $region6: #{convpass_forward.1} parent=0 // loop_footer
    %s17 = sadd.s32 1, %s13
  $region7: #{convpass_forward.1} parent=0 // loop_footer_branch
    %12 = sbr.rel target = $region3
  $region8: #{convpass_forward.1} parent=0 // loop_exit
    _

</llo_original>
